<compile_context>
chip_gen: v7x
topology: tpu7x:2x2x1
jax: 0.10.0
libtpu: 0.0.40
codegen_flags: <defaults>
</compile_context>

<pallas_src>
import math
from functools import partial

import jax
import jax.numpy as jnp
import numpy as np
from jax.experimental import pallas as pl
from jax.experimental.pallas import tpu as pltpu

MOVING_AVG = 5      # odd moving-average window for series_decomp (Autoformer default 25)
LN_EPS = 1e-5       # PyTorch nn.LayerNorm default eps


# ----------------------------------------------------------------------------
# host-side helper: series_decomp as a matrix  (seasonal = (I - A) @ x)
# ----------------------------------------------------------------------------
def _decomp_matrix(L, k):
    """(I - A): A[i, j] = weight of x[j] in the replicate-padded moving average at i."""
    pad = (k - 1) // 2
    A = np.zeros((L, L), np.float64)
    for i in range(L):
        for w in range(i - pad, i + pad + 1):
            j = min(max(w, 0), L - 1)
            A[i, j] += 1.0 / k
    return jnp.asarray((np.eye(L) - A).astype(np.float32))


# ----------------------------------------------------------------------------
# fused Autoformer encoder layer kernel (optionally + final LayerNorm)
# ----------------------------------------------------------------------------
def _encoder_layer_kernel(x_ref, dm_ref, wq_ref, bq_ref, wk_ref, bk_ref,
                          wv_ref, bv_ref, wo_ref, bo_ref, w1_ref, w2_ref,
                          g_ref, bn_ref, out_ref, *rest,
                          nhead, activation, apply_norm, collect_attn, mxu_dtype):
    if collect_attn:
        attn_ref, ctx_scratch = rest
    else:
        (ctx_scratch,) = rest

    x3 = x_ref[...].astype(jnp.float32)                  # (Bt, L, D)
    Bt, L, D = x3.shape
    hd = D // nhead
    scale = 1.0 / math.sqrt(hd)

    xf = x3.reshape(Bt * L, D)                           # rows batched into MXU M dim
    xm = xf.astype(mxu_dtype)

    # qkv projections (Linear with bias); bf16 operands, f32 accumulation
    q = jnp.dot(xm, wq_ref[...].astype(mxu_dtype),
                preferred_element_type=jnp.float32) + bq_ref[...]
    k = jnp.dot(xm, wk_ref[...].astype(mxu_dtype),
                preferred_element_type=jnp.float32) + bk_ref[...]
    v = jnp.dot(xm, wv_ref[...].astype(mxu_dtype),
                preferred_element_type=jnp.float32) + bv_ref[...]
    q = q * scale                                        # fold 1/sqrt(hd) into q once

    # per-head attention, batched over Bt; context written into VMEM scratch slab
    for h in range(nhead):
        sl = slice(h * hd, (h + 1) * hd)
        qh = q[:, sl].reshape(Bt, L, hd).astype(mxu_dtype)
        kh = k[:, sl].reshape(Bt, L, hd).astype(mxu_dtype)
        vh = v[:, sl].reshape(Bt, L, hd).astype(mxu_dtype)
        s = jax.lax.dot_general(qh, kh, (((2,), (2,)), ((0,), (0,))),
                                preferred_element_type=jnp.float32)      # (Bt, L, L)
        m = jnp.max(s, axis=-1, keepdims=True)
        e = jnp.exp(s - m)
        p = e * pl.reciprocal(jnp.sum(e, axis=-1, keepdims=True), approx=True)
        if collect_attn:
            attn_ref[:, h, :, :] = p.astype(attn_ref.dtype)
        ctx_h = jax.lax.dot_general(p.astype(mxu_dtype), vh,
                                    (((2,), (1,)), ((0,), (0,))),
                                    preferred_element_type=jnp.float32)  # (Bt, L, hd)
        ctx_scratch[:, sl] = ctx_h.reshape(Bt * L, hd).astype(ctx_scratch.dtype)

    attn_out = jnp.dot(ctx_scratch[...], wo_ref[...].astype(mxu_dtype),
                       preferred_element_type=jnp.float32) + bo_ref[...]

    # series_decomp as one batched MXU matmul: seasonal = (I - A) @ z   (f32 for accuracy)
    dm_b = jnp.broadcast_to(dm_ref[...][None, :, :], (Bt, L, L))   # hoisted, used twice

    z1 = (xf + attn_out).reshape(Bt, L, D)
    x1 = jax.lax.dot_general(dm_b, z1, (((2,), (1,)), ((0,), (0,))),
                             preferred_element_type=jnp.float32)         # (Bt, L, D)
    x1f = x1.reshape(Bt * L, D)

    # position-wise FFN (1x1 convs, bias=False) == matmuls
    y = jnp.dot(x1f.astype(mxu_dtype), w1_ref[...].astype(mxu_dtype),
                preferred_element_type=jnp.float32)
    if activation == "relu":
        y = jnp.maximum(y, 0.0)
    else:
        y = jax.nn.gelu(y, approximate=True)            # tanh approx -> single EUP op
    y = jnp.dot(y.astype(mxu_dtype), w2_ref[...].astype(mxu_dtype),
                preferred_element_type=jnp.float32)

    z2 = (x1f + y).reshape(Bt, L, D)
    res = jax.lax.dot_general(dm_b, z2, (((2,), (1,)), ((0,), (0,))),
                              preferred_element_type=jnp.float32)

    if apply_norm:                                       # fused final LayerNorm
        mean = jnp.mean(res, axis=-1, keepdims=True)
        xc = res - mean
        var = jnp.mean(xc * xc, axis=-1, keepdims=True)
        res = xc * jax.lax.rsqrt(var + LN_EPS) * g_ref[...].reshape(1, 1, D) \
              + bn_ref[...].reshape(1, 1, D)

    out_ref[...] = res.astype(out_ref.dtype)


# ----------------------------------------------------------------------------
# wrapper
# ----------------------------------------------------------------------------
def _choose_bt(B, L, max_rows=512):
    """Largest divisor of B with Bt*L <= max_rows (fills the MXU M dimension)."""
    bt = 1
    for d in range(1, B + 1):
        if B % d == 0 and d * L <= max_rows:
            bt = d
    return bt


def _vmem_estimate(bt, L, D, dff, nhead, collect_attn):
    f32 = 4
    rows = bt * L
    weights = (4 * D * D + 2 * D * dff + 6 * D + L * L) * f32
    io = 2 * 2 * rows * D * f32                       # x + out blocks, double buffered
    attn = 2 * bt * nhead * L * L * f32 if collect_attn else 0
    interm = rows * max(D, dff) * f32 * 6 + bt * L * L * f32 * 4
    return weights + io + attn + interm + rows * D * f32


def _encoder_layer(x, dm, p, gamma, beta, *, nhead, activation, apply_norm,
                   collect_attn, mxu_dtype, bt):
    B, L, D = x.shape
    kernel = partial(_encoder_layer_kernel, nhead=nhead, activation=activation,
                     apply_norm=apply_norm, collect_attn=collect_attn,
                     mxu_dtype=mxu_dtype)

    def full_spec(arr):
        nd = arr.ndim
        return pl.BlockSpec(arr.shape, lambda g, _nd=nd: (0,) * _nd)

    weight_names = ("wq", "bq", "wk", "bk", "wv", "bv", "wo", "bo", "w1", "w2")
    weights = [p[name] for name in weight_names]

    in_specs = ([pl.BlockSpec((bt, L, D), lambda g: (g, 0, 0)), full_spec(dm)]
                + [full_spec(w) for w in weights]
                + [full_spec(gamma), full_spec(beta)])

    out_spec_x = pl.BlockSpec((bt, L, D), lambda g: (g, 0, 0))
    out_shape_x = jax.ShapeDtypeStruct((B, L, D), jnp.float32)
    if collect_attn:
        out_specs = (out_spec_x,
                     pl.BlockSpec((bt, nhead, L, L), lambda g: (g, 0, 0, 0)))
        out_shape = (out_shape_x,
                     jax.ShapeDtypeStruct((B, nhead, L, L), jnp.float32))
    else:
        out_specs = out_spec_x
        out_shape = out_shape_x

    dff = p["w1"].shape[1]
    vmem_est = _vmem_estimate(bt, L, D, dff, nhead, collect_attn)
    vmem_limit = int(min(64 * 1024 * 1024, max(32 * 1024 * 1024, 2 * vmem_est)))

    result = pl.pallas_call(
        kernel,
        grid=(B // bt,),
        in_specs=in_specs,
        out_specs=out_specs,
        out_shape=out_shape,
        scratch_shapes=[pltpu.VMEM((bt * L, D), mxu_dtype)],   # per-head ctx slab
        compiler_params=pltpu.CompilerParams(
            dimension_semantics=("parallel",),                 # batch tiles independent
            vmem_limit_bytes=vmem_limit),
    )(x, dm, *weights, gamma, beta)

    if collect_attn:
        return result[0], result[1]
    return result, None


# ----------------------------------------------------------------------------
# forward of autoformer_encoder: layer stack + fused final LayerNorm, returns (x, attns)
# ----------------------------------------------------------------------------
def autoformer_encoder_forward(x, params, *, nhead, moving_avg=MOVING_AVG,
                               activation="relu", collect_attn=True,
                               mxu_dtype=jnp.bfloat16):
    B, L, D = x.shape
    assert D % nhead == 0, "hidden_size must be divisible by nhead"
    dm = _decomp_matrix(L, moving_avg)
    bt = _choose_bt(B, L)
    n_layers = len(params["layers"])
    attns = []
    for i, p in enumerate(params["layers"]):
        x, a = _encoder_layer(x, dm, p, params["norm_gamma"], params["norm_beta"],
                              nhead=nhead, activation=activation,
                              apply_norm=(i == n_layers - 1),
                              collect_attn=collect_attn, mxu_dtype=mxu_dtype, bt=bt)
        attns.append(a)
    return x, attns


# ----------------------------------------------------------------------------
# deterministic parameter initialization (PyTorch-Linear-style uniform)
# ----------------------------------------------------------------------------
def init_params(key, hidden, dim_ff, layer_num):
    def lin(k, fan_in, shape):
        bound = 1.0 / math.sqrt(fan_in)
        return jax.random.uniform(k, shape, jnp.float32, -bound, bound)

    keys = jax.random.split(key, layer_num)
    layers = []
    for i in range(layer_num):
        ks = jax.random.split(keys[i], 10)
        layers.append(dict(
            wq=lin(ks[0], hidden, (hidden, hidden)), bq=lin(ks[1], hidden, (1, hidden)),
            wk=lin(ks[2], hidden, (hidden, hidden)), bk=lin(ks[3], hidden, (1, hidden)),
            wv=lin(ks[4], hidden, (hidden, hidden)), bv=lin(ks[5], hidden, (1, hidden)),
            wo=lin(ks[6], hidden, (hidden, hidden)), bo=lin(ks[7], hidden, (1, hidden)),
            w1=lin(ks[8], hidden, (hidden, dim_ff)),     # conv1 1x1, bias=False
            w2=lin(ks[9], dim_ff, (dim_ff, hidden)),     # conv2 1x1, bias=False
        ))
    return dict(layers=layers,
                norm_gamma=jnp.ones((1, hidden), jnp.float32),
                norm_beta=jnp.zeros((1, hidden), jnp.float32))


# ----------------------------------------------------------------------------
# pure-JAX reference for verification
# ----------------------------------------------------------------------------
def _ref_forward(x, params, nhead, moving_avg, activation):
    def decomp(z):
        B, L, D = z.shape
        pad = (moving_avg - 1) // 2
        front = jnp.repeat(z[:, :1, :], pad, axis=1)
        end = jnp.repeat(z[:, -1:, :], pad, axis=1)
        zp = jnp.concatenate([front, z, end], axis=1)
        mm = sum(zp[:, j:j + L, :] for j in range(moving_avg)) / moving_avg
        return z - mm

    attns = []
    B, L, D = x.shape
    hd = D // nhead
    for p in params["layers"]:
        q = (x @ p["wq"] + p["bq"]).reshape(B, L, nhead, hd)
        k = (x @ p["wk"] + p["bk"]).reshape(B, L, nhead, hd)
        v = (x @ p["wv"] + p["bv"]).reshape(B, L, nhead, hd)
        s = jnp.einsum("blhe,bshe->bhls", q, k) / math.sqrt(hd)
        a = jax.nn.softmax(s, axis=-1)
        attns.append(a)
        ctx = jnp.einsum("bhls,bshd->blhd", a, v).reshape(B, L, D)
        attn_out = ctx @ p["wo"] + p["bo"]
        x1 = decomp(x + attn_out)
        y = x1 @ p["w1"]
        y = jnp.maximum(y, 0.0) if activation == "relu" else jax.nn.gelu(y, approximate=True)
        y = y @ p["w2"]
        x = decomp(x1 + y)
    mean = jnp.mean(x, axis=-1, keepdims=True)
    var = jnp.mean((x - mean) ** 2, axis=-1, keepdims=True)
    x = (x - mean) * jax.lax.rsqrt(var + LN_EPS) * params["norm_gamma"][0] + params["norm_beta"][0]
    return x, attns


if __name__ == "__main__":
    B, L, D = 2, 16, 32           # batch, seq, hidden_size
    nhead, dim_ff, layer_num = 4, 64, 2
    activation = "relu"

    key = jax.random.PRNGKey(0)
    kx, kp = jax.random.split(key)
    x = jax.random.normal(kx, (B, L, D), jnp.float32)
    params = init_params(kp, D, dim_ff, layer_num)

    ref_out, ref_attns = _ref_forward(x, params, nhead, MOVING_AVG, activation)

    # 1) high-precision path (f32 MXU operands): tight correctness check
    out32, attns32 = autoformer_encoder_forward(
        x, params, nhead=nhead, moving_avg=MOVING_AVG, activation=activation,
        mxu_dtype=jnp.float32)
    out32 = jax.block_until_ready(out32)
    np.testing.assert_allclose(np.asarray(out32), np.asarray(ref_out), rtol=2e-2, atol=2e-2)
    for a, ra in zip(attns32, ref_attns):
        np.testing.assert_allclose(np.asarray(a), np.asarray(ra), rtol=2e-2, atol=2e-2)

    # 2) default fast path (bf16 MXU operands, f32 accumulation): sanity check
    out, attns = autoformer_encoder_forward(
        x, params, nhead=nhead, moving_avg=MOVING_AVG, activation=activation)
    out = jax.block_until_ready(out)
    attns = [jax.block_until_ready(a) for a in attns]
    np.testing.assert_allclose(np.asarray(out), np.asarray(ref_out), rtol=8e-2, atol=8e-2)
    for a, ra in zip(attns, ref_attns):
        np.testing.assert_allclose(np.asarray(a), np.asarray(ra), rtol=8e-2, atol=8e-2)

    print("KERNEL_OK")
</pallas_src>

<mosaic_0001>
module attributes {stable_mosaic.version = 11 : i64} {
  func.func @_encoder_layer_kernel(%arg0: i32, %arg1: memref<2x16x32xf32, #tpu.memory_space<vmem>>, %arg2: memref<16x16xf32, #tpu.memory_space<vmem>>, %arg3: memref<32x32xf32, #tpu.memory_space<vmem>>, %arg4: memref<1x32xf32, #tpu.memory_space<vmem>>, %arg5: memref<32x32xf32, #tpu.memory_space<vmem>>, %arg6: memref<1x32xf32, #tpu.memory_space<vmem>>, %arg7: memref<32x32xf32, #tpu.memory_space<vmem>>, %arg8: memref<1x32xf32, #tpu.memory_space<vmem>>, %arg9: memref<32x32xf32, #tpu.memory_space<vmem>>, %arg10: memref<1x32xf32, #tpu.memory_space<vmem>>, %arg11: memref<32x64xf32, #tpu.memory_space<vmem>>, %arg12: memref<64x32xf32, #tpu.memory_space<vmem>>, %arg13: memref<1x32xf32, #tpu.memory_space<vmem>>, %arg14: memref<1x32xf32, #tpu.memory_space<vmem>>, %arg15: memref<2x16x32xf32, #tpu.memory_space<vmem>>, %arg16: memref<2x4x16x16xf32, #tpu.memory_space<vmem>>, %arg17: memref<32x32xf32, #tpu.memory_space<vmem>>) attributes {dimension_semantics = [#tpu.dimension_semantics<parallel>], iteration_bounds = array<i64: 1>, scalar_prefetch = 0 : i64, scratch_operands = 1 : i64, tpu.core_type = #tpu.core_type<tc>, window_params = [{transform_indices = @transform_0, window_bounds = array<i64: 2, 16, 32>}, {pipeline_mode = #tpu.pipeline_mode<synchronous>, transform_indices = @transform_1, window_bounds = array<i64: 16, 16>}, {pipeline_mode = #tpu.pipeline_mode<synchronous>, transform_indices = @transform_2, window_bounds = array<i64: 32, 32>}, {pipeline_mode = #tpu.pipeline_mode<synchronous>, transform_indices = @transform_3, window_bounds = array<i64: 1, 32>}, {pipeline_mode = #tpu.pipeline_mode<synchronous>, transform_indices = @transform_4, window_bounds = array<i64: 32, 32>}, {pipeline_mode = #tpu.pipeline_mode<synchronous>, transform_indices = @transform_5, window_bounds = array<i64: 1, 32>}, {pipeline_mode = #tpu.pipeline_mode<synchronous>, transform_indices = @transform_6, window_bounds = array<i64: 32, 32>}, {pipeline_mode = #tpu.pipeline_mode<synchronous>, transform_indices = @transform_7, window_bounds = array<i64: 1, 32>}, {pipeline_mode = #tpu.pipeline_mode<synchronous>, transform_indices = @transform_8, window_bounds = array<i64: 32, 32>}, {pipeline_mode = #tpu.pipeline_mode<synchronous>, transform_indices = @transform_9, window_bounds = array<i64: 1, 32>}, {pipeline_mode = #tpu.pipeline_mode<synchronous>, transform_indices = @transform_10, window_bounds = array<i64: 32, 64>}, {pipeline_mode = #tpu.pipeline_mode<synchronous>, transform_indices = @transform_11, window_bounds = array<i64: 64, 32>}, {pipeline_mode = #tpu.pipeline_mode<synchronous>, transform_indices = @transform_12, window_bounds = array<i64: 1, 32>}, {pipeline_mode = #tpu.pipeline_mode<synchronous>, transform_indices = @transform_13, window_bounds = array<i64: 1, 32>}, {transform_indices = @transform_14, window_bounds = array<i64: 2, 16, 32>}, {transform_indices = @transform_15, window_bounds = array<i64: 2, 4, 16, 16>}]} {
    %c0 = arith.constant 0 : index
    %c0_0 = arith.constant 0 : index
    %c0_1 = arith.constant 0 : index
    %0 = vector.load %arg1[%c0, %c0_0, %c0_1] : memref<2x16x32xf32, #tpu.memory_space<vmem>>, vector<2x16x32xf32>
    %1 = vector.shape_cast %0 : vector<2x16x32xf32> to vector<32x32xf32>
    %c0_2 = arith.constant 0 : index
    %c0_3 = arith.constant 0 : index
    %2 = vector.load %arg3[%c0_2, %c0_3] : memref<32x32xf32, #tpu.memory_space<vmem>>, vector<32x32xf32>
    %cst = arith.constant dense<0.000000e+00> : vector<32x32xf32>
    %3 = tpu.matmul %1, %2, %cst {dimension_numbers = #tpu.dot_dimension_numbers<[1], [0], [0], [1], [0, 0, 1, 1], [], []>} : vector<32x32xf32>, vector<32x32xf32>, vector<32x32xf32> -> vector<32x32xf32>
    %c0_4 = arith.constant 0 : index
    %c0_5 = arith.constant 0 : index
    %4 = vector.load %arg4[%c0_4, %c0_5] : memref<1x32xf32, #tpu.memory_space<vmem>>, vector<1x32xf32>
    %5 = vector.broadcast %4 : vector<1x32xf32> to vector<32x32xf32>
    %6 = arith.addf %3, %5 : vector<32x32xf32>
    %c0_6 = arith.constant 0 : index
    %c0_7 = arith.constant 0 : index
    %7 = vector.load %arg5[%c0_6, %c0_7] : memref<32x32xf32, #tpu.memory_space<vmem>>, vector<32x32xf32>
    %cst_8 = arith.constant dense<0.000000e+00> : vector<32x32xf32>
    %8 = tpu.matmul %1, %7, %cst_8 {dimension_numbers = #tpu.dot_dimension_numbers<[1], [0], [0], [1], [0, 0, 1, 1], [], []>} : vector<32x32xf32>, vector<32x32xf32>, vector<32x32xf32> -> vector<32x32xf32>
    %c0_9 = arith.constant 0 : index
    %c0_10 = arith.constant 0 : index
    %9 = vector.load %arg6[%c0_9, %c0_10] : memref<1x32xf32, #tpu.memory_space<vmem>>, vector<1x32xf32>
    %10 = vector.broadcast %9 : vector<1x32xf32> to vector<32x32xf32>
    %11 = arith.addf %8, %10 : vector<32x32xf32>
    %c0_11 = arith.constant 0 : index
    %c0_12 = arith.constant 0 : index
    %12 = vector.load %arg7[%c0_11, %c0_12] : memref<32x32xf32, #tpu.memory_space<vmem>>, vector<32x32xf32>
    %cst_13 = arith.constant dense<0.000000e+00> : vector<32x32xf32>
    %13 = tpu.matmul %1, %12, %cst_13 {dimension_numbers = #tpu.dot_dimension_numbers<[1], [0], [0], [1], [0, 0, 1, 1], [], []>} : vector<32x32xf32>, vector<32x32xf32>, vector<32x32xf32> -> vector<32x32xf32>
    %c0_14 = arith.constant 0 : index
    %c0_15 = arith.constant 0 : index
    %14 = vector.load %arg8[%c0_14, %c0_15] : memref<1x32xf32, #tpu.memory_space<vmem>>, vector<1x32xf32>
    %15 = vector.broadcast %14 : vector<1x32xf32> to vector<32x32xf32>
    %16 = arith.addf %13, %15 : vector<32x32xf32>
    %cst_16 = arith.constant 0.353553385 : f32
    %17 = vector.broadcast %cst_16 : f32 to vector<32x32xf32>
    %18 = arith.mulf %6, %17 : vector<32x32xf32>
    %19 = vector.extract_strided_slice %18 {offsets = [0, 0], sizes = [32, 8], strides = [1, 1]} : vector<32x32xf32> to vector<32x8xf32>
    %20 = vector.shape_cast %19 : vector<32x8xf32> to vector<2x16x8xf32>
    %21 = vector.extract_strided_slice %11 {offsets = [0, 0], sizes = [32, 8], strides = [1, 1]} : vector<32x32xf32> to vector<32x8xf32>
    %22 = vector.shape_cast %21 : vector<32x8xf32> to vector<2x16x8xf32>
    %23 = vector.extract_strided_slice %16 {offsets = [0, 0], sizes = [32, 8], strides = [1, 1]} : vector<32x32xf32> to vector<32x8xf32>
    %24 = vector.shape_cast %23 : vector<32x8xf32> to vector<2x16x8xf32>
    %cst_17 = arith.constant dense<0.000000e+00> : vector<2x16x16xf32>
    %25 = tpu.matmul %20, %22, %cst_17 {dimension_numbers = #tpu.dot_dimension_numbers<[2], [2], [1], [1], [0, 0, 0, 1, 1, 1], [0], [0]>} : vector<2x16x8xf32>, vector<2x16x8xf32>, vector<2x16x16xf32> -> vector<2x16x16xf32>
    %cst_18 = arith.constant dense<0xFF800000> : vector<2x16xf32>
    %26 = vector.multi_reduction <maximumf>, %25, %cst_18 [2] : vector<2x16x16xf32> to vector<2x16xf32>
    %27 = vector.shape_cast %26 : vector<2x16xf32> to vector<2x16x1xf32>
    %28 = vector.broadcast %27 : vector<2x16x1xf32> to vector<2x16x16xf32>
    %29 = arith.subf %25, %28 : vector<2x16x16xf32>
    %30 = math.exp %29 : vector<2x16x16xf32>
    %cst_19 = arith.constant dense<0.000000e+00> : vector<2x16xf32>
    %31 = vector.multi_reduction <add>, %30, %cst_19 [2] : vector<2x16x16xf32> to vector<2x16xf32>
    %32 = vector.shape_cast %31 : vector<2x16xf32> to vector<2x16x1xf32>
    %33 = tpu.reciprocal %32 {approx = true} : vector<2x16x1xf32> -> vector<2x16x1xf32>
    %34 = vector.broadcast %33 : vector<2x16x1xf32> to vector<2x16x16xf32>
    %35 = arith.mulf %30, %34 : vector<2x16x16xf32>
    %c0_20 = arith.constant 0 : index
    %c0_21 = arith.constant 0 : index
    %c0_22 = arith.constant 0 : index
    %c0_23 = arith.constant 0 : index
    %36 = vector.load %arg16[%c0_20, %c0_21, %c0_22, %c0_23] : memref<2x4x16x16xf32, #tpu.memory_space<vmem>>, vector<2x1x16x16xf32>
    %37 = vector.shape_cast %36 : vector<2x1x16x16xf32> to vector<2x16x16xf32>
    %38 = vector.shape_cast %35 : vector<2x16x16xf32> to vector<2x1x16x16xf32>
    tpu.vector_store %arg16[%c0_20, %c0_21, %c0_22, %c0_23], %38 {strides = array<i32>} : memref<2x4x16x16xf32, #tpu.memory_space<vmem>>, vector<2x1x16x16xf32>,
    %cst_24 = arith.constant dense<0.000000e+00> : vector<2x16x8xf32>
    %39 = tpu.matmul %35, %24, %cst_24 {dimension_numbers = #tpu.dot_dimension_numbers<[2], [1], [1], [2], [0, 0, 0, 1, 1, 2], [0], [0]>} : vector<2x16x16xf32>, vector<2x16x8xf32>, vector<2x16x8xf32> -> vector<2x16x8xf32>
    %40 = vector.shape_cast %39 : vector<2x16x8xf32> to vector<32x8xf32>
    %c0_25 = arith.constant 0 : index
    %c0_26 = arith.constant 0 : index
    %41 = vector.load %arg17[%c0_25, %c0_26] : memref<32x32xf32, #tpu.memory_space<vmem>>, vector<32x8xf32>
    tpu.vector_store %arg17[%c0_25, %c0_26], %40 {strides = array<i32>} : memref<32x32xf32, #tpu.memory_space<vmem>>, vector<32x8xf32>,
    %42 = vector.extract_strided_slice %18 {offsets = [0, 8], sizes = [32, 8], strides = [1, 1]} : vector<32x32xf32> to vector<32x8xf32>
    %43 = vector.shape_cast %42 : vector<32x8xf32> to vector<2x16x8xf32>
    %44 = vector.extract_strided_slice %11 {offsets = [0, 8], sizes = [32, 8], strides = [1, 1]} : vector<32x32xf32> to vector<32x8xf32>
    %45 = vector.shape_cast %44 : vector<32x8xf32> to vector<2x16x8xf32>
    %46 = vector.extract_strided_slice %16 {offsets = [0, 8], sizes = [32, 8], strides = [1, 1]} : vector<32x32xf32> to vector<32x8xf32>
    %47 = vector.shape_cast %46 : vector<32x8xf32> to vector<2x16x8xf32>
    %cst_27 = arith.constant dense<0.000000e+00> : vector<2x16x16xf32>
    %48 = tpu.matmul %43, %45, %cst_27 {dimension_numbers = #tpu.dot_dimension_numbers<[2], [2], [1], [1], [0, 0, 0, 1, 1, 1], [0], [0]>} : vector<2x16x8xf32>, vector<2x16x8xf32>, vector<2x16x16xf32> -> vector<2x16x16xf32>
    %cst_28 = arith.constant dense<0xFF800000> : vector<2x16xf32>
    %49 = vector.multi_reduction <maximumf>, %48, %cst_28 [2] : vector<2x16x16xf32> to vector<2x16xf32>
    %50 = vector.shape_cast %49 : vector<2x16xf32> to vector<2x16x1xf32>
    %51 = vector.broadcast %50 : vector<2x16x1xf32> to vector<2x16x16xf32>
    %52 = arith.subf %48, %51 : vector<2x16x16xf32>
    %53 = math.exp %52 : vector<2x16x16xf32>
    %cst_29 = arith.constant dense<0.000000e+00> : vector<2x16xf32>
    %54 = vector.multi_reduction <add>, %53, %cst_29 [2] : vector<2x16x16xf32> to vector<2x16xf32>
    %55 = vector.shape_cast %54 : vector<2x16xf32> to vector<2x16x1xf32>
    %56 = tpu.reciprocal %55 {approx = true} : vector<2x16x1xf32> -> vector<2x16x1xf32>
    %57 = vector.broadcast %56 : vector<2x16x1xf32> to vector<2x16x16xf32>
    %58 = arith.mulf %53, %57 : vector<2x16x16xf32>
    %c0_30 = arith.constant 0 : index
    %c1 = arith.constant 1 : index
    %c0_31 = arith.constant 0 : index
    %c0_32 = arith.constant 0 : index
    %59 = vector.load %arg16[%c0_30, %c1, %c0_31, %c0_32] : memref<2x4x16x16xf32, #tpu.memory_space<vmem>>, vector<2x1x16x16xf32>
    %60 = vector.shape_cast %59 : vector<2x1x16x16xf32> to vector<2x16x16xf32>
    %61 = vector.shape_cast %58 : vector<2x16x16xf32> to vector<2x1x16x16xf32>
    tpu.vector_store %arg16[%c0_30, %c1, %c0_31, %c0_32], %61 {strides = array<i32>} : memref<2x4x16x16xf32, #tpu.memory_space<vmem>>, vector<2x1x16x16xf32>,
    %cst_33 = arith.constant dense<0.000000e+00> : vector<2x16x8xf32>
    %62 = tpu.matmul %58, %47, %cst_33 {dimension_numbers = #tpu.dot_dimension_numbers<[2], [1], [1], [2], [0, 0, 0, 1, 1, 2], [0], [0]>} : vector<2x16x16xf32>, vector<2x16x8xf32>, vector<2x16x8xf32> -> vector<2x16x8xf32>
    %63 = vector.shape_cast %62 : vector<2x16x8xf32> to vector<32x8xf32>
    %c0_34 = arith.constant 0 : index
    %c8 = arith.constant 8 : index
    %64 = vector.load %arg17[%c0_34, %c8] : memref<32x32xf32, #tpu.memory_space<vmem>>, vector<32x8xf32>
    tpu.vector_store %arg17[%c0_34, %c8], %63 {strides = array<i32>} : memref<32x32xf32, #tpu.memory_space<vmem>>, vector<32x8xf32>,
    %65 = vector.extract_strided_slice %18 {offsets = [0, 16], sizes = [32, 8], strides = [1, 1]} : vector<32x32xf32> to vector<32x8xf32>
    %66 = vector.shape_cast %65 : vector<32x8xf32> to vector<2x16x8xf32>
    %67 = vector.extract_strided_slice %11 {offsets = [0, 16], sizes = [32, 8], strides = [1, 1]} : vector<32x32xf32> to vector<32x8xf32>
    %68 = vector.shape_cast %67 : vector<32x8xf32> to vector<2x16x8xf32>
    %69 = vector.extract_strided_slice %16 {offsets = [0, 16], sizes = [32, 8], strides = [1, 1]} : vector<32x32xf32> to vector<32x8xf32>
    %70 = vector.shape_cast %69 : vector<32x8xf32> to vector<2x16x8xf32>
    %cst_35 = arith.constant dense<0.000000e+00> : vector<2x16x16xf32>
    %71 = tpu.matmul %66, %68, %cst_35 {dimension_numbers = #tpu.dot_dimension_numbers<[2], [2], [1], [1], [0, 0, 0, 1, 1, 1], [0], [0]>} : vector<2x16x8xf32>, vector<2x16x8xf32>, vector<2x16x16xf32> -> vector<2x16x16xf32>
    %cst_36 = arith.constant dense<0xFF800000> : vector<2x16xf32>
    %72 = vector.multi_reduction <maximumf>, %71, %cst_36 [2] : vector<2x16x16xf32> to vector<2x16xf32>
    %73 = vector.shape_cast %72 : vector<2x16xf32> to vector<2x16x1xf32>
    %74 = vector.broadcast %73 : vector<2x16x1xf32> to vector<2x16x16xf32>
    %75 = arith.subf %71, %74 : vector<2x16x16xf32>
    %76 = math.exp %75 : vector<2x16x16xf32>
    %cst_37 = arith.constant dense<0.000000e+00> : vector<2x16xf32>
    %77 = vector.multi_reduction <add>, %76, %cst_37 [2] : vector<2x16x16xf32> to vector<2x16xf32>
    %78 = vector.shape_cast %77 : vector<2x16xf32> to vector<2x16x1xf32>
    %79 = tpu.reciprocal %78 {approx = true} : vector<2x16x1xf32> -> vector<2x16x1xf32>
    %80 = vector.broadcast %79 : vector<2x16x1xf32> to vector<2x16x16xf32>
    %81 = arith.mulf %76, %80 : vector<2x16x16xf32>
    %c0_38 = arith.constant 0 : index
    %c2 = arith.constant 2 : index
    %c0_39 = arith.constant 0 : index
    %c0_40 = arith.constant 0 : index
    %82 = vector.load %arg16[%c0_38, %c2, %c0_39, %c0_40] : memref<2x4x16x16xf32, #tpu.memory_space<vmem>>, vector<2x1x16x16xf32>
    %83 = vector.shape_cast %82 : vector<2x1x16x16xf32> to vector<2x16x16xf32>
    %84 = vector.shape_cast %81 : vector<2x16x16xf32> to vector<2x1x16x16xf32>
    tpu.vector_store %arg16[%c0_38, %c2, %c0_39, %c0_40], %84 {strides = array<i32>} : memref<2x4x16x16xf32, #tpu.memory_space<vmem>>, vector<2x1x16x16xf32>,
    %cst_41 = arith.constant dense<0.000000e+00> : vector<2x16x8xf32>
    %85 = tpu.matmul %81, %70, %cst_41 {dimension_numbers = #tpu.dot_dimension_numbers<[2], [1], [1], [2], [0, 0, 0, 1, 1, 2], [0], [0]>} : vector<2x16x16xf32>, vector<2x16x8xf32>, vector<2x16x8xf32> -> vector<2x16x8xf32>
    %86 = vector.shape_cast %85 : vector<2x16x8xf32> to vector<32x8xf32>
    %c0_42 = arith.constant 0 : index
    %c16 = arith.constant 16 : index
    %87 = vector.load %arg17[%c0_42, %c16] : memref<32x32xf32, #tpu.memory_space<vmem>>, vector<32x8xf32>
    tpu.vector_store %arg17[%c0_42, %c16], %86 {strides = array<i32>} : memref<32x32xf32, #tpu.memory_space<vmem>>, vector<32x8xf32>,
    %88 = vector.extract_strided_slice %18 {offsets = [0, 24], sizes = [32, 8], strides = [1, 1]} : vector<32x32xf32> to vector<32x8xf32>
    %89 = vector.shape_cast %88 : vector<32x8xf32> to vector<2x16x8xf32>
    %90 = vector.extract_strided_slice %11 {offsets = [0, 24], sizes = [32, 8], strides = [1, 1]} : vector<32x32xf32> to vector<32x8xf32>
    %91 = vector.shape_cast %90 : vector<32x8xf32> to vector<2x16x8xf32>
    %92 = vector.extract_strided_slice %16 {offsets = [0, 24], sizes = [32, 8], strides = [1, 1]} : vector<32x32xf32> to vector<32x8xf32>
    %93 = vector.shape_cast %92 : vector<32x8xf32> to vector<2x16x8xf32>
    %cst_43 = arith.constant dense<0.000000e+00> : vector<2x16x16xf32>
    %94 = tpu.matmul %89, %91, %cst_43 {dimension_numbers = #tpu.dot_dimension_numbers<[2], [2], [1], [1], [0, 0, 0, 1, 1, 1], [0], [0]>} : vector<2x16x8xf32>, vector<2x16x8xf32>, vector<2x16x16xf32> -> vector<2x16x16xf32>
    %cst_44 = arith.constant dense<0xFF800000> : vector<2x16xf32>
    %95 = vector.multi_reduction <maximumf>, %94, %cst_44 [2] : vector<2x16x16xf32> to vector<2x16xf32>
    %96 = vector.shape_cast %95 : vector<2x16xf32> to vector<2x16x1xf32>
    %97 = vector.broadcast %96 : vector<2x16x1xf32> to vector<2x16x16xf32>
    %98 = arith.subf %94, %97 : vector<2x16x16xf32>
    %99 = math.exp %98 : vector<2x16x16xf32>
    %cst_45 = arith.constant dense<0.000000e+00> : vector<2x16xf32>
    %100 = vector.multi_reduction <add>, %99, %cst_45 [2] : vector<2x16x16xf32> to vector<2x16xf32>
    %101 = vector.shape_cast %100 : vector<2x16xf32> to vector<2x16x1xf32>
    %102 = tpu.reciprocal %101 {approx = true} : vector<2x16x1xf32> -> vector<2x16x1xf32>
    %103 = vector.broadcast %102 : vector<2x16x1xf32> to vector<2x16x16xf32>
    %104 = arith.mulf %99, %103 : vector<2x16x16xf32>
    %c0_46 = arith.constant 0 : index
    %c3 = arith.constant 3 : index
    %c0_47 = arith.constant 0 : index
    %c0_48 = arith.constant 0 : index
    %105 = vector.load %arg16[%c0_46, %c3, %c0_47, %c0_48] : memref<2x4x16x16xf32, #tpu.memory_space<vmem>>, vector<2x1x16x16xf32>
    %106 = vector.shape_cast %105 : vector<2x1x16x16xf32> to vector<2x16x16xf32>
    %107 = vector.shape_cast %104 : vector<2x16x16xf32> to vector<2x1x16x16xf32>
    tpu.vector_store %arg16[%c0_46, %c3, %c0_47, %c0_48], %107 {strides = array<i32>} : memref<2x4x16x16xf32, #tpu.memory_space<vmem>>, vector<2x1x16x16xf32>,
    %cst_49 = arith.constant dense<0.000000e+00> : vector<2x16x8xf32>
    %108 = tpu.matmul %104, %93, %cst_49 {dimension_numbers = #tpu.dot_dimension_numbers<[2], [1], [1], [2], [0, 0, 0, 1, 1, 2], [0], [0]>} : vector<2x16x16xf32>, vector<2x16x8xf32>, vector<2x16x8xf32> -> vector<2x16x8xf32>
    %109 = vector.shape_cast %108 : vector<2x16x8xf32> to vector<32x8xf32>
    %c0_50 = arith.constant 0 : index
    %c24 = arith.constant 24 : index
    %110 = vector.load %arg17[%c0_50, %c24] : memref<32x32xf32, #tpu.memory_space<vmem>>, vector<32x8xf32>
    tpu.vector_store %arg17[%c0_50, %c24], %109 {strides = array<i32>} : memref<32x32xf32, #tpu.memory_space<vmem>>, vector<32x8xf32>,
    %c0_51 = arith.constant 0 : index
    %c0_52 = arith.constant 0 : index
    %111 = vector.load %arg17[%c0_51, %c0_52] : memref<32x32xf32, #tpu.memory_space<vmem>>, vector<32x32xf32>
    %c0_53 = arith.constant 0 : index
    %c0_54 = arith.constant 0 : index
    %112 = vector.load %arg9[%c0_53, %c0_54] : memref<32x32xf32, #tpu.memory_space<vmem>>, vector<32x32xf32>
    %cst_55 = arith.constant dense<0.000000e+00> : vector<32x32xf32>
    %113 = tpu.matmul %111, %112, %cst_55 {dimension_numbers = #tpu.dot_dimension_numbers<[1], [0], [0], [1], [0, 0, 1, 1], [], []>} : vector<32x32xf32>, vector<32x32xf32>, vector<32x32xf32> -> vector<32x32xf32>
    %c0_56 = arith.constant 0 : index
    %c0_57 = arith.constant 0 : index
    %114 = vector.load %arg10[%c0_56, %c0_57] : memref<1x32xf32, #tpu.memory_space<vmem>>, vector<1x32xf32>
    %115 = vector.broadcast %114 : vector<1x32xf32> to vector<32x32xf32>
    %116 = arith.addf %113, %115 : vector<32x32xf32>
    %c0_58 = arith.constant 0 : index
    %c0_59 = arith.constant 0 : index
    %117 = vector.load %arg2[%c0_58, %c0_59] : memref<16x16xf32, #tpu.memory_space<vmem>>, vector<16x16xf32>
    %118 = vector.shape_cast %117 : vector<16x16xf32> to vector<1x16x16xf32>
    %119 = vector.shape_cast %118 : vector<1x16x16xf32> to vector<1x16x16xf32>
    %120 = vector.broadcast %119 : vector<1x16x16xf32> to vector<2x16x16xf32>
    %121 = arith.addf %1, %116 : vector<32x32xf32>
    %122 = vector.shape_cast %121 : vector<32x32xf32> to vector<2x16x32xf32>
    %cst_60 = arith.constant dense<0.000000e+00> : vector<2x16x32xf32>
    %123 = tpu.matmul %120, %122, %cst_60 {dimension_numbers = #tpu.dot_dimension_numbers<[2], [1], [1], [2], [0, 0, 0, 1, 1, 2], [0], [0]>} : vector<2x16x16xf32>, vector<2x16x32xf32>, vector<2x16x32xf32> -> vector<2x16x32xf32>
    %124 = vector.shape_cast %123 : vector<2x16x32xf32> to vector<32x32xf32>
    %c0_61 = arith.constant 0 : index
    %c0_62 = arith.constant 0 : index
    %125 = vector.load %arg11[%c0_61, %c0_62] : memref<32x64xf32, #tpu.memory_space<vmem>>, vector<32x64xf32>
    %cst_63 = arith.constant dense<0.000000e+00> : vector<32x64xf32>
    %126 = tpu.matmul %124, %125, %cst_63 {dimension_numbers = #tpu.dot_dimension_numbers<[1], [0], [0], [1], [0, 0, 1, 1], [], []>} : vector<32x32xf32>, vector<32x64xf32>, vector<32x64xf32> -> vector<32x64xf32>
    %cst_64 = arith.constant 0.000000e+00 : f32
    %127 = vector.broadcast %cst_64 : f32 to vector<32x64xf32>
    %128 = arith.maximumf %126, %127 : vector<32x64xf32>
    %c0_65 = arith.constant 0 : index
    %c0_66 = arith.constant 0 : index
    %129 = vector.load %arg12[%c0_65, %c0_66] : memref<64x32xf32, #tpu.memory_space<vmem>>, vector<64x32xf32>
    %cst_67 = arith.constant dense<0.000000e+00> : vector<32x32xf32>
    %130 = tpu.matmul %128, %129, %cst_67 {dimension_numbers = #tpu.dot_dimension_numbers<[1], [0], [0], [1], [0, 0, 1, 1], [], []>} : vector<32x64xf32>, vector<64x32xf32>, vector<32x32xf32> -> vector<32x32xf32>
    %131 = arith.addf %124, %130 : vector<32x32xf32>
    %132 = vector.shape_cast %131 : vector<32x32xf32> to vector<2x16x32xf32>
    %cst_68 = arith.constant dense<0.000000e+00> : vector<2x16x32xf32>
    %133 = tpu.matmul %120, %132, %cst_68 {dimension_numbers = #tpu.dot_dimension_numbers<[2], [1], [1], [2], [0, 0, 0, 1, 1, 2], [0], [0]>} : vector<2x16x16xf32>, vector<2x16x32xf32>, vector<2x16x32xf32> -> vector<2x16x32xf32>
    %c0_69 = arith.constant 0 : index
    %c0_70 = arith.constant 0 : index
    %c0_71 = arith.constant 0 : index
    %134 = vector.load %arg15[%c0_69, %c0_70, %c0_71] : memref<2x16x32xf32, #tpu.memory_space<vmem>>, vector<2x16x32xf32>
    tpu.vector_store %arg15[%c0_69, %c0_70, %c0_71], %133 {strides = array<i32>} : memref<2x16x32xf32, #tpu.memory_space<vmem>>, vector<2x16x32xf32>,
    return
  }
  func.func @transform_0(%arg0: i32) -> (i32, i32, i32) {
    %c0_i32 = arith.constant 0 : i32
    %c0_i32_0 = arith.constant 0 : i32
    %c0_i32_1 = arith.constant 0 : i32
    return %arg0, %c0_i32, %c0_i32_0 : i32, i32, i32
  }
  func.func @transform_1(%arg0: i32) -> (i32, i32) {
    %c0_i32 = arith.constant 0 : i32
    %c0_i32_0 = arith.constant 0 : i32
    %c0_i32_1 = arith.constant 0 : i32
    return %c0_i32, %c0_i32_0 : i32, i32
  }
  func.func @transform_2(%arg0: i32) -> (i32, i32) {
    %c0_i32 = arith.constant 0 : i32
    %c0_i32_0 = arith.constant 0 : i32
    %c0_i32_1 = arith.constant 0 : i32
    return %c0_i32, %c0_i32_0 : i32, i32
  }
  func.func @transform_3(%arg0: i32) -> (i32, i32) {
    %c0_i32 = arith.constant 0 : i32
    %c0_i32_0 = arith.constant 0 : i32
    %c0_i32_1 = arith.constant 0 : i32
    return %c0_i32, %c0_i32_0 : i32, i32
  }
  func.func @transform_4(%arg0: i32) -> (i32, i32) {
    %c0_i32 = arith.constant 0 : i32
    %c0_i32_0 = arith.constant 0 : i32
    %c0_i32_1 = arith.constant 0 : i32
    return %c0_i32, %c0_i32_0 : i32, i32
  }
  func.func @transform_5(%arg0: i32) -> (i32, i32) {
    %c0_i32 = arith.constant 0 : i32
    %c0_i32_0 = arith.constant 0 : i32
    %c0_i32_1 = arith.constant 0 : i32
    return %c0_i32, %c0_i32_0 : i32, i32
  }
  func.func @transform_6(%arg0: i32) -> (i32, i32) {
    %c0_i32 = arith.constant 0 : i32
    %c0_i32_0 = arith.constant 0 : i32
    %c0_i32_1 = arith.constant 0 : i32
    return %c0_i32, %c0_i32_0 : i32, i32
  }
  func.func @transform_7(%arg0: i32) -> (i32, i32) {
    %c0_i32 = arith.constant 0 : i32
    %c0_i32_0 = arith.constant 0 : i32
    %c0_i32_1 = arith.constant 0 : i32
    return %c0_i32, %c0_i32_0 : i32, i32
  }
  func.func @transform_8(%arg0: i32) -> (i32, i32) {
    %c0_i32 = arith.constant 0 : i32
    %c0_i32_0 = arith.constant 0 : i32
    %c0_i32_1 = arith.constant 0 : i32
    return %c0_i32, %c0_i32_0 : i32, i32
  }
  func.func @transform_9(%arg0: i32) -> (i32, i32) {
    %c0_i32 = arith.constant 0 : i32
    %c0_i32_0 = arith.constant 0 : i32
    %c0_i32_1 = arith.constant 0 : i32
    return %c0_i32, %c0_i32_0 : i32, i32
  }
  func.func @transform_10(%arg0: i32) -> (i32, i32) {
    %c0_i32 = arith.constant 0 : i32
    %c0_i32_0 = arith.constant 0 : i32
    %c0_i32_1 = arith.constant 0 : i32
    return %c0_i32, %c0_i32_0 : i32, i32
  }
  func.func @transform_11(%arg0: i32) -> (i32, i32) {
    %c0_i32 = arith.constant 0 : i32
    %c0_i32_0 = arith.constant 0 : i32
    %c0_i32_1 = arith.constant 0 : i32
    return %c0_i32, %c0_i32_0 : i32, i32
  }
  func.func @transform_12(%arg0: i32) -> (i32, i32) {
    %c0_i32 = arith.constant 0 : i32
    %c0_i32_0 = arith.constant 0 : i32
    %c0_i32_1 = arith.constant 0 : i32
    return %c0_i32, %c0_i32_0 : i32, i32
  }
  func.func @transform_13(%arg0: i32) -> (i32, i32) {
    %c0_i32 = arith.constant 0 : i32
    %c0_i32_0 = arith.constant 0 : i32
    %c0_i32_1 = arith.constant 0 : i32
    return %c0_i32, %c0_i32_0 : i32, i32
  }
  func.func @transform_14(%arg0: i32) -> (i32, i32, i32) {
    %c0_i32 = arith.constant 0 : i32
    %c0_i32_0 = arith.constant 0 : i32
    %c0_i32_1 = arith.constant 0 : i32
    return %arg0, %c0_i32, %c0_i32_0 : i32, i32, i32
  }
  func.func @transform_15(%arg0: i32) -> (i32, i32, i32, i32) {
    %c0_i32 = arith.constant 0 : i32
    %c0_i32_0 = arith.constant 0 : i32
    %c0_i32_1 = arith.constant 0 : i32
    %c0_i32_2 = arith.constant 0 : i32
    return %arg0, %c0_i32, %c0_i32_0, %c0_i32_1 : i32, i32, i32, i32
  }
}

</mosaic_0001>

<llo_original>
// kernel: tpu_custom_call.1
$region0: #{tpu_custom_call.1}
  #allocation0 [shape = 'u32[]', space=smem, size = 0x4, offset = 0x4, fixed_abs, tag = 'smem constant byte address 0x4 - core index']
  #allocation1 [shape = 'u32[144,128]{1,0:T(1,128)}', space=vmem, size = 0x12000, scoped, tag = 'internal scratch']
  #allocation2 [shape = 'f32[32,32]{1,0:T(8,128)}', space=vmem, size = 0x4000, scoped, tag = 'scratch operand']
  %s0 = inlined_call_operand.vmem [shape: f32[2,16,32], index: 0, kind: input, shape index: {}]
  %s1 = inlined_call_operand.hbm [shape: f32[16,16], index: 1, kind: input, shape index: {}]
  %s2 = inlined_call_operand.vmem [shape: f32[32,32], index: 2, kind: input, shape index: {}]
  %s3 = inlined_call_operand.vmem [shape: f32[1,32], index: 3, kind: input, shape index: {}]
  %s4 = inlined_call_operand.vmem [shape: f32[32,32], index: 4, kind: input, shape index: {}]
  %s5 = inlined_call_operand.vmem [shape: f32[1,32], index: 5, kind: input, shape index: {}]
  %s6 = inlined_call_operand.hbm [shape: f32[32,32], index: 6, kind: input, shape index: {}]
  %s7 = inlined_call_operand.vmem [shape: f32[1,32], index: 7, kind: input, shape index: {}]
  %s8 = inlined_call_operand.hbm [shape: f32[32,32], index: 8, kind: input, shape index: {}]
  %s9 = inlined_call_operand.vmem [shape: f32[1,32], index: 9, kind: input, shape index: {}]
  %s10 = inlined_call_operand.hbm [shape: f32[32,64], index: 10, kind: input, shape index: {}]
  %s11 = inlined_call_operand.vmem [shape: f32[64,32], index: 11, kind: input, shape index: {}]
  %s12 = inlined_call_operand.vmem [shape: f32[1,32], index: 12, kind: input, shape index: {}]
  %s13 = inlined_call_operand.vmem [shape: f32[1,32], index: 13, kind: input, shape index: {}]
  %s14 = inlined_call_operand.hbm [shape: f32[2,16,32], index: 14, kind: output, shape index: {0}]
  %s15 = inlined_call_operand.hbm [shape: f32[2,4,16,16], index: 15, kind: output, shape index: {1}]
  %16 = xla_tuple %s14, %s15
  %s17 = sld [smem:[#allocation0]]
  $region90: #{tpu_custom_call.1} parent=0
    _
  %s19 = ssub.s32 1, %s17
  %s20 = scalar_select 0, %s19, %s17
  $region1: #{tpu_custom_call.1} parent=0
    #allocation3 [shape = 'u8[8192]{0}', space=vmem, size = 0x2000, scoped, tag = 'input window, operand 1, single buffered']
    #allocation4 [shape = 's32[1]{0}', space=sflag, size = 0x4, scoped, tag = 'scoped memory for tpu_custom_call.1']
    #allocation5 [shape = 's32[1]{0}', space=sflag, size = 0x4, scoped, tag = 'scoped memory for tpu_custom_call.1']
    #allocation6 [shape = 'u8[16384]{0}', space=vmem, size = 0x4000, scoped, tag = 'input window, operand 6, single buffered']
    #allocation7 [shape = 's32[1]{0}', space=sflag, size = 0x4, scoped, tag = 'scoped memory for tpu_custom_call.1']
    #allocation8 [shape = 'u8[16384]{0}', space=vmem, size = 0x4000, scoped, tag = 'input window, operand 8, single buffered']
    #allocation9 [shape = 'u8[16384]{0}', space=vmem, size = 0x4000, scoped, tag = 'input window, operand 10, single buffered']
    #allocation10 [shape = 's32[1]{0}', space=sflag, size = 0x4, scoped, tag = 'scoped memory for tpu_custom_call.1']
    #allocation11 [shape = 'u8[16384]{0}', space=vmem, size = 0x4000, scoped, tag = 'output window, operand 0, single buffered']
    #allocation12 [shape = 'u8[65536]{0}', space=vmem, size = 0x10000, scoped, tag = 'output window, operand 1, single buffered']
    #allocation13 [shape = 's32[1]{0}', space=sflag, size = 0x4, scoped, tag = 'scoped memory for tpu_custom_call.1']
    %21 = vsyncpa [#allocation4], 0
    %22 = vsyncpa [#allocation7], 0
    %23 = vsyncpa [#allocation10], 0
    %24 = vsyncpa [#allocation5], 0
    %25 = vsyncpa [#allocation13], 0
    // Predicated region
    $region2: #{tpu_custom_call.1} parent=1 // pred_check
      _
    $region3: #{tpu_custom_call.1} parent=1 // pred_check_branch
      %27 = sbr.rel (0) target = $region5
    $region4: #{tpu_custom_call.1} parent=1 // pred_region
      _
    $region5: #{tpu_custom_call.1} parent=1 // pred_fallthru
      _
    // Predicated region
    $region6: #{tpu_custom_call.1} parent=1 // pred_check
      _
    $region7: #{tpu_custom_call.1} parent=1 // pred_check_branch
      %29 = sbr.rel (0) target = $region9
    $region8: #{tpu_custom_call.1} parent=1 // pred_region
      %s31 = ssub.s32 256, 256
      %32 = vsyncadd [#allocation4], %s31
      %s33 = sshll.u32 [#allocation3], 4
      %s34 = int_to_ptr.vmem [resolvable:$true] %s33
      %39 = dma.hbm_to_vmem [thread:$0]  %s1, 256, %s34, [#allocation4], 128, 128, 8
    $region9: #{tpu_custom_call.1} parent=1 // pred_fallthru
      _
    // Predicated region
    $region10: #{tpu_custom_call.1} parent=1 // pred_check
      _
    $region11: #{tpu_custom_call.1} parent=1 // pred_check_branch
      %41 = sbr.rel (0) target = $region13
    $region12: #{tpu_custom_call.1} parent=1 // pred_region
      _
    $region13: #{tpu_custom_call.1} parent=1 // pred_fallthru
      _
    // Predicated region
    $region14: #{tpu_custom_call.1} parent=1 // pred_check
      _
    $region15: #{tpu_custom_call.1} parent=1 // pred_check_branch
      %43 = sbr.rel (0) target = $region17
    $region16: #{tpu_custom_call.1} parent=1 // pred_region
      _
    $region17: #{tpu_custom_call.1} parent=1 // pred_fallthru
      _
    // Predicated region
    $region18: #{tpu_custom_call.1} parent=1 // pred_check
      _
    $region19: #{tpu_custom_call.1} parent=1 // pred_check_branch
      %45 = sbr.rel (0) target = $region21
    $region20: #{tpu_custom_call.1} parent=1 // pred_region
      _
    $region21: #{tpu_custom_call.1} parent=1 // pred_fallthru
      _
    // Predicated region
    $region22: #{tpu_custom_call.1} parent=1 // pred_check
      _
    $region23: #{tpu_custom_call.1} parent=1 // pred_check_branch
      %47 = sbr.rel (0) target = $region25
    $region24: #{tpu_custom_call.1} parent=1 // pred_region
      _
    $region25: #{tpu_custom_call.1} parent=1 // pred_fallthru
      _
    // Predicated region
    $region26: #{tpu_custom_call.1} parent=1 // pred_check
      _
    $region27: #{tpu_custom_call.1} parent=1 // pred_check_branch
      %49 = sbr.rel (0) target = $region29
    $region28: #{tpu_custom_call.1} parent=1 // pred_region
      %s51 = ssub.s32 512, 512
      %52 = vsyncadd [#allocation7], %s51
      %s53 = sshll.u32 [#allocation6], 4
      %s54 = int_to_ptr.vmem [resolvable:$true] %s53
      %59 = dma.hbm_to_vmem [thread:$0]  %s6, 512, %s54, [#allocation7], 128, 128, 8
    $region29: #{tpu_custom_call.1} parent=1 // pred_fallthru
      _
    // Predicated region
    $region30: #{tpu_custom_call.1} parent=1 // pred_check
      _
    $region31: #{tpu_custom_call.1} parent=1 // pred_check_branch
      %61 = sbr.rel (0) target = $region33
    $region32: #{tpu_custom_call.1} parent=1 // pred_region
      _
    $region33: #{tpu_custom_call.1} parent=1 // pred_fallthru
      _
    // Predicated region
    $region34: #{tpu_custom_call.1} parent=1 // pred_check
      _
    $region35: #{tpu_custom_call.1} parent=1 // pred_check_branch
      %63 = sbr.rel (0) target = $region37
    $region36: #{tpu_custom_call.1} parent=1 // pred_region
      %s65 = ssub.s32 512, 512
      %66 = vsyncadd [#allocation7], %s65
      %s67 = sshll.u32 [#allocation8], 4
      %s68 = int_to_ptr.vmem [resolvable:$true] %s67
      %73 = dma.hbm_to_vmem [thread:$0]  %s8, 512, %s68, [#allocation7], 128, 128, 8
    $region37: #{tpu_custom_call.1} parent=1 // pred_fallthru
      _
    // Predicated region
    $region38: #{tpu_custom_call.1} parent=1 // pred_check
      _
    $region39: #{tpu_custom_call.1} parent=1 // pred_check_branch
      %75 = sbr.rel (0) target = $region41
    $region40: #{tpu_custom_call.1} parent=1 // pred_region
      _
    $region41: #{tpu_custom_call.1} parent=1 // pred_fallthru
      _
    // Predicated region
    $region42: #{tpu_custom_call.1} parent=1 // pred_check
      _
    $region43: #{tpu_custom_call.1} parent=1 // pred_check_branch
      %77 = sbr.rel (0) target = $region45
    $region44: #{tpu_custom_call.1} parent=1 // pred_region
      %s79 = ssub.s32 512, 512
      %80 = vsyncadd [#allocation10], %s79
      %s81 = sshll.u32 [#allocation9], 4
      %s82 = int_to_ptr.vmem [resolvable:$true] %s81
      %87 = dma.hbm_to_vmem [thread:$0]  %s10, 512, %s82, [#allocation10], 128, 128, 8
    $region45: #{tpu_custom_call.1} parent=1 // pred_fallthru
      _
    // Predicated region
    $region46: #{tpu_custom_call.1} parent=1 // pred_check
      _
    $region47: #{tpu_custom_call.1} parent=1 // pred_check_branch
      %89 = sbr.rel (0) target = $region49
    $region48: #{tpu_custom_call.1} parent=1 // pred_region
      _
    $region49: #{tpu_custom_call.1} parent=1 // pred_fallthru
      _
    // Predicated region
    $region50: #{tpu_custom_call.1} parent=1 // pred_check
      _
    $region51: #{tpu_custom_call.1} parent=1 // pred_check_branch
      %91 = sbr.rel (0) target = $region53
    $region52: #{tpu_custom_call.1} parent=1 // pred_region
      _
    $region53: #{tpu_custom_call.1} parent=1 // pred_fallthru
      _
    // Predicated region
    $region54: #{tpu_custom_call.1} parent=1 // pred_check
      _
    $region55: #{tpu_custom_call.1} parent=1 // pred_check_branch
      %93 = sbr.rel (0) target = $region57
    $region56: #{tpu_custom_call.1} parent=1 // pred_region
      _
    $region57: #{tpu_custom_call.1} parent=1 // pred_fallthru
      _
    // Predicated region
    $region58: #{tpu_custom_call.1} parent=1 // pred_check
      _
    $region59: #{tpu_custom_call.1} parent=1 // pred_check_branch
      %95 = sbr.rel (0) target = $region61
    $region60: #{tpu_custom_call.1} parent=1 // pred_region
      %96 = dma.done [#allocation4], 256
    $region61: #{tpu_custom_call.1} parent=1 // pred_fallthru
      _
    // Predicated region
    $region62: #{tpu_custom_call.1} parent=1 // pred_check
      _
    $region63: #{tpu_custom_call.1} parent=1 // pred_check_branch
      %98 = sbr.rel (0) target = $region65
    $region64: #{tpu_custom_call.1} parent=1 // pred_region
      %99 = dma.done [#allocation7], 512
    $region65: #{tpu_custom_call.1} parent=1 // pred_fallthru
      _
    // Predicated region
    $region66: #{tpu_custom_call.1} parent=1 // pred_check
      _
    $region67: #{tpu_custom_call.1} parent=1 // pred_check_branch
      %101 = sbr.rel (0) target = $region69
    $region68: #{tpu_custom_call.1} parent=1 // pred_region
      %102 = dma.done [#allocation7], 512
    $region69: #{tpu_custom_call.1} parent=1 // pred_fallthru
      _
    // Predicated region
    $region70: #{tpu_custom_call.1} parent=1 // pred_check
      _
    $region71: #{tpu_custom_call.1} parent=1 // pred_check_branch
      %104 = sbr.rel (0) target = $region73
    $region72: #{tpu_custom_call.1} parent=1 // pred_region
      %105 = dma.done [#allocation10], 512
    $region73: #{tpu_custom_call.1} parent=1 // pred_fallthru
      _
    %v106 = vld [vmem:[%s0] sm:$0xff]
    %v107 = vld [vmem:[%s0 + $0x8] sm:$0xff]
    %v108 = vld [vmem:[%s0 + $0x10] sm:$0xff]
    %v109 = vld [vmem:[%s0 + $0x18] sm:$0xff]
    %v110 = vld [vmem:[%s2] sm:$0xff]
    %v111 = vld [vmem:[%s2 + $0x8] sm:$0xff]
    %v112 = vld [vmem:[%s2 + $0x10] sm:$0xff]
    %v113 = vld [vmem:[%s2 + $0x18] sm:$0xff]
    %v114 = vld [vmem:[%s3] sm:$0x1]
    %v116 = vlaneseq
    %v117 = vshrl.u32 %v116, 7
    %v118 = vsub.s32 0, %v117
    %v119 = vrot.slane %v114, %v118
    %vm121 = vcmask 261120
    %v123 = vsel %vm121, %v106, 0
    %v126 = vsel %vm121, %v107, 0
    %v129 = vsel %vm121, %v108, 0
    %v132 = vsel %vm121, %v109, 0
    %134 = vmatprep.subr.mxu0 0.0
    %135 = vmatpush1.msra.mxu0 %v110
    %136 = vmatprep.subr.mxu0 0.0
    %137 = vmatpush1.msra.mxu0 %v111
    %138 = vmatprep.subr.mxu0 0.0
    %139 = vmatpush1.msra.mxu0 %v112
    %140 = vmatprep.subr.mxu0 0.0
    %141 = vmatpush1.msra.mxu0 %v113
    %142 = vmatprep.subr.mxu0 0.0
    %143 = vmatpush1.msra.mxu0 0.0
    %144 = vmatprep.subr.mxu0 0.0
    %145 = vmatpush1.msra.mxu0 0.0
    %146 = vmatprep.subr.mxu0 0.0
    %147 = vmatpush1.msra.mxu0 0.0
    %148 = vmatprep.subr.mxu0 0.0
    %149 = vmatpush1.msra.mxu0 0.0
    %150 = vmatprep.subr.mxu0 0.0
    %151 = vmatpush1.msra.mxu0 0.0
    %152 = vmatprep.subr.mxu0 0.0
    %153 = vmatpush1.msra.mxu0 0.0
    %154 = vmatprep.subr.mxu0 0.0
    %155 = vmatpush1.msra.mxu0 0.0
    %156 = vmatprep.subr.mxu0 0.0
    %157 = vmatpush1.msra.mxu0 0.0
    %158 = vmatprep.subr.mxu0 0.0
    %159 = vmatpush1.msra.mxu0 0.0
    %160 = vmatprep.subr.mxu0 0.0
    %161 = vmatpush1.msra.mxu0 0.0
    %162 = vmatprep.subr.mxu0 0.0
    %163 = vmatpush1.msra.mxu0 0.0
    %164 = vmatprep.subr.mxu0 0.0
    %165 = vmatpush1.msra.mxu0 0.0
    %166 = vmatprep.subr.mxu0 0.0
    %167 = vmatpush1.msra.mxu0 0.0
    %168 = vmatprep.subr.mxu0 0.0
    %169 = vmatpush1.msra.mxu0 0.0
    %170 = vmatprep.subr.mxu0 0.0
    %171 = vmatpush1.msra.mxu0 0.0
    %172 = vmatprep.subr.mxu0 0.0
    %173 = vmatpush1.msra.mxu0 0.0
    %174 = vmatprep.subr.mxu0 0.0
    %175 = vmatpush1.msra.mxu0 0.0
    %176 = vmatprep.subr.mxu0 0.0
    %177 = vmatpush1.msra.mxu0 0.0
    %178 = vmatprep.subr.mxu0 0.0
    %179 = vmatpush1.msra.mxu0 0.0
    %180 = vmatprep.subr.mxu0 0.0
    %181 = vmatpush1.msra.mxu0 0.0
    %182 = vmatprep.subr.mxu0 0.0
    %183 = vmatpush1.msra.mxu0 0.0
    %184 = vmatprep.subr.mxu0 0.0
    %185 = vmatpush1.msra.mxu0 0.0
    %186 = vmatprep.subr.mxu0 0.0
    %187 = vmatpush1.msra.mxu0 0.0
    %188 = vmatprep.subr.mxu0 0.0
    %189 = vmatpush1.msra.mxu0 0.0
    %190 = vmatprep.subr.mxu0 0.0
    %191 = vmatpush1.msra.mxu0 0.0
    %192 = vmatprep.subr.mxu0 0.0
    %193 = vmatpush1.msra.mxu0 0.0
    %194 = vmatprep.subr.mxu0 0.0
    %195 = vmatpush1.msra.mxu0 0.0
    %196 = vmatprep.subr.mxu0 0.0
    %197 = vmatpush1.msra.mxu0 0.0
    %198 = vmatprep.mubr.f32.mxu0 0.0
    %199 = vmatmul.mubr.f32.gmra.mrb[0].mxu0 %v123
    %v200 = vpop.f32.mrb[0].mxu0
    %v201 = vadd.f32 %v119, %v200
    %v202 = vpop.f32.mrb[0].mxu0
    %203 = vmatprep.mubr.f32.mxu0 0.0
    %204 = vmatmul.mubr.f32.gmra.mrb[0].mxu0 %v126
    %v205 = vpop.f32.mrb[0].mxu0
    %v206 = vadd.f32 %v119, %v205
    %v207 = vpop.f32.mrb[0].mxu0
    %208 = vmatprep.mubr.f32.mxu0 0.0
    %209 = vmatmul.mubr.f32.gmra.mrb[0].mxu0 %v129
    %v210 = vpop.f32.mrb[0].mxu0
    %v211 = vadd.f32 %v119, %v210
    %v212 = vpop.f32.mrb[0].mxu0
    %213 = vmatprep.mubr.f32.mxu0 0.0
    %214 = vmatmul.mubr.f32.gmra.mrb[0].mxu0 %v132
    %v215 = vpop.f32.mrb[0].mxu0
    %v216 = vadd.f32 %v119, %v215
    %v217 = vpop.f32.mrb[0].mxu0
    %218 = vdwg.mxu0
    %v219 = vld [vmem:[%s4] sm:$0xff]
    %v220 = vld [vmem:[%s4 + $0x8] sm:$0xff]
    %v221 = vld [vmem:[%s4 + $0x10] sm:$0xff]
    %v222 = vld [vmem:[%s4 + $0x18] sm:$0xff]
    %v223 = vld [vmem:[%s5] sm:$0x1]
    %v225 = vlaneseq
    %v226 = vshrl.u32 %v225, 7
    %v227 = vsub.s32 0, %v226
    %v228 = vrot.slane %v223, %v227
    %230 = vmatprep.subr.mxu0 0.0
    %231 = vmatpush1.msra.mxu0 %v219
    %232 = vmatprep.subr.mxu0 0.0
    %233 = vmatpush1.msra.mxu0 %v220
    %234 = vmatprep.subr.mxu0 0.0
    %235 = vmatpush1.msra.mxu0 %v221
    %236 = vmatprep.subr.mxu0 0.0
    %237 = vmatpush1.msra.mxu0 %v222
    %238 = vmatprep.subr.mxu0 0.0
    %239 = vmatpush1.msra.mxu0 0.0
    %240 = vmatprep.subr.mxu0 0.0
    %241 = vmatpush1.msra.mxu0 0.0
    %242 = vmatprep.subr.mxu0 0.0
    %243 = vmatpush1.msra.mxu0 0.0
    %244 = vmatprep.subr.mxu0 0.0
    %245 = vmatpush1.msra.mxu0 0.0
    %246 = vmatprep.subr.mxu0 0.0
    %247 = vmatpush1.msra.mxu0 0.0
    %248 = vmatprep.subr.mxu0 0.0
    %249 = vmatpush1.msra.mxu0 0.0
    %250 = vmatprep.subr.mxu0 0.0
    %251 = vmatpush1.msra.mxu0 0.0
    %252 = vmatprep.subr.mxu0 0.0
    %253 = vmatpush1.msra.mxu0 0.0
    %254 = vmatprep.subr.mxu0 0.0
    %255 = vmatpush1.msra.mxu0 0.0
    %256 = vmatprep.subr.mxu0 0.0
    %257 = vmatpush1.msra.mxu0 0.0
    %258 = vmatprep.subr.mxu0 0.0
    %259 = vmatpush1.msra.mxu0 0.0
    %260 = vmatprep.subr.mxu0 0.0
    %261 = vmatpush1.msra.mxu0 0.0
    %262 = vmatprep.subr.mxu0 0.0
    %263 = vmatpush1.msra.mxu0 0.0
    %264 = vmatprep.subr.mxu0 0.0
    %265 = vmatpush1.msra.mxu0 0.0
    %266 = vmatprep.subr.mxu0 0.0
    %267 = vmatpush1.msra.mxu0 0.0
    %268 = vmatprep.subr.mxu0 0.0
    %269 = vmatpush1.msra.mxu0 0.0
    %270 = vmatprep.subr.mxu0 0.0
    %271 = vmatpush1.msra.mxu0 0.0
    %272 = vmatprep.subr.mxu0 0.0
    %273 = vmatpush1.msra.mxu0 0.0
    %274 = vmatprep.subr.mxu0 0.0
    %275 = vmatpush1.msra.mxu0 0.0
    %276 = vmatprep.subr.mxu0 0.0
    %277 = vmatpush1.msra.mxu0 0.0
    %278 = vmatprep.subr.mxu0 0.0
    %279 = vmatpush1.msra.mxu0 0.0
    %280 = vmatprep.subr.mxu0 0.0
    %281 = vmatpush1.msra.mxu0 0.0
    %282 = vmatprep.subr.mxu0 0.0
    %283 = vmatpush1.msra.mxu0 0.0
    %284 = vmatprep.subr.mxu0 0.0
    %285 = vmatpush1.msra.mxu0 0.0
    %286 = vmatprep.subr.mxu0 0.0
    %287 = vmatpush1.msra.mxu0 0.0
    %288 = vmatprep.subr.mxu0 0.0
    %289 = vmatpush1.msra.mxu0 0.0
    %290 = vmatprep.subr.mxu0 0.0
    %291 = vmatpush1.msra.mxu0 0.0
    %292 = vmatprep.subr.mxu0 0.0
    %293 = vmatpush1.msra.mxu0 0.0
    %294 = vmatprep.mubr.f32.mxu0 0.0
    %295 = vmatmul.mubr.f32.gmra.mrb[0].mxu0 %v123
    %v296 = vpop.f32.mrb[0].mxu0
    %v297 = vadd.f32 %v228, %v296
    %v298 = vpop.f32.mrb[0].mxu0
    %299 = vmatprep.mubr.f32.mxu0 0.0
    %300 = vmatmul.mubr.f32.gmra.mrb[0].mxu0 %v126
    %v301 = vpop.f32.mrb[0].mxu0
    %v302 = vadd.f32 %v228, %v301
    %v303 = vpop.f32.mrb[0].mxu0
    %304 = vmatprep.mubr.f32.mxu0 0.0
    %305 = vmatmul.mubr.f32.gmra.mrb[0].mxu0 %v129
    %v306 = vpop.f32.mrb[0].mxu0
    %v307 = vadd.f32 %v228, %v306
    %v308 = vpop.f32.mrb[0].mxu0
    %309 = vmatprep.mubr.f32.mxu0 0.0
    %310 = vmatmul.mubr.f32.gmra.mrb[0].mxu0 %v132
    %v311 = vpop.f32.mrb[0].mxu0
    %v312 = vadd.f32 %v228, %v311
    %v313 = vpop.f32.mrb[0].mxu0
    %314 = vdwg.mxu0
    %v315 = vld [vmem:[#allocation6] sm:$0xff]
    %v316 = vld [vmem:[#allocation6 + $0x8] sm:$0xff]
    %v317 = vld [vmem:[#allocation6 + $0x10] sm:$0xff]
    %v318 = vld [vmem:[#allocation6 + $0x18] sm:$0xff]
    %v319 = vld [vmem:[%s7] sm:$0x1]
    %v321 = vlaneseq
    %v322 = vshrl.u32 %v321, 7
    %v323 = vsub.s32 0, %v322
    %v324 = vrot.slane %v319, %v323
    %326 = vmatprep.subr.mxu0 0.0
    %327 = vmatpush1.msra.mxu0 %v315
    %328 = vmatprep.subr.mxu0 0.0
    %329 = vmatpush1.msra.mxu0 %v316
    %330 = vmatprep.subr.mxu0 0.0
    %331 = vmatpush1.msra.mxu0 %v317
    %332 = vmatprep.subr.mxu0 0.0
    %333 = vmatpush1.msra.mxu0 %v318
    %334 = vmatprep.subr.mxu0 0.0
    %335 = vmatpush1.msra.mxu0 0.0
    %336 = vmatprep.subr.mxu0 0.0
    %337 = vmatpush1.msra.mxu0 0.0
    %338 = vmatprep.subr.mxu0 0.0
    %339 = vmatpush1.msra.mxu0 0.0
    %340 = vmatprep.subr.mxu0 0.0
    %341 = vmatpush1.msra.mxu0 0.0
    %342 = vmatprep.subr.mxu0 0.0
    %343 = vmatpush1.msra.mxu0 0.0
    %344 = vmatprep.subr.mxu0 0.0
    %345 = vmatpush1.msra.mxu0 0.0
    %346 = vmatprep.subr.mxu0 0.0
    %347 = vmatpush1.msra.mxu0 0.0
    %348 = vmatprep.subr.mxu0 0.0
    %349 = vmatpush1.msra.mxu0 0.0
    %350 = vmatprep.subr.mxu0 0.0
    %351 = vmatpush1.msra.mxu0 0.0
    %352 = vmatprep.subr.mxu0 0.0
    %353 = vmatpush1.msra.mxu0 0.0
    %354 = vmatprep.subr.mxu0 0.0
    %355 = vmatpush1.msra.mxu0 0.0
    %356 = vmatprep.subr.mxu0 0.0
    %357 = vmatpush1.msra.mxu0 0.0
    %358 = vmatprep.subr.mxu0 0.0
    %359 = vmatpush1.msra.mxu0 0.0
    %360 = vmatprep.subr.mxu0 0.0
    %361 = vmatpush1.msra.mxu0 0.0
    %362 = vmatprep.subr.mxu0 0.0
    %363 = vmatpush1.msra.mxu0 0.0
    %364 = vmatprep.subr.mxu0 0.0
    %365 = vmatpush1.msra.mxu0 0.0
    %366 = vmatprep.subr.mxu0 0.0
    %367 = vmatpush1.msra.mxu0 0.0
    %368 = vmatprep.subr.mxu0 0.0
    %369 = vmatpush1.msra.mxu0 0.0
    %370 = vmatprep.subr.mxu0 0.0
    %371 = vmatpush1.msra.mxu0 0.0
    %372 = vmatprep.subr.mxu0 0.0
    %373 = vmatpush1.msra.mxu0 0.0
    %374 = vmatprep.subr.mxu0 0.0
    %375 = vmatpush1.msra.mxu0 0.0
    %376 = vmatprep.subr.mxu0 0.0
    %377 = vmatpush1.msra.mxu0 0.0
    %378 = vmatprep.subr.mxu0 0.0
    %379 = vmatpush1.msra.mxu0 0.0
    %380 = vmatprep.subr.mxu0 0.0
    %381 = vmatpush1.msra.mxu0 0.0
    %382 = vmatprep.subr.mxu0 0.0
    %383 = vmatpush1.msra.mxu0 0.0
    %384 = vmatprep.subr.mxu0 0.0
    %385 = vmatpush1.msra.mxu0 0.0
    %386 = vmatprep.subr.mxu0 0.0
    %387 = vmatpush1.msra.mxu0 0.0
    %388 = vmatprep.subr.mxu0 0.0
    %389 = vmatpush1.msra.mxu0 0.0
    %390 = vmatprep.mubr.f32.mxu0 0.0
    %391 = vmatmul.mubr.f32.gmra.mrb[0].mxu0 %v123
    %v392 = vpop.f32.mrb[0].mxu0
    %v393 = vadd.f32 %v324, %v392
    %v394 = vpop.f32.mrb[0].mxu0
    %395 = vmatprep.mubr.f32.mxu0 0.0
    %396 = vmatmul.mubr.f32.gmra.mrb[0].mxu0 %v126
    %v397 = vpop.f32.mrb[0].mxu0
    %v398 = vadd.f32 %v324, %v397
    %v399 = vpop.f32.mrb[0].mxu0
    %400 = vmatprep.mubr.f32.mxu0 0.0
    %401 = vmatmul.mubr.f32.gmra.mrb[0].mxu0 %v129
    %v402 = vpop.f32.mrb[0].mxu0
    %v403 = vadd.f32 %v324, %v402
    %v404 = vpop.f32.mrb[0].mxu0
    %405 = vmatprep.mubr.f32.mxu0 0.0
    %406 = vmatmul.mubr.f32.gmra.mrb[0].mxu0 %v132
    %v407 = vpop.f32.mrb[0].mxu0
    %v408 = vadd.f32 %v324, %v407
    %v409 = vpop.f32.mrb[0].mxu0
    %410 = vdwg.mxu0
    %v411 = vmul.f32 %v201, 0.35355338
    %v412 = vmul.f32 %v206, 0.35355338
    %v413 = vmul.f32 %v211, 0.35355338
    %v414 = vmul.f32 %v216, 0.35355338
    %vm415 = vcmask 64512
    %v417 = vsel %vm415, %v411, 0
    %v420 = vsel %vm415, %v412, 0
    %v423 = vsel %vm415, %v297, 0
    %v426 = vsel %vm415, %v302, 0
    %428 = vmatprep.subr.mxu0 0.0
    %429 = vmatpush1.xpose.msra.mxu0 %v423
    %430 = vmatprep.subr.mxu0 0.0
    %431 = vmatpush1.xpose.msra.mxu0 %v426
    %432 = vmatprep.subr.mxu0 0.0
    %433 = vmatpush1.xpose.msra.mxu0 0.0
    %434 = vmatprep.subr.mxu0 0.0
    %435 = vmatpush1.xpose.msra.mxu0 0.0
    %436 = vmatprep.subr.mxu0 0.0
    %437 = vmatpush1.xpose.msra.mxu0 0.0
    %438 = vmatprep.subr.mxu0 0.0
    %439 = vmatpush1.xpose.msra.mxu0 0.0
    %440 = vmatprep.subr.mxu0 0.0
    %441 = vmatpush1.xpose.msra.mxu0 0.0
    %442 = vmatprep.subr.mxu0 0.0
    %443 = vmatpush1.xpose.msra.mxu0 0.0
    %444 = vmatprep.subr.mxu0 0.0
    %445 = vmatpush1.xpose.msra.mxu0 0.0
    %446 = vmatprep.subr.mxu0 0.0
    %447 = vmatpush1.xpose.msra.mxu0 0.0
    %448 = vmatprep.subr.mxu0 0.0
    %449 = vmatpush1.xpose.msra.mxu0 0.0
    %450 = vmatprep.subr.mxu0 0.0
    %451 = vmatpush1.xpose.msra.mxu0 0.0
    %452 = vmatprep.subr.mxu0 0.0
    %453 = vmatpush1.xpose.msra.mxu0 0.0
    %454 = vmatprep.subr.mxu0 0.0
    %455 = vmatpush1.xpose.msra.mxu0 0.0
    %456 = vmatprep.subr.mxu0 0.0
    %457 = vmatpush1.xpose.msra.mxu0 0.0
    %458 = vmatprep.subr.mxu0 0.0
    %459 = vmatpush1.xpose.msra.mxu0 0.0
    %460 = vmatprep.subr.mxu0 0.0
    %461 = vmatpush1.xpose.msra.mxu0 0.0
    %462 = vmatprep.subr.mxu0 0.0
    %463 = vmatpush1.xpose.msra.mxu0 0.0
    %464 = vmatprep.subr.mxu0 0.0
    %465 = vmatpush1.xpose.msra.mxu0 0.0
    %466 = vmatprep.subr.mxu0 0.0
    %467 = vmatpush1.xpose.msra.mxu0 0.0
    %468 = vmatprep.subr.mxu0 0.0
    %469 = vmatpush1.xpose.msra.mxu0 0.0
    %470 = vmatprep.subr.mxu0 0.0
    %471 = vmatpush1.xpose.msra.mxu0 0.0
    %472 = vmatprep.subr.mxu0 0.0
    %473 = vmatpush1.xpose.msra.mxu0 0.0
    %474 = vmatprep.subr.mxu0 0.0
    %475 = vmatpush1.xpose.msra.mxu0 0.0
    %476 = vmatprep.subr.mxu0 0.0
    %477 = vmatpush1.xpose.msra.mxu0 0.0
    %478 = vmatprep.subr.mxu0 0.0
    %479 = vmatpush1.xpose.msra.mxu0 0.0
    %480 = vmatprep.subr.mxu0 0.0
    %481 = vmatpush1.xpose.msra.mxu0 0.0
    %482 = vmatprep.subr.mxu0 0.0
    %483 = vmatpush1.xpose.msra.mxu0 0.0
    %484 = vmatprep.subr.mxu0 0.0
    %485 = vmatpush1.xpose.msra.mxu0 0.0
    %486 = vmatprep.subr.mxu0 0.0
    %487 = vmatpush1.xpose.msra.mxu0 0.0
    %488 = vmatprep.subr.mxu0 0.0
    %489 = vmatpush1.xpose.msra.mxu0 0.0
    %490 = vmatprep.subr.mxu0 0.0
    %491 = vmatpush1.xpose.msra.mxu0 0.0
    %492 = vmatprep.mubr.f32.mxu0 0.0
    %493 = vmatmul.mubr.f32.gmra.mrb[0].mxu0 %v417
    %v494 = vpop.f32.mrb[0].mxu0
    %v495 = vadd.f32 0.0, %v494
    %v496 = vpop.f32.mrb[0].mxu0
    %497 = vmatprep.mubr.f32.mxu0 0.0
    %498 = vmatmul.mubr.f32.gmra.mrb[0].mxu0 %v420
    %v499 = vpop.f32.mrb[0].mxu0
    %v500 = vadd.f32 0.0, %v499
    %v501 = vpop.f32.mrb[0].mxu0
    %502 = vdwg.mxu0
    %v504 = vsel %vm415, %v413, 0
    %v507 = vsel %vm415, %v414, 0
    %v510 = vsel %vm415, %v307, 0
    %v513 = vsel %vm415, %v312, 0
    %515 = vmatprep.subr.mxu0 0.0
    %516 = vmatpush1.xpose.msra.mxu0 %v510
    %517 = vmatprep.subr.mxu0 0.0
    %518 = vmatpush1.xpose.msra.mxu0 %v513
    %519 = vmatprep.subr.mxu0 0.0
    %520 = vmatpush1.xpose.msra.mxu0 0.0
    %521 = vmatprep.subr.mxu0 0.0
    %522 = vmatpush1.xpose.msra.mxu0 0.0
    %523 = vmatprep.subr.mxu0 0.0
    %524 = vmatpush1.xpose.msra.mxu0 0.0
    %525 = vmatprep.subr.mxu0 0.0
    %526 = vmatpush1.xpose.msra.mxu0 0.0
    %527 = vmatprep.subr.mxu0 0.0
    %528 = vmatpush1.xpose.msra.mxu0 0.0
    %529 = vmatprep.subr.mxu0 0.0
    %530 = vmatpush1.xpose.msra.mxu0 0.0
    %531 = vmatprep.subr.mxu0 0.0
    %532 = vmatpush1.xpose.msra.mxu0 0.0
    %533 = vmatprep.subr.mxu0 0.0
    %534 = vmatpush1.xpose.msra.mxu0 0.0
    %535 = vmatprep.subr.mxu0 0.0
    %536 = vmatpush1.xpose.msra.mxu0 0.0
    %537 = vmatprep.subr.mxu0 0.0
    %538 = vmatpush1.xpose.msra.mxu0 0.0
    %539 = vmatprep.subr.mxu0 0.0
    %540 = vmatpush1.xpose.msra.mxu0 0.0
    %541 = vmatprep.subr.mxu0 0.0
    %542 = vmatpush1.xpose.msra.mxu0 0.0
    %543 = vmatprep.subr.mxu0 0.0
    %544 = vmatpush1.xpose.msra.mxu0 0.0
    %545 = vmatprep.subr.mxu0 0.0
    %546 = vmatpush1.xpose.msra.mxu0 0.0
    %547 = vmatprep.subr.mxu0 0.0
    %548 = vmatpush1.xpose.msra.mxu0 0.0
    %549 = vmatprep.subr.mxu0 0.0
    %550 = vmatpush1.xpose.msra.mxu0 0.0
    %551 = vmatprep.subr.mxu0 0.0
    %552 = vmatpush1.xpose.msra.mxu0 0.0
    %553 = vmatprep.subr.mxu0 0.0
    %554 = vmatpush1.xpose.msra.mxu0 0.0
    %555 = vmatprep.subr.mxu0 0.0
    %556 = vmatpush1.xpose.msra.mxu0 0.0
    %557 = vmatprep.subr.mxu0 0.0
    %558 = vmatpush1.xpose.msra.mxu0 0.0
    %559 = vmatprep.subr.mxu0 0.0
    %560 = vmatpush1.xpose.msra.mxu0 0.0
    %561 = vmatprep.subr.mxu0 0.0
    %562 = vmatpush1.xpose.msra.mxu0 0.0
    %563 = vmatprep.subr.mxu0 0.0
    %564 = vmatpush1.xpose.msra.mxu0 0.0
    %565 = vmatprep.subr.mxu0 0.0
    %566 = vmatpush1.xpose.msra.mxu0 0.0
    %567 = vmatprep.subr.mxu0 0.0
    %568 = vmatpush1.xpose.msra.mxu0 0.0
    %569 = vmatprep.subr.mxu0 0.0
    %570 = vmatpush1.xpose.msra.mxu0 0.0
    %571 = vmatprep.subr.mxu0 0.0
    %572 = vmatpush1.xpose.msra.mxu0 0.0
    %573 = vmatprep.subr.mxu0 0.0
    %574 = vmatpush1.xpose.msra.mxu0 0.0
    %575 = vmatprep.subr.mxu0 0.0
    %576 = vmatpush1.xpose.msra.mxu0 0.0
    %577 = vmatprep.subr.mxu0 0.0
    %578 = vmatpush1.xpose.msra.mxu0 0.0
    %579 = vmatprep.mubr.f32.mxu0 0.0
    %580 = vmatmul.mubr.f32.gmra.mrb[0].mxu0 %v504
    %v581 = vpop.f32.mrb[0].mxu0
    %v582 = vadd.f32 0.0, %v581
    %v583 = vpop.f32.mrb[0].mxu0
    %584 = vmatprep.mubr.f32.mxu0 0.0
    %585 = vmatmul.mubr.f32.gmra.mrb[0].mxu0 %v507
    %v586 = vpop.f32.mrb[0].mxu0
    %v587 = vadd.f32 0.0, %v586
    %v588 = vpop.f32.mrb[0].mxu0
    %589 = vdwg.mxu0
    %vm590 = vcmask 130048
    %v591 = vsel %vm590, %v495, -inf
    %592 = vmax.xlane.f32.xlu0 %v591
    %v593 = vpop.xlane.xlu0 %592
    %v594 = vsel %vm590, %v500, -inf
    %595 = vmax.xlane.f32.xlu0 %v594
    %v596 = vpop.xlane.xlu0 %595
    %v597 = vsel %vm590, %v582, -inf
    %598 = vmax.xlane.f32.xlu0 %v597
    %v599 = vpop.xlane.xlu0 %598
    %v600 = vsel %vm590, %v587, -inf
    %601 = vmax.xlane.f32.xlu0 %v600
    %v602 = vpop.xlane.xlu0 %601
    %v603 = vsub.f32 %v495, %v593
    %v604 = vsub.f32 %v500, %v596
    %v605 = vsub.f32 %v582, %v599
    %v606 = vsub.f32 %v587, %v602
    %v607 = vmul.f32 %v603, 1.442695
    %v608 = vpow.pop %v607
    %v609 = vmul.f32 %v604, 1.442695
    %v610 = vpow.pop %v609
    %v611 = vmul.f32 %v605, 1.442695
    %v612 = vpow.pop %v611
    %v613 = vmul.f32 %v606, 1.442695
    %v614 = vpow.pop %v613
    %v615 = vsel %vm590, %v608, 0.0
    %616 = vadd.xlane.f32.xlu0 %v615
    %v617 = vpop.xlane.xlu0 %616
    %v618 = vsel %vm590, %v610, 0.0
    %619 = vadd.xlane.f32.xlu0 %v618
    %v620 = vpop.xlane.xlu0 %619
    %v621 = vsel %vm590, %v612, 0.0
    %622 = vadd.xlane.f32.xlu0 %v621
    %v623 = vpop.xlane.xlu0 %622
    %v624 = vsel %vm590, %v614, 0.0
    %625 = vadd.xlane.f32.xlu0 %v624
    %v626 = vpop.xlane.xlu0 %625
    %v627 = vrcp.pop %v617
    %v628 = vrcp.pop %v620
    %v629 = vrcp.pop %v623
    %v630 = vrcp.pop %v626
    %v631 = vmul.f32 %v608, %v627
    %v632 = vmul.f32 %v610, %v628
    %v633 = vmul.f32 %v612, %v629
    %v634 = vmul.f32 %v614, %v630
    %635 = vst.msk [vmem:[#allocation12] sm:$0xff] %vm590, %v631
    %636 = vst.msk [vmem:[#allocation12 + $0x8] sm:$0xff] %vm590, %v632
    %637 = vst.msk [vmem:[#allocation12 + $0x40] sm:$0xff] %vm590, %v633
    %638 = vst.msk [vmem:[#allocation12 + $0x48] sm:$0xff] %vm590, %v634
    %v640 = vsel %vm590, %v631, 0
    %v643 = vsel %vm590, %v632, 0
    %645 = vmatprep.subr.mxu0 0.0
    %646 = vmatpush1.msra.mxu0 %v393
    %647 = vmatprep.subr.mxu0 0.0
    %648 = vmatpush1.msra.mxu0 %v398
    %649 = vmatprep.subr.mxu0 0.0
    %650 = vmatpush1.msra.mxu0 0.0
    %651 = vmatprep.subr.mxu0 0.0
    %652 = vmatpush1.msra.mxu0 0.0
    %653 = vmatprep.subr.mxu0 0.0
    %654 = vmatpush1.msra.mxu0 0.0
    %655 = vmatprep.subr.mxu0 0.0
    %656 = vmatpush1.msra.mxu0 0.0
    %657 = vmatprep.subr.mxu0 0.0
    %658 = vmatpush1.msra.mxu0 0.0
    %659 = vmatprep.subr.mxu0 0.0
    %660 = vmatpush1.msra.mxu0 0.0
    %661 = vmatprep.subr.mxu0 0.0
    %662 = vmatpush1.msra.mxu0 0.0
    %663 = vmatprep.subr.mxu0 0.0
    %664 = vmatpush1.msra.mxu0 0.0
    %665 = vmatprep.subr.mxu0 0.0
    %666 = vmatpush1.msra.mxu0 0.0
    %667 = vmatprep.subr.mxu0 0.0
    %668 = vmatpush1.msra.mxu0 0.0
    %669 = vmatprep.subr.mxu0 0.0
    %670 = vmatpush1.msra.mxu0 0.0
    %671 = vmatprep.subr.mxu0 0.0
    %672 = vmatpush1.msra.mxu0 0.0
    %673 = vmatprep.subr.mxu0 0.0
    %674 = vmatpush1.msra.mxu0 0.0
    %675 = vmatprep.subr.mxu0 0.0
    %676 = vmatpush1.msra.mxu0 0.0
    %677 = vmatprep.subr.mxu0 0.0
    %678 = vmatpush1.msra.mxu0 0.0
    %679 = vmatprep.subr.mxu0 0.0
    %680 = vmatpush1.msra.mxu0 0.0
    %681 = vmatprep.subr.mxu0 0.0
    %682 = vmatpush1.msra.mxu0 0.0
    %683 = vmatprep.subr.mxu0 0.0
    %684 = vmatpush1.msra.mxu0 0.0
    %685 = vmatprep.subr.mxu0 0.0
    %686 = vmatpush1.msra.mxu0 0.0
    %687 = vmatprep.subr.mxu0 0.0
    %688 = vmatpush1.msra.mxu0 0.0
    %689 = vmatprep.subr.mxu0 0.0
    %690 = vmatpush1.msra.mxu0 0.0
    %691 = vmatprep.subr.mxu0 0.0
    %692 = vmatpush1.msra.mxu0 0.0
    %693 = vmatprep.subr.mxu0 0.0
    %694 = vmatpush1.msra.mxu0 0.0
    %695 = vmatprep.subr.mxu0 0.0
    %696 = vmatpush1.msra.mxu0 0.0
    %697 = vmatprep.subr.mxu0 0.0
    %698 = vmatpush1.msra.mxu0 0.0
    %699 = vmatprep.subr.mxu0 0.0
    %700 = vmatpush1.msra.mxu0 0.0
    %701 = vmatprep.subr.mxu0 0.0
    %702 = vmatpush1.msra.mxu0 0.0
    %703 = vmatprep.subr.mxu0 0.0
    %704 = vmatpush1.msra.mxu0 0.0
    %705 = vmatprep.subr.mxu0 0.0
    %706 = vmatpush1.msra.mxu0 0.0
    %707 = vmatprep.subr.mxu0 0.0
    %708 = vmatpush1.msra.mxu0 0.0
    %709 = vmatprep.mubr.f32.mxu0 0.0
    %710 = vmatmul.mubr.f32.gmra.mrb[0].mxu0 %v640
    %v711 = vpop.f32.mrb[0].mxu0
    %v712 = vadd.f32 0.0, %v711
    %v713 = vpop.f32.mrb[0].mxu0
    %714 = vmatprep.mubr.f32.mxu0 0.0
    %715 = vmatmul.mubr.f32.gmra.mrb[0].mxu0 %v643
    %v716 = vpop.f32.mrb[0].mxu0
    %v717 = vadd.f32 0.0, %v716
    %v718 = vpop.f32.mrb[0].mxu0
    %719 = vdwg.mxu0
    %v721 = vsel %vm590, %v633, 0
    %v724 = vsel %vm590, %v634, 0
    %726 = vmatprep.subr.mxu0 0.0
    %727 = vmatpush1.msra.mxu0 %v403
    %728 = vmatprep.subr.mxu0 0.0
    %729 = vmatpush1.msra.mxu0 %v408
    %730 = vmatprep.subr.mxu0 0.0
    %731 = vmatpush1.msra.mxu0 0.0
    %732 = vmatprep.subr.mxu0 0.0
    %733 = vmatpush1.msra.mxu0 0.0
    %734 = vmatprep.subr.mxu0 0.0
    %735 = vmatpush1.msra.mxu0 0.0
    %736 = vmatprep.subr.mxu0 0.0
    %737 = vmatpush1.msra.mxu0 0.0
    %738 = vmatprep.subr.mxu0 0.0
    %739 = vmatpush1.msra.mxu0 0.0
    %740 = vmatprep.subr.mxu0 0.0
    %741 = vmatpush1.msra.mxu0 0.0
    %742 = vmatprep.subr.mxu0 0.0
    %743 = vmatpush1.msra.mxu0 0.0
    %744 = vmatprep.subr.mxu0 0.0
    %745 = vmatpush1.msra.mxu0 0.0
    %746 = vmatprep.subr.mxu0 0.0
    %747 = vmatpush1.msra.mxu0 0.0
    %748 = vmatprep.subr.mxu0 0.0
    %749 = vmatpush1.msra.mxu0 0.0
    %750 = vmatprep.subr.mxu0 0.0
    %751 = vmatpush1.msra.mxu0 0.0
    %752 = vmatprep.subr.mxu0 0.0
    %753 = vmatpush1.msra.mxu0 0.0
    %754 = vmatprep.subr.mxu0 0.0
    %755 = vmatpush1.msra.mxu0 0.0
    %756 = vmatprep.subr.mxu0 0.0
    %757 = vmatpush1.msra.mxu0 0.0
    %758 = vmatprep.subr.mxu0 0.0
    %759 = vmatpush1.msra.mxu0 0.0
    %760 = vmatprep.subr.mxu0 0.0
    %761 = vmatpush1.msra.mxu0 0.0
    %762 = vmatprep.subr.mxu0 0.0
    %763 = vmatpush1.msra.mxu0 0.0
    %764 = vmatprep.subr.mxu0 0.0
    %765 = vmatpush1.msra.mxu0 0.0
    %766 = vmatprep.subr.mxu0 0.0
    %767 = vmatpush1.msra.mxu0 0.0
    %768 = vmatprep.subr.mxu0 0.0
    %769 = vmatpush1.msra.mxu0 0.0
    %770 = vmatprep.subr.mxu0 0.0
    %771 = vmatpush1.msra.mxu0 0.0
    %772 = vmatprep.subr.mxu0 0.0
    %773 = vmatpush1.msra.mxu0 0.0
    %774 = vmatprep.subr.mxu0 0.0
    %775 = vmatpush1.msra.mxu0 0.0
    %776 = vmatprep.subr.mxu0 0.0
    %777 = vmatpush1.msra.mxu0 0.0
    %778 = vmatprep.subr.mxu0 0.0
    %779 = vmatpush1.msra.mxu0 0.0
    %780 = vmatprep.subr.mxu0 0.0
    %781 = vmatpush1.msra.mxu0 0.0
    %782 = vmatprep.subr.mxu0 0.0
    %783 = vmatpush1.msra.mxu0 0.0
    %784 = vmatprep.subr.mxu0 0.0
    %785 = vmatpush1.msra.mxu0 0.0
    %786 = vmatprep.subr.mxu0 0.0
    %787 = vmatpush1.msra.mxu0 0.0
    %788 = vmatprep.subr.mxu0 0.0
    %789 = vmatpush1.msra.mxu0 0.0
    %790 = vmatprep.mubr.f32.mxu0 0.0
    %791 = vmatmul.mubr.f32.gmra.mrb[0].mxu0 %v721
    %v792 = vpop.f32.mrb[0].mxu0
    %v793 = vadd.f32 0.0, %v792
    %v794 = vpop.f32.mrb[0].mxu0
    %795 = vmatprep.mubr.f32.mxu0 0.0
    %796 = vmatmul.mubr.f32.gmra.mrb[0].mxu0 %v724
    %v797 = vpop.f32.mrb[0].mxu0
    %v798 = vadd.f32 0.0, %v797
    %v799 = vpop.f32.mrb[0].mxu0
    %800 = vdwg.mxu0
    %801 = vst.msk [vmem:[#allocation2] sm:$0xff] %vm415, %v712
    %802 = vst.msk [vmem:[#allocation2 + $0x8] sm:$0xff] %vm415, %v717
    %803 = vst.msk [vmem:[#allocation2 + $0x10] sm:$0xff] %vm415, %v793
    %804 = vst.msk [vmem:[#allocation2 + $0x18] sm:$0xff] %vm415, %v798
    %805 = vrot.lane.b32.xlu0 %v411, 120
    %v806 = vpop.permute.xlu0 %805
    %807 = vrot.lane.b32.xlu0 %v412, 120
    %v808 = vpop.permute.xlu0 %807
    %809 = vrot.lane.b32.xlu0 %v297, 120
    %v810 = vpop.permute.xlu0 %809
    %811 = vrot.lane.b32.xlu0 %v302, 120
    %v812 = vpop.permute.xlu0 %811
    %v813 = vsel %vm415, %v806, 0
    %v815 = vsel %vm415, %v808, 0
    %v817 = vsel %vm415, %v810, 0
    %v819 = vsel %vm415, %v812, 0
    %821 = vmatprep.subr.mxu0 0.0
    %822 = vmatpush1.xpose.msra.mxu0 %v817
    %823 = vmatprep.subr.mxu0 0.0
    %824 = vmatpush1.xpose.msra.mxu0 %v819
    %825 = vmatprep.subr.mxu0 0.0
    %826 = vmatpush1.xpose.msra.mxu0 0.0
    %827 = vmatprep.subr.mxu0 0.0
    %828 = vmatpush1.xpose.msra.mxu0 0.0
    %829 = vmatprep.subr.mxu0 0.0
    %830 = vmatpush1.xpose.msra.mxu0 0.0
    %831 = vmatprep.subr.mxu0 0.0
    %832 = vmatpush1.xpose.msra.mxu0 0.0
    %833 = vmatprep.subr.mxu0 0.0
    %834 = vmatpush1.xpose.msra.mxu0 0.0
    %835 = vmatprep.subr.mxu0 0.0
    %836 = vmatpush1.xpose.msra.mxu0 0.0
    %837 = vmatprep.subr.mxu0 0.0
    %838 = vmatpush1.xpose.msra.mxu0 0.0
    %839 = vmatprep.subr.mxu0 0.0
    %840 = vmatpush1.xpose.msra.mxu0 0.0
    %841 = vmatprep.subr.mxu0 0.0
    %842 = vmatpush1.xpose.msra.mxu0 0.0
    %843 = vmatprep.subr.mxu0 0.0
    %844 = vmatpush1.xpose.msra.mxu0 0.0
    %845 = vmatprep.subr.mxu0 0.0
    %846 = vmatpush1.xpose.msra.mxu0 0.0
    %847 = vmatprep.subr.mxu0 0.0
    %848 = vmatpush1.xpose.msra.mxu0 0.0
    %849 = vmatprep.subr.mxu0 0.0
    %850 = vmatpush1.xpose.msra.mxu0 0.0
    %851 = vmatprep.subr.mxu0 0.0
    %852 = vmatpush1.xpose.msra.mxu0 0.0
    %853 = vmatprep.subr.mxu0 0.0
    %854 = vmatpush1.xpose.msra.mxu0 0.0
    %855 = vmatprep.subr.mxu0 0.0
    %856 = vmatpush1.xpose.msra.mxu0 0.0
    %857 = vmatprep.subr.mxu0 0.0
    %858 = vmatpush1.xpose.msra.mxu0 0.0
    %859 = vmatprep.subr.mxu0 0.0
    %860 = vmatpush1.xpose.msra.mxu0 0.0
    %861 = vmatprep.subr.mxu0 0.0
    %862 = vmatpush1.xpose.msra.mxu0 0.0
    %863 = vmatprep.subr.mxu0 0.0
    %864 = vmatpush1.xpose.msra.mxu0 0.0
    %865 = vmatprep.subr.mxu0 0.0
    %866 = vmatpush1.xpose.msra.mxu0 0.0
    %867 = vmatprep.subr.mxu0 0.0
    %868 = vmatpush1.xpose.msra.mxu0 0.0
    %869 = vmatprep.subr.mxu0 0.0
    %870 = vmatpush1.xpose.msra.mxu0 0.0
    %871 = vmatprep.subr.mxu0 0.0
    %872 = vmatpush1.xpose.msra.mxu0 0.0
    %873 = vmatprep.subr.mxu0 0.0
    %874 = vmatpush1.xpose.msra.mxu0 0.0
    %875 = vmatprep.subr.mxu0 0.0
    %876 = vmatpush1.xpose.msra.mxu0 0.0
    %877 = vmatprep.subr.mxu0 0.0
    %878 = vmatpush1.xpose.msra.mxu0 0.0
    %879 = vmatprep.subr.mxu0 0.0
    %880 = vmatpush1.xpose.msra.mxu0 0.0
    %881 = vmatprep.subr.mxu0 0.0
    %882 = vmatpush1.xpose.msra.mxu0 0.0
    %883 = vmatprep.subr.mxu0 0.0
    %884 = vmatpush1.xpose.msra.mxu0 0.0
    %885 = vmatprep.mubr.f32.mxu0 0.0
    %886 = vmatmul.mubr.f32.gmra.mrb[0].mxu0 %v813
    %v887 = vpop.f32.mrb[0].mxu0
    %v888 = vadd.f32 0.0, %v887
    %v889 = vpop.f32.mrb[0].mxu0
    %890 = vmatprep.mubr.f32.mxu0 0.0
    %891 = vmatmul.mubr.f32.gmra.mrb[0].mxu0 %v815
    %v892 = vpop.f32.mrb[0].mxu0
    %v893 = vadd.f32 0.0, %v892
    %v894 = vpop.f32.mrb[0].mxu0
    %895 = vdwg.mxu0
    %896 = vrot.lane.b32.xlu0 %v413, 120
    %v897 = vpop.permute.xlu0 %896
    %898 = vrot.lane.b32.xlu0 %v414, 120
    %v899 = vpop.permute.xlu0 %898
    %900 = vrot.lane.b32.xlu0 %v307, 120
    %v901 = vpop.permute.xlu0 %900
    %902 = vrot.lane.b32.xlu0 %v312, 120
    %v903 = vpop.permute.xlu0 %902
    %v904 = vsel %vm415, %v897, 0
    %v906 = vsel %vm415, %v899, 0
    %v908 = vsel %vm415, %v901, 0
    %v910 = vsel %vm415, %v903, 0
    %912 = vmatprep.subr.mxu0 0.0
    %913 = vmatpush1.xpose.msra.mxu0 %v908
    %914 = vmatprep.subr.mxu0 0.0
    %915 = vmatpush1.xpose.msra.mxu0 %v910
    %916 = vmatprep.subr.mxu0 0.0
    %917 = vmatpush1.xpose.msra.mxu0 0.0
    %918 = vmatprep.subr.mxu0 0.0
    %919 = vmatpush1.xpose.msra.mxu0 0.0
    %920 = vmatprep.subr.mxu0 0.0
    %921 = vmatpush1.xpose.msra.mxu0 0.0
    %922 = vmatprep.subr.mxu0 0.0
    %923 = vmatpush1.xpose.msra.mxu0 0.0
    %924 = vmatprep.subr.mxu0 0.0
    %925 = vmatpush1.xpose.msra.mxu0 0.0
    %926 = vmatprep.subr.mxu0 0.0
    %927 = vmatpush1.xpose.msra.mxu0 0.0
    %928 = vmatprep.subr.mxu0 0.0
    %929 = vmatpush1.xpose.msra.mxu0 0.0
    %930 = vmatprep.subr.mxu0 0.0
    %931 = vmatpush1.xpose.msra.mxu0 0.0
    %932 = vmatprep.subr.mxu0 0.0
    %933 = vmatpush1.xpose.msra.mxu0 0.0
    %934 = vmatprep.subr.mxu0 0.0
    %935 = vmatpush1.xpose.msra.mxu0 0.0
    %936 = vmatprep.subr.mxu0 0.0
    %937 = vmatpush1.xpose.msra.mxu0 0.0
    %938 = vmatprep.subr.mxu0 0.0
    %939 = vmatpush1.xpose.msra.mxu0 0.0
    %940 = vmatprep.subr.mxu0 0.0
    %941 = vmatpush1.xpose.msra.mxu0 0.0
    %942 = vmatprep.subr.mxu0 0.0
    %943 = vmatpush1.xpose.msra.mxu0 0.0
    %944 = vmatprep.subr.mxu0 0.0
    %945 = vmatpush1.xpose.msra.mxu0 0.0
    %946 = vmatprep.subr.mxu0 0.0
    %947 = vmatpush1.xpose.msra.mxu0 0.0
    %948 = vmatprep.subr.mxu0 0.0
    %949 = vmatpush1.xpose.msra.mxu0 0.0
    %950 = vmatprep.subr.mxu0 0.0
    %951 = vmatpush1.xpose.msra.mxu0 0.0
    %952 = vmatprep.subr.mxu0 0.0
    %953 = vmatpush1.xpose.msra.mxu0 0.0
    %954 = vmatprep.subr.mxu0 0.0
    %955 = vmatpush1.xpose.msra.mxu0 0.0
    %956 = vmatprep.subr.mxu0 0.0
    %957 = vmatpush1.xpose.msra.mxu0 0.0
    %958 = vmatprep.subr.mxu0 0.0
    %959 = vmatpush1.xpose.msra.mxu0 0.0
    %960 = vmatprep.subr.mxu0 0.0
    %961 = vmatpush1.xpose.msra.mxu0 0.0
    %962 = vmatprep.subr.mxu0 0.0
    %963 = vmatpush1.xpose.msra.mxu0 0.0
    %964 = vmatprep.subr.mxu0 0.0
    %965 = vmatpush1.xpose.msra.mxu0 0.0
    %966 = vmatprep.subr.mxu0 0.0
    %967 = vmatpush1.xpose.msra.mxu0 0.0
    %968 = vmatprep.subr.mxu0 0.0
    %969 = vmatpush1.xpose.msra.mxu0 0.0
    %970 = vmatprep.subr.mxu0 0.0
    %971 = vmatpush1.xpose.msra.mxu0 0.0
    %972 = vmatprep.subr.mxu0 0.0
    %973 = vmatpush1.xpose.msra.mxu0 0.0
    %974 = vmatprep.subr.mxu0 0.0
    %975 = vmatpush1.xpose.msra.mxu0 0.0
    %976 = vmatprep.mubr.f32.mxu0 0.0
    %977 = vmatmul.mubr.f32.gmra.mrb[0].mxu0 %v904
    %v978 = vpop.f32.mrb[0].mxu0
    %v979 = vadd.f32 0.0, %v978
    %v980 = vpop.f32.mrb[0].mxu0
    %981 = vmatprep.mubr.f32.mxu0 0.0
    %982 = vmatmul.mubr.f32.gmra.mrb[0].mxu0 %v906
    %v983 = vpop.f32.mrb[0].mxu0
    %v984 = vadd.f32 0.0, %v983
    %v985 = vpop.f32.mrb[0].mxu0
    %986 = vdwg.mxu0
    %v987 = vsel %vm590, %v888, -inf
    %988 = vmax.xlane.f32.xlu0 %v987
    %v989 = vpop.xlane.xlu0 %988
    %v990 = vsel %vm590, %v893, -inf
    %991 = vmax.xlane.f32.xlu0 %v990
    %v992 = vpop.xlane.xlu0 %991
    %v993 = vsel %vm590, %v979, -inf
    %994 = vmax.xlane.f32.xlu0 %v993
    %v995 = vpop.xlane.xlu0 %994
    %v996 = vsel %vm590, %v984, -inf
    %997 = vmax.xlane.f32.xlu0 %v996
    %v998 = vpop.xlane.xlu0 %997
    %v999 = vsub.f32 %v888, %v989
    %v1000 = vsub.f32 %v893, %v992
    %v1001 = vsub.f32 %v979, %v995
    %v1002 = vsub.f32 %v984, %v998
    %v1003 = vmul.f32 %v999, 1.442695
    %v1004 = vpow.pop %v1003
    %v1005 = vmul.f32 %v1000, 1.442695
    %v1006 = vpow.pop %v1005
    %v1007 = vmul.f32 %v1001, 1.442695
    %v1008 = vpow.pop %v1007
    %v1009 = vmul.f32 %v1002, 1.442695
    %v1010 = vpow.pop %v1009
    %v1011 = vsel %vm590, %v1004, 0.0
    %1012 = vadd.xlane.f32.xlu0 %v1011
    %v1013 = vpop.xlane.xlu0 %1012
    %v1014 = vsel %vm590, %v1006, 0.0
    %1015 = vadd.xlane.f32.xlu0 %v1014
    %v1016 = vpop.xlane.xlu0 %1015
    %v1017 = vsel %vm590, %v1008, 0.0
    %1018 = vadd.xlane.f32.xlu0 %v1017
    %v1019 = vpop.xlane.xlu0 %1018
    %v1020 = vsel %vm590, %v1010, 0.0
    %1021 = vadd.xlane.f32.xlu0 %v1020
    %v1022 = vpop.xlane.xlu0 %1021
    %v1023 = vrcp.pop %v1013
    %v1024 = vrcp.pop %v1016
    %v1025 = vrcp.pop %v1019
    %v1026 = vrcp.pop %v1022
    %v1027 = vmul.f32 %v1004, %v1023
    %v1028 = vmul.f32 %v1006, %v1024
    %v1029 = vmul.f32 %v1008, %v1025
    %v1030 = vmul.f32 %v1010, %v1026
    %s1031 = scalar_lea.vmem [#allocation12], 16
    %1032 = vst.msk [vmem:[%s1031] sm:$0xff] %vm590, %v1027
    %1033 = vst.msk [vmem:[%s1031 + $0x8] sm:$0xff] %vm590, %v1028
    %1034 = vst.msk [vmem:[%s1031 + $0x40] sm:$0xff] %vm590, %v1029
    %1035 = vst.msk [vmem:[%s1031 + $0x48] sm:$0xff] %vm590, %v1030
    %1038 = vrot.lane.b32.xlu0 %v393, 120
    %v1039 = vpop.permute.xlu0 %1038
    %1040 = vrot.lane.b32.xlu0 %v398, 120
    %v1041 = vpop.permute.xlu0 %1040
    %v1045 = vsel %vm590, %v1027, 0
    %v1048 = vsel %vm590, %v1028, 0
    %1050 = vmatprep.subr.mxu0 0.0
    %1051 = vmatpush1.msra.mxu0 %v1039
    %1052 = vmatprep.subr.mxu0 0.0
    %1053 = vmatpush1.msra.mxu0 %v1041
    %1054 = vmatprep.subr.mxu0 0.0
    %1055 = vmatpush1.msra.mxu0 0.0
    %1056 = vmatprep.subr.mxu0 0.0
    %1057 = vmatpush1.msra.mxu0 0.0
    %1058 = vmatprep.subr.mxu0 0.0
    %1059 = vmatpush1.msra.mxu0 0.0
    %1060 = vmatprep.subr.mxu0 0.0
    %1061 = vmatpush1.msra.mxu0 0.0
    %1062 = vmatprep.subr.mxu0 0.0
    %1063 = vmatpush1.msra.mxu0 0.0
    %1064 = vmatprep.subr.mxu0 0.0
    %1065 = vmatpush1.msra.mxu0 0.0
    %1066 = vmatprep.subr.mxu0 0.0
    %1067 = vmatpush1.msra.mxu0 0.0
    %1068 = vmatprep.subr.mxu0 0.0
    %1069 = vmatpush1.msra.mxu0 0.0
    %1070 = vmatprep.subr.mxu0 0.0
    %1071 = vmatpush1.msra.mxu0 0.0
    %1072 = vmatprep.subr.mxu0 0.0
    %1073 = vmatpush1.msra.mxu0 0.0
    %1074 = vmatprep.subr.mxu0 0.0
    %1075 = vmatpush1.msra.mxu0 0.0
    %1076 = vmatprep.subr.mxu0 0.0
    %1077 = vmatpush1.msra.mxu0 0.0
    %1078 = vmatprep.subr.mxu0 0.0
    %1079 = vmatpush1.msra.mxu0 0.0
    %1080 = vmatprep.subr.mxu0 0.0
    %1081 = vmatpush1.msra.mxu0 0.0
    %1082 = vmatprep.subr.mxu0 0.0
    %1083 = vmatpush1.msra.mxu0 0.0
    %1084 = vmatprep.subr.mxu0 0.0
    %1085 = vmatpush1.msra.mxu0 0.0
    %1086 = vmatprep.subr.mxu0 0.0
    %1087 = vmatpush1.msra.mxu0 0.0
    %1088 = vmatprep.subr.mxu0 0.0
    %1089 = vmatpush1.msra.mxu0 0.0
    %1090 = vmatprep.subr.mxu0 0.0
    %1091 = vmatpush1.msra.mxu0 0.0
    %1092 = vmatprep.subr.mxu0 0.0
    %1093 = vmatpush1.msra.mxu0 0.0
    %1094 = vmatprep.subr.mxu0 0.0
    %1095 = vmatpush1.msra.mxu0 0.0
    %1096 = vmatprep.subr.mxu0 0.0
    %1097 = vmatpush1.msra.mxu0 0.0
    %1098 = vmatprep.subr.mxu0 0.0
    %1099 = vmatpush1.msra.mxu0 0.0
    %1100 = vmatprep.subr.mxu0 0.0
    %1101 = vmatpush1.msra.mxu0 0.0
    %1102 = vmatprep.subr.mxu0 0.0
    %1103 = vmatpush1.msra.mxu0 0.0
    %1104 = vmatprep.subr.mxu0 0.0
    %1105 = vmatpush1.msra.mxu0 0.0
    %1106 = vmatprep.subr.mxu0 0.0
    %1107 = vmatpush1.msra.mxu0 0.0
    %1108 = vmatprep.subr.mxu0 0.0
    %1109 = vmatpush1.msra.mxu0 0.0
    %1110 = vmatprep.subr.mxu0 0.0
    %1111 = vmatpush1.msra.mxu0 0.0
    %1112 = vmatprep.subr.mxu0 0.0
    %1113 = vmatpush1.msra.mxu0 0.0
    %1114 = vmatprep.mubr.f32.mxu0 0.0
    %1115 = vmatmul.mubr.f32.gmra.mrb[0].mxu0 %v1045
    %v1116 = vpop.f32.mrb[0].mxu0
    %v1117 = vadd.f32 0.0, %v1116
    %v1118 = vpop.f32.mrb[0].mxu0
    %1119 = vmatprep.mubr.f32.mxu0 0.0
    %1120 = vmatmul.mubr.f32.gmra.mrb[0].mxu0 %v1048
    %v1121 = vpop.f32.mrb[0].mxu0
    %v1122 = vadd.f32 0.0, %v1121
    %v1123 = vpop.f32.mrb[0].mxu0
    %1124 = vdwg.mxu0
    %1127 = vrot.lane.b32.xlu0 %v403, 120
    %v1128 = vpop.permute.xlu0 %1127
    %1129 = vrot.lane.b32.xlu0 %v408, 120
    %v1130 = vpop.permute.xlu0 %1129
    %v1134 = vsel %vm590, %v1029, 0
    %v1137 = vsel %vm590, %v1030, 0
    %1139 = vmatprep.subr.mxu0 0.0
    %1140 = vmatpush1.msra.mxu0 %v1128
    %1141 = vmatprep.subr.mxu0 0.0
    %1142 = vmatpush1.msra.mxu0 %v1130
    %1143 = vmatprep.subr.mxu0 0.0
    %1144 = vmatpush1.msra.mxu0 0.0
    %1145 = vmatprep.subr.mxu0 0.0
    %1146 = vmatpush1.msra.mxu0 0.0
    %1147 = vmatprep.subr.mxu0 0.0
    %1148 = vmatpush1.msra.mxu0 0.0
    %1149 = vmatprep.subr.mxu0 0.0
    %1150 = vmatpush1.msra.mxu0 0.0
    %1151 = vmatprep.subr.mxu0 0.0
    %1152 = vmatpush1.msra.mxu0 0.0
    %1153 = vmatprep.subr.mxu0 0.0
    %1154 = vmatpush1.msra.mxu0 0.0
    %1155 = vmatprep.subr.mxu0 0.0
    %1156 = vmatpush1.msra.mxu0 0.0
    %1157 = vmatprep.subr.mxu0 0.0
    %1158 = vmatpush1.msra.mxu0 0.0
    %1159 = vmatprep.subr.mxu0 0.0
    %1160 = vmatpush1.msra.mxu0 0.0
    %1161 = vmatprep.subr.mxu0 0.0
    %1162 = vmatpush1.msra.mxu0 0.0
    %1163 = vmatprep.subr.mxu0 0.0
    %1164 = vmatpush1.msra.mxu0 0.0
    %1165 = vmatprep.subr.mxu0 0.0
    %1166 = vmatpush1.msra.mxu0 0.0
    %1167 = vmatprep.subr.mxu0 0.0
    %1168 = vmatpush1.msra.mxu0 0.0
    %1169 = vmatprep.subr.mxu0 0.0
    %1170 = vmatpush1.msra.mxu0 0.0
    %1171 = vmatprep.subr.mxu0 0.0
    %1172 = vmatpush1.msra.mxu0 0.0
    %1173 = vmatprep.subr.mxu0 0.0
    %1174 = vmatpush1.msra.mxu0 0.0
    %1175 = vmatprep.subr.mxu0 0.0
    %1176 = vmatpush1.msra.mxu0 0.0
    %1177 = vmatprep.subr.mxu0 0.0
    %1178 = vmatpush1.msra.mxu0 0.0
    %1179 = vmatprep.subr.mxu0 0.0
    %1180 = vmatpush1.msra.mxu0 0.0
    %1181 = vmatprep.subr.mxu0 0.0
    %1182 = vmatpush1.msra.mxu0 0.0
    %1183 = vmatprep.subr.mxu0 0.0
    %1184 = vmatpush1.msra.mxu0 0.0
    %1185 = vmatprep.subr.mxu0 0.0
    %1186 = vmatpush1.msra.mxu0 0.0
    %1187 = vmatprep.subr.mxu0 0.0
    %1188 = vmatpush1.msra.mxu0 0.0
    %1189 = vmatprep.subr.mxu0 0.0
    %1190 = vmatpush1.msra.mxu0 0.0
    %1191 = vmatprep.subr.mxu0 0.0
    %1192 = vmatpush1.msra.mxu0 0.0
    %1193 = vmatprep.subr.mxu0 0.0
    %1194 = vmatpush1.msra.mxu0 0.0
    %1195 = vmatprep.subr.mxu0 0.0
    %1196 = vmatpush1.msra.mxu0 0.0
    %1197 = vmatprep.subr.mxu0 0.0
    %1198 = vmatpush1.msra.mxu0 0.0
    %1199 = vmatprep.subr.mxu0 0.0
    %1200 = vmatpush1.msra.mxu0 0.0
    %1201 = vmatprep.subr.mxu0 0.0
    %1202 = vmatpush1.msra.mxu0 0.0
    %1203 = vmatprep.mubr.f32.mxu0 0.0
    %1204 = vmatmul.mubr.f32.gmra.mrb[0].mxu0 %v1134
    %v1205 = vpop.f32.mrb[0].mxu0
    %v1206 = vadd.f32 0.0, %v1205
    %v1207 = vpop.f32.mrb[0].mxu0
    %1208 = vmatprep.mubr.f32.mxu0 0.0
    %1209 = vmatmul.mubr.f32.gmra.mrb[0].mxu0 %v1137
    %v1210 = vpop.f32.mrb[0].mxu0
    %v1211 = vadd.f32 0.0, %v1210
    %v1212 = vpop.f32.mrb[0].mxu0
    %1213 = vdwg.mxu0
    %1218 = vrot.lane.b32.xlu0 %v1117, 8
    %v1219 = vpop.permute.xlu0 %1218
    %1220 = vrot.lane.b32.xlu0 %v1122, 8
    %v1221 = vpop.permute.xlu0 %1220
    %1222 = vrot.lane.b32.xlu0 %v1206, 8
    %v1223 = vpop.permute.xlu0 %1222
    %1224 = vrot.lane.b32.xlu0 %v1211, 8
    %v1225 = vpop.permute.xlu0 %1224
    %vm1230 = vcmask 130112
    %1231 = vst.msk [vmem:[#allocation2] sm:$0xff] %vm1230, %v1219
    %1232 = vst.msk [vmem:[#allocation2 + $0x8] sm:$0xff] %vm1230, %v1221
    %1233 = vst.msk [vmem:[#allocation2 + $0x10] sm:$0xff] %vm1230, %v1223
    %1234 = vst.msk [vmem:[#allocation2 + $0x18] sm:$0xff] %vm1230, %v1225
    %1235 = vrot.lane.b32.xlu0 %v411, 112
    %v1236 = vpop.permute.xlu0 %1235
    %1237 = vrot.lane.b32.xlu0 %v412, 112
    %v1238 = vpop.permute.xlu0 %1237
    %1239 = vrot.lane.b32.xlu0 %v297, 112
    %v1240 = vpop.permute.xlu0 %1239
    %1241 = vrot.lane.b32.xlu0 %v302, 112
    %v1242 = vpop.permute.xlu0 %1241
    %v1243 = vsel %vm415, %v1236, 0
    %v1245 = vsel %vm415, %v1238, 0
    %v1247 = vsel %vm415, %v1240, 0
    %v1249 = vsel %vm415, %v1242, 0
    %1251 = vmatprep.subr.mxu0 0.0
    %1252 = vmatpush1.xpose.msra.mxu0 %v1247
    %1253 = vmatprep.subr.mxu0 0.0
    %1254 = vmatpush1.xpose.msra.mxu0 %v1249
    %1255 = vmatprep.subr.mxu0 0.0
    %1256 = vmatpush1.xpose.msra.mxu0 0.0
    %1257 = vmatprep.subr.mxu0 0.0
    %1258 = vmatpush1.xpose.msra.mxu0 0.0
    %1259 = vmatprep.subr.mxu0 0.0
    %1260 = vmatpush1.xpose.msra.mxu0 0.0
    %1261 = vmatprep.subr.mxu0 0.0
    %1262 = vmatpush1.xpose.msra.mxu0 0.0
    %1263 = vmatprep.subr.mxu0 0.0
    %1264 = vmatpush1.xpose.msra.mxu0 0.0
    %1265 = vmatprep.subr.mxu0 0.0
    %1266 = vmatpush1.xpose.msra.mxu0 0.0
    %1267 = vmatprep.subr.mxu0 0.0
    %1268 = vmatpush1.xpose.msra.mxu0 0.0
    %1269 = vmatprep.subr.mxu0 0.0
    %1270 = vmatpush1.xpose.msra.mxu0 0.0
    %1271 = vmatprep.subr.mxu0 0.0
    %1272 = vmatpush1.xpose.msra.mxu0 0.0
    %1273 = vmatprep.subr.mxu0 0.0
    %1274 = vmatpush1.xpose.msra.mxu0 0.0
    %1275 = vmatprep.subr.mxu0 0.0
    %1276 = vmatpush1.xpose.msra.mxu0 0.0
    %1277 = vmatprep.subr.mxu0 0.0
    %1278 = vmatpush1.xpose.msra.mxu0 0.0
    %1279 = vmatprep.subr.mxu0 0.0
    %1280 = vmatpush1.xpose.msra.mxu0 0.0
    %1281 = vmatprep.subr.mxu0 0.0
    %1282 = vmatpush1.xpose.msra.mxu0 0.0
    %1283 = vmatprep.subr.mxu0 0.0
    %1284 = vmatpush1.xpose.msra.mxu0 0.0
    %1285 = vmatprep.subr.mxu0 0.0
    %1286 = vmatpush1.xpose.msra.mxu0 0.0
    %1287 = vmatprep.subr.mxu0 0.0
    %1288 = vmatpush1.xpose.msra.mxu0 0.0
    %1289 = vmatprep.subr.mxu0 0.0
    %1290 = vmatpush1.xpose.msra.mxu0 0.0
    %1291 = vmatprep.subr.mxu0 0.0
    %1292 = vmatpush1.xpose.msra.mxu0 0.0
    %1293 = vmatprep.subr.mxu0 0.0
    %1294 = vmatpush1.xpose.msra.mxu0 0.0
    %1295 = vmatprep.subr.mxu0 0.0
    %1296 = vmatpush1.xpose.msra.mxu0 0.0
    %1297 = vmatprep.subr.mxu0 0.0
    %1298 = vmatpush1.xpose.msra.mxu0 0.0
    %1299 = vmatprep.subr.mxu0 0.0
    %1300 = vmatpush1.xpose.msra.mxu0 0.0
    %1301 = vmatprep.subr.mxu0 0.0
    %1302 = vmatpush1.xpose.msra.mxu0 0.0
    %1303 = vmatprep.subr.mxu0 0.0
    %1304 = vmatpush1.xpose.msra.mxu0 0.0
    %1305 = vmatprep.subr.mxu0 0.0
    %1306 = vmatpush1.xpose.msra.mxu0 0.0
    %1307 = vmatprep.subr.mxu0 0.0
    %1308 = vmatpush1.xpose.msra.mxu0 0.0
    %1309 = vmatprep.subr.mxu0 0.0
    %1310 = vmatpush1.xpose.msra.mxu0 0.0
    %1311 = vmatprep.subr.mxu0 0.0
    %1312 = vmatpush1.xpose.msra.mxu0 0.0
    %1313 = vmatprep.subr.mxu0 0.0
    %1314 = vmatpush1.xpose.msra.mxu0 0.0
    %1315 = vmatprep.mubr.f32.mxu0 0.0
    %1316 = vmatmul.mubr.f32.gmra.mrb[0].mxu0 %v1243
    %v1317 = vpop.f32.mrb[0].mxu0
    %v1318 = vadd.f32 0.0, %v1317
    %v1319 = vpop.f32.mrb[0].mxu0
    %1320 = vmatprep.mubr.f32.mxu0 0.0
    %1321 = vmatmul.mubr.f32.gmra.mrb[0].mxu0 %v1245
    %v1322 = vpop.f32.mrb[0].mxu0
    %v1323 = vadd.f32 0.0, %v1322
    %v1324 = vpop.f32.mrb[0].mxu0
    %1325 = vdwg.mxu0
    %1326 = vrot.lane.b32.xlu0 %v413, 112
    %v1327 = vpop.permute.xlu0 %1326
    %1328 = vrot.lane.b32.xlu0 %v414, 112
    %v1329 = vpop.permute.xlu0 %1328
    %1330 = vrot.lane.b32.xlu0 %v307, 112
    %v1331 = vpop.permute.xlu0 %1330
    %1332 = vrot.lane.b32.xlu0 %v312, 112
    %v1333 = vpop.permute.xlu0 %1332
    %v1334 = vsel %vm415, %v1327, 0
    %v1336 = vsel %vm415, %v1329, 0
    %v1338 = vsel %vm415, %v1331, 0
    %v1340 = vsel %vm415, %v1333, 0
    %1342 = vmatprep.subr.mxu0 0.0
    %1343 = vmatpush1.xpose.msra.mxu0 %v1338
    %1344 = vmatprep.subr.mxu0 0.0
    %1345 = vmatpush1.xpose.msra.mxu0 %v1340
    %1346 = vmatprep.subr.mxu0 0.0
    %1347 = vmatpush1.xpose.msra.mxu0 0.0
    %1348 = vmatprep.subr.mxu0 0.0
    %1349 = vmatpush1.xpose.msra.mxu0 0.0
    %1350 = vmatprep.subr.mxu0 0.0
    %1351 = vmatpush1.xpose.msra.mxu0 0.0
    %1352 = vmatprep.subr.mxu0 0.0
    %1353 = vmatpush1.xpose.msra.mxu0 0.0
    %1354 = vmatprep.subr.mxu0 0.0
    %1355 = vmatpush1.xpose.msra.mxu0 0.0
    %1356 = vmatprep.subr.mxu0 0.0
    %1357 = vmatpush1.xpose.msra.mxu0 0.0
    %1358 = vmatprep.subr.mxu0 0.0
    %1359 = vmatpush1.xpose.msra.mxu0 0.0
    %1360 = vmatprep.subr.mxu0 0.0
    %1361 = vmatpush1.xpose.msra.mxu0 0.0
    %1362 = vmatprep.subr.mxu0 0.0
    %1363 = vmatpush1.xpose.msra.mxu0 0.0
    %1364 = vmatprep.subr.mxu0 0.0
    %1365 = vmatpush1.xpose.msra.mxu0 0.0
    %1366 = vmatprep.subr.mxu0 0.0
    %1367 = vmatpush1.xpose.msra.mxu0 0.0
    %1368 = vmatprep.subr.mxu0 0.0
    %1369 = vmatpush1.xpose.msra.mxu0 0.0
    %1370 = vmatprep.subr.mxu0 0.0
    %1371 = vmatpush1.xpose.msra.mxu0 0.0
    %1372 = vmatprep.subr.mxu0 0.0
    %1373 = vmatpush1.xpose.msra.mxu0 0.0
    %1374 = vmatprep.subr.mxu0 0.0
    %1375 = vmatpush1.xpose.msra.mxu0 0.0
    %1376 = vmatprep.subr.mxu0 0.0
    %1377 = vmatpush1.xpose.msra.mxu0 0.0
    %1378 = vmatprep.subr.mxu0 0.0
    %1379 = vmatpush1.xpose.msra.mxu0 0.0
    %1380 = vmatprep.subr.mxu0 0.0
    %1381 = vmatpush1.xpose.msra.mxu0 0.0
    %1382 = vmatprep.subr.mxu0 0.0
    %1383 = vmatpush1.xpose.msra.mxu0 0.0
    %1384 = vmatprep.subr.mxu0 0.0
    %1385 = vmatpush1.xpose.msra.mxu0 0.0
    %1386 = vmatprep.subr.mxu0 0.0
    %1387 = vmatpush1.xpose.msra.mxu0 0.0
    %1388 = vmatprep.subr.mxu0 0.0
    %1389 = vmatpush1.xpose.msra.mxu0 0.0
    %1390 = vmatprep.subr.mxu0 0.0
    %1391 = vmatpush1.xpose.msra.mxu0 0.0
    %1392 = vmatprep.subr.mxu0 0.0
    %1393 = vmatpush1.xpose.msra.mxu0 0.0
    %1394 = vmatprep.subr.mxu0 0.0
    %1395 = vmatpush1.xpose.msra.mxu0 0.0
    %1396 = vmatprep.subr.mxu0 0.0
    %1397 = vmatpush1.xpose.msra.mxu0 0.0
    %1398 = vmatprep.subr.mxu0 0.0
    %1399 = vmatpush1.xpose.msra.mxu0 0.0
    %1400 = vmatprep.subr.mxu0 0.0
    %1401 = vmatpush1.xpose.msra.mxu0 0.0
    %1402 = vmatprep.subr.mxu0 0.0
    %1403 = vmatpush1.xpose.msra.mxu0 0.0
    %1404 = vmatprep.subr.mxu0 0.0
    %1405 = vmatpush1.xpose.msra.mxu0 0.0
    %1406 = vmatprep.mubr.f32.mxu0 0.0
    %1407 = vmatmul.mubr.f32.gmra.mrb[0].mxu0 %v1334
    %v1408 = vpop.f32.mrb[0].mxu0
    %v1409 = vadd.f32 0.0, %v1408
    %v1410 = vpop.f32.mrb[0].mxu0
    %1411 = vmatprep.mubr.f32.mxu0 0.0
    %1412 = vmatmul.mubr.f32.gmra.mrb[0].mxu0 %v1336
    %v1413 = vpop.f32.mrb[0].mxu0
    %v1414 = vadd.f32 0.0, %v1413
    %v1415 = vpop.f32.mrb[0].mxu0
    %1416 = vdwg.mxu0
    %v1417 = vsel %vm590, %v1318, -inf
    %1418 = vmax.xlane.f32.xlu0 %v1417
    %v1419 = vpop.xlane.xlu0 %1418
    %v1420 = vsel %vm590, %v1323, -inf
    %1421 = vmax.xlane.f32.xlu0 %v1420
    %v1422 = vpop.xlane.xlu0 %1421
    %v1423 = vsel %vm590, %v1409, -inf
    %1424 = vmax.xlane.f32.xlu0 %v1423
    %v1425 = vpop.xlane.xlu0 %1424
    %v1426 = vsel %vm590, %v1414, -inf
    %1427 = vmax.xlane.f32.xlu0 %v1426
    %v1428 = vpop.xlane.xlu0 %1427
    %v1429 = vsub.f32 %v1318, %v1419
    %v1430 = vsub.f32 %v1323, %v1422
    %v1431 = vsub.f32 %v1409, %v1425
    %v1432 = vsub.f32 %v1414, %v1428
    %v1433 = vmul.f32 %v1429, 1.442695
    %v1434 = vpow.pop %v1433
    %v1435 = vmul.f32 %v1430, 1.442695
    %v1436 = vpow.pop %v1435
    %v1437 = vmul.f32 %v1431, 1.442695
    %v1438 = vpow.pop %v1437
    %v1439 = vmul.f32 %v1432, 1.442695
    %v1440 = vpow.pop %v1439
    %v1441 = vsel %vm590, %v1434, 0.0
    %1442 = vadd.xlane.f32.xlu0 %v1441
    %v1443 = vpop.xlane.xlu0 %1442
    %v1444 = vsel %vm590, %v1436, 0.0
    %1445 = vadd.xlane.f32.xlu0 %v1444
    %v1446 = vpop.xlane.xlu0 %1445
    %v1447 = vsel %vm590, %v1438, 0.0
    %1448 = vadd.xlane.f32.xlu0 %v1447
    %v1449 = vpop.xlane.xlu0 %1448
    %v1450 = vsel %vm590, %v1440, 0.0
    %1451 = vadd.xlane.f32.xlu0 %v1450
    %v1452 = vpop.xlane.xlu0 %1451
    %v1453 = vrcp.pop %v1443
    %v1454 = vrcp.pop %v1446
    %v1455 = vrcp.pop %v1449
    %v1456 = vrcp.pop %v1452
    %v1457 = vmul.f32 %v1434, %v1453
    %v1458 = vmul.f32 %v1436, %v1454
    %v1459 = vmul.f32 %v1438, %v1455
    %v1460 = vmul.f32 %v1440, %v1456
    %s1461 = scalar_lea.vmem [#allocation12], 32
    %1462 = vst.msk [vmem:[%s1461] sm:$0xff] %vm590, %v1457
    %1463 = vst.msk [vmem:[%s1461 + $0x8] sm:$0xff] %vm590, %v1458
    %1464 = vst.msk [vmem:[%s1461 + $0x40] sm:$0xff] %vm590, %v1459
    %1465 = vst.msk [vmem:[%s1461 + $0x48] sm:$0xff] %vm590, %v1460
    %1466 = vrot.lane.b32.xlu0 %v393, 112
    %v1467 = vpop.permute.xlu0 %1466
    %1468 = vrot.lane.b32.xlu0 %v398, 112
    %v1469 = vpop.permute.xlu0 %1468
    %v1473 = vsel %vm590, %v1457, 0
    %v1476 = vsel %vm590, %v1458, 0
    %1478 = vmatprep.subr.mxu0 0.0
    %1479 = vmatpush1.msra.mxu0 %v1467
    %1480 = vmatprep.subr.mxu0 0.0
    %1481 = vmatpush1.msra.mxu0 %v1469
    %1482 = vmatprep.subr.mxu0 0.0
    %1483 = vmatpush1.msra.mxu0 0.0
    %1484 = vmatprep.subr.mxu0 0.0
    %1485 = vmatpush1.msra.mxu0 0.0
    %1486 = vmatprep.subr.mxu0 0.0
    %1487 = vmatpush1.msra.mxu0 0.0
    %1488 = vmatprep.subr.mxu0 0.0
    %1489 = vmatpush1.msra.mxu0 0.0
    %1490 = vmatprep.subr.mxu0 0.0
    %1491 = vmatpush1.msra.mxu0 0.0
    %1492 = vmatprep.subr.mxu0 0.0
    %1493 = vmatpush1.msra.mxu0 0.0
    %1494 = vmatprep.subr.mxu0 0.0
    %1495 = vmatpush1.msra.mxu0 0.0
    %1496 = vmatprep.subr.mxu0 0.0
    %1497 = vmatpush1.msra.mxu0 0.0
    %1498 = vmatprep.subr.mxu0 0.0
    %1499 = vmatpush1.msra.mxu0 0.0
    %1500 = vmatprep.subr.mxu0 0.0
    %1501 = vmatpush1.msra.mxu0 0.0
    %1502 = vmatprep.subr.mxu0 0.0
    %1503 = vmatpush1.msra.mxu0 0.0
    %1504 = vmatprep.subr.mxu0 0.0
    %1505 = vmatpush1.msra.mxu0 0.0
    %1506 = vmatprep.subr.mxu0 0.0
    %1507 = vmatpush1.msra.mxu0 0.0
    %1508 = vmatprep.subr.mxu0 0.0
    %1509 = vmatpush1.msra.mxu0 0.0
    %1510 = vmatprep.subr.mxu0 0.0
    %1511 = vmatpush1.msra.mxu0 0.0
    %1512 = vmatprep.subr.mxu0 0.0
    %1513 = vmatpush1.msra.mxu0 0.0
    %1514 = vmatprep.subr.mxu0 0.0
    %1515 = vmatpush1.msra.mxu0 0.0
    %1516 = vmatprep.subr.mxu0 0.0
    %1517 = vmatpush1.msra.mxu0 0.0
    %1518 = vmatprep.subr.mxu0 0.0
    %1519 = vmatpush1.msra.mxu0 0.0
    %1520 = vmatprep.subr.mxu0 0.0
    %1521 = vmatpush1.msra.mxu0 0.0
    %1522 = vmatprep.subr.mxu0 0.0
    %1523 = vmatpush1.msra.mxu0 0.0
    %1524 = vmatprep.subr.mxu0 0.0
    %1525 = vmatpush1.msra.mxu0 0.0
    %1526 = vmatprep.subr.mxu0 0.0
    %1527 = vmatpush1.msra.mxu0 0.0
    %1528 = vmatprep.subr.mxu0 0.0
    %1529 = vmatpush1.msra.mxu0 0.0
    %1530 = vmatprep.subr.mxu0 0.0
    %1531 = vmatpush1.msra.mxu0 0.0
    %1532 = vmatprep.subr.mxu0 0.0
    %1533 = vmatpush1.msra.mxu0 0.0
    %1534 = vmatprep.subr.mxu0 0.0
    %1535 = vmatpush1.msra.mxu0 0.0
    %1536 = vmatprep.subr.mxu0 0.0
    %1537 = vmatpush1.msra.mxu0 0.0
    %1538 = vmatprep.subr.mxu0 0.0
    %1539 = vmatpush1.msra.mxu0 0.0
    %1540 = vmatprep.subr.mxu0 0.0
    %1541 = vmatpush1.msra.mxu0 0.0
    %1542 = vmatprep.mubr.f32.mxu0 0.0
    %1543 = vmatmul.mubr.f32.gmra.mrb[0].mxu0 %v1473
    %v1544 = vpop.f32.mrb[0].mxu0
    %v1545 = vadd.f32 0.0, %v1544
    %v1546 = vpop.f32.mrb[0].mxu0
    %1547 = vmatprep.mubr.f32.mxu0 0.0
    %1548 = vmatmul.mubr.f32.gmra.mrb[0].mxu0 %v1476
    %v1549 = vpop.f32.mrb[0].mxu0
    %v1550 = vadd.f32 0.0, %v1549
    %v1551 = vpop.f32.mrb[0].mxu0
    %1552 = vdwg.mxu0
    %1553 = vrot.lane.b32.xlu0 %v403, 112
    %v1554 = vpop.permute.xlu0 %1553
    %1555 = vrot.lane.b32.xlu0 %v408, 112
    %v1556 = vpop.permute.xlu0 %1555
    %v1560 = vsel %vm590, %v1459, 0
    %v1563 = vsel %vm590, %v1460, 0
    %1565 = vmatprep.subr.mxu0 0.0
    %1566 = vmatpush1.msra.mxu0 %v1554
    %1567 = vmatprep.subr.mxu0 0.0
    %1568 = vmatpush1.msra.mxu0 %v1556
    %1569 = vmatprep.subr.mxu0 0.0
    %1570 = vmatpush1.msra.mxu0 0.0
    %1571 = vmatprep.subr.mxu0 0.0
    %1572 = vmatpush1.msra.mxu0 0.0
    %1573 = vmatprep.subr.mxu0 0.0
    %1574 = vmatpush1.msra.mxu0 0.0
    %1575 = vmatprep.subr.mxu0 0.0
    %1576 = vmatpush1.msra.mxu0 0.0
    %1577 = vmatprep.subr.mxu0 0.0
    %1578 = vmatpush1.msra.mxu0 0.0
    %1579 = vmatprep.subr.mxu0 0.0
    %1580 = vmatpush1.msra.mxu0 0.0
    %1581 = vmatprep.subr.mxu0 0.0
    %1582 = vmatpush1.msra.mxu0 0.0
    %1583 = vmatprep.subr.mxu0 0.0
    %1584 = vmatpush1.msra.mxu0 0.0
    %1585 = vmatprep.subr.mxu0 0.0
    %1586 = vmatpush1.msra.mxu0 0.0
    %1587 = vmatprep.subr.mxu0 0.0
    %1588 = vmatpush1.msra.mxu0 0.0
    %1589 = vmatprep.subr.mxu0 0.0
    %1590 = vmatpush1.msra.mxu0 0.0
    %1591 = vmatprep.subr.mxu0 0.0
    %1592 = vmatpush1.msra.mxu0 0.0
    %1593 = vmatprep.subr.mxu0 0.0
    %1594 = vmatpush1.msra.mxu0 0.0
    %1595 = vmatprep.subr.mxu0 0.0
    %1596 = vmatpush1.msra.mxu0 0.0
    %1597 = vmatprep.subr.mxu0 0.0
    %1598 = vmatpush1.msra.mxu0 0.0
    %1599 = vmatprep.subr.mxu0 0.0
    %1600 = vmatpush1.msra.mxu0 0.0
    %1601 = vmatprep.subr.mxu0 0.0
    %1602 = vmatpush1.msra.mxu0 0.0
    %1603 = vmatprep.subr.mxu0 0.0
    %1604 = vmatpush1.msra.mxu0 0.0
    %1605 = vmatprep.subr.mxu0 0.0
    %1606 = vmatpush1.msra.mxu0 0.0
    %1607 = vmatprep.subr.mxu0 0.0
    %1608 = vmatpush1.msra.mxu0 0.0
    %1609 = vmatprep.subr.mxu0 0.0
    %1610 = vmatpush1.msra.mxu0 0.0
    %1611 = vmatprep.subr.mxu0 0.0
    %1612 = vmatpush1.msra.mxu0 0.0
    %1613 = vmatprep.subr.mxu0 0.0
    %1614 = vmatpush1.msra.mxu0 0.0
    %1615 = vmatprep.subr.mxu0 0.0
    %1616 = vmatpush1.msra.mxu0 0.0
    %1617 = vmatprep.subr.mxu0 0.0
    %1618 = vmatpush1.msra.mxu0 0.0
    %1619 = vmatprep.subr.mxu0 0.0
    %1620 = vmatpush1.msra.mxu0 0.0
    %1621 = vmatprep.subr.mxu0 0.0
    %1622 = vmatpush1.msra.mxu0 0.0
    %1623 = vmatprep.subr.mxu0 0.0
    %1624 = vmatpush1.msra.mxu0 0.0
    %1625 = vmatprep.subr.mxu0 0.0
    %1626 = vmatpush1.msra.mxu0 0.0
    %1627 = vmatprep.subr.mxu0 0.0
    %1628 = vmatpush1.msra.mxu0 0.0
    %1629 = vmatprep.mubr.f32.mxu0 0.0
    %1630 = vmatmul.mubr.f32.gmra.mrb[0].mxu0 %v1560
    %v1631 = vpop.f32.mrb[0].mxu0
    %v1632 = vadd.f32 0.0, %v1631
    %v1633 = vpop.f32.mrb[0].mxu0
    %1634 = vmatprep.mubr.f32.mxu0 0.0
    %1635 = vmatmul.mubr.f32.gmra.mrb[0].mxu0 %v1563
    %v1636 = vpop.f32.mrb[0].mxu0
    %v1637 = vadd.f32 0.0, %v1636
    %v1638 = vpop.f32.mrb[0].mxu0
    %1639 = vdwg.mxu0
    %1644 = vrot.lane.b32.xlu0 %v1545, 16
    %v1645 = vpop.permute.xlu0 %1644
    %1646 = vrot.lane.b32.xlu0 %v1550, 16
    %v1647 = vpop.permute.xlu0 %1646
    %1648 = vrot.lane.b32.xlu0 %v1632, 16
    %v1649 = vpop.permute.xlu0 %1648
    %1650 = vrot.lane.b32.xlu0 %v1637, 16
    %v1651 = vpop.permute.xlu0 %1650
    %vm1656 = vcmask 195712
    %1657 = vst.msk [vmem:[#allocation2] sm:$0xff] %vm1656, %v1645
    %1658 = vst.msk [vmem:[#allocation2 + $0x8] sm:$0xff] %vm1656, %v1647
    %1659 = vst.msk [vmem:[#allocation2 + $0x10] sm:$0xff] %vm1656, %v1649
    %1660 = vst.msk [vmem:[#allocation2 + $0x18] sm:$0xff] %vm1656, %v1651
    %1661 = vrot.lane.b32.xlu0 %v411, 104
    %v1662 = vpop.permute.xlu0 %1661
    %1663 = vrot.lane.b32.xlu0 %v412, 104
    %v1664 = vpop.permute.xlu0 %1663
    %1665 = vrot.lane.b32.xlu0 %v297, 104
    %v1666 = vpop.permute.xlu0 %1665
    %1667 = vrot.lane.b32.xlu0 %v302, 104
    %v1668 = vpop.permute.xlu0 %1667
    %v1669 = vsel %vm415, %v1662, 0
    %v1671 = vsel %vm415, %v1664, 0
    %v1673 = vsel %vm415, %v1666, 0
    %v1675 = vsel %vm415, %v1668, 0
    %1677 = vmatprep.subr.mxu0 0.0
    %1678 = vmatpush1.xpose.msra.mxu0 %v1673
    %1679 = vmatprep.subr.mxu0 0.0
    %1680 = vmatpush1.xpose.msra.mxu0 %v1675
    %1681 = vmatprep.subr.mxu0 0.0
    %1682 = vmatpush1.xpose.msra.mxu0 0.0
    %1683 = vmatprep.subr.mxu0 0.0
    %1684 = vmatpush1.xpose.msra.mxu0 0.0
    %1685 = vmatprep.subr.mxu0 0.0
    %1686 = vmatpush1.xpose.msra.mxu0 0.0
    %1687 = vmatprep.subr.mxu0 0.0
    %1688 = vmatpush1.xpose.msra.mxu0 0.0
    %1689 = vmatprep.subr.mxu0 0.0
    %1690 = vmatpush1.xpose.msra.mxu0 0.0
    %1691 = vmatprep.subr.mxu0 0.0
    %1692 = vmatpush1.xpose.msra.mxu0 0.0
    %1693 = vmatprep.subr.mxu0 0.0
    %1694 = vmatpush1.xpose.msra.mxu0 0.0
    %1695 = vmatprep.subr.mxu0 0.0
    %1696 = vmatpush1.xpose.msra.mxu0 0.0
    %1697 = vmatprep.subr.mxu0 0.0
    %1698 = vmatpush1.xpose.msra.mxu0 0.0
    %1699 = vmatprep.subr.mxu0 0.0
    %1700 = vmatpush1.xpose.msra.mxu0 0.0
    %1701 = vmatprep.subr.mxu0 0.0
    %1702 = vmatpush1.xpose.msra.mxu0 0.0
    %1703 = vmatprep.subr.mxu0 0.0
    %1704 = vmatpush1.xpose.msra.mxu0 0.0
    %1705 = vmatprep.subr.mxu0 0.0
    %1706 = vmatpush1.xpose.msra.mxu0 0.0
    %1707 = vmatprep.subr.mxu0 0.0
    %1708 = vmatpush1.xpose.msra.mxu0 0.0
    %1709 = vmatprep.subr.mxu0 0.0
    %1710 = vmatpush1.xpose.msra.mxu0 0.0
    %1711 = vmatprep.subr.mxu0 0.0
    %1712 = vmatpush1.xpose.msra.mxu0 0.0
    %1713 = vmatprep.subr.mxu0 0.0
    %1714 = vmatpush1.xpose.msra.mxu0 0.0
    %1715 = vmatprep.subr.mxu0 0.0
    %1716 = vmatpush1.xpose.msra.mxu0 0.0
    %1717 = vmatprep.subr.mxu0 0.0
    %1718 = vmatpush1.xpose.msra.mxu0 0.0
    %1719 = vmatprep.subr.mxu0 0.0
    %1720 = vmatpush1.xpose.msra.mxu0 0.0
    %1721 = vmatprep.subr.mxu0 0.0
    %1722 = vmatpush1.xpose.msra.mxu0 0.0
    %1723 = vmatprep.subr.mxu0 0.0
    %1724 = vmatpush1.xpose.msra.mxu0 0.0
    %1725 = vmatprep.subr.mxu0 0.0
    %1726 = vmatpush1.xpose.msra.mxu0 0.0
    %1727 = vmatprep.subr.mxu0 0.0
    %1728 = vmatpush1.xpose.msra.mxu0 0.0
    %1729 = vmatprep.subr.mxu0 0.0
    %1730 = vmatpush1.xpose.msra.mxu0 0.0
    %1731 = vmatprep.subr.mxu0 0.0
    %1732 = vmatpush1.xpose.msra.mxu0 0.0
    %1733 = vmatprep.subr.mxu0 0.0
    %1734 = vmatpush1.xpose.msra.mxu0 0.0
    %1735 = vmatprep.subr.mxu0 0.0
    %1736 = vmatpush1.xpose.msra.mxu0 0.0
    %1737 = vmatprep.subr.mxu0 0.0
    %1738 = vmatpush1.xpose.msra.mxu0 0.0
    %1739 = vmatprep.subr.mxu0 0.0
    %1740 = vmatpush1.xpose.msra.mxu0 0.0
    %1741 = vmatprep.mubr.f32.mxu0 0.0
    %1742 = vmatmul.mubr.f32.gmra.mrb[0].mxu0 %v1669
    %v1743 = vpop.f32.mrb[0].mxu0
    %v1744 = vadd.f32 0.0, %v1743
    %v1745 = vpop.f32.mrb[0].mxu0
    %1746 = vmatprep.mubr.f32.mxu0 0.0
    %1747 = vmatmul.mubr.f32.gmra.mrb[0].mxu0 %v1671
    %v1748 = vpop.f32.mrb[0].mxu0
    %v1749 = vadd.f32 0.0, %v1748
    %v1750 = vpop.f32.mrb[0].mxu0
    %1751 = vdwg.mxu0
    %1752 = vrot.lane.b32.xlu0 %v413, 104
    %v1753 = vpop.permute.xlu0 %1752
    %1754 = vrot.lane.b32.xlu0 %v414, 104
    %v1755 = vpop.permute.xlu0 %1754
    %1756 = vrot.lane.b32.xlu0 %v307, 104
    %v1757 = vpop.permute.xlu0 %1756
    %1758 = vrot.lane.b32.xlu0 %v312, 104
    %v1759 = vpop.permute.xlu0 %1758
    %v1760 = vsel %vm415, %v1753, 0
    %v1762 = vsel %vm415, %v1755, 0
    %v1764 = vsel %vm415, %v1757, 0
    %v1766 = vsel %vm415, %v1759, 0
    %1768 = vmatprep.subr.mxu0 0.0
    %1769 = vmatpush1.xpose.msra.mxu0 %v1764
    %1770 = vmatprep.subr.mxu0 0.0
    %1771 = vmatpush1.xpose.msra.mxu0 %v1766
    %1772 = vmatprep.subr.mxu0 0.0
    %1773 = vmatpush1.xpose.msra.mxu0 0.0
    %1774 = vmatprep.subr.mxu0 0.0
    %1775 = vmatpush1.xpose.msra.mxu0 0.0
    %1776 = vmatprep.subr.mxu0 0.0
    %1777 = vmatpush1.xpose.msra.mxu0 0.0
    %1778 = vmatprep.subr.mxu0 0.0
    %1779 = vmatpush1.xpose.msra.mxu0 0.0
    %1780 = vmatprep.subr.mxu0 0.0
    %1781 = vmatpush1.xpose.msra.mxu0 0.0
    %1782 = vmatprep.subr.mxu0 0.0
    %1783 = vmatpush1.xpose.msra.mxu0 0.0
    %1784 = vmatprep.subr.mxu0 0.0
    %1785 = vmatpush1.xpose.msra.mxu0 0.0
    %1786 = vmatprep.subr.mxu0 0.0
    %1787 = vmatpush1.xpose.msra.mxu0 0.0
    %1788 = vmatprep.subr.mxu0 0.0
    %1789 = vmatpush1.xpose.msra.mxu0 0.0
    %1790 = vmatprep.subr.mxu0 0.0
    %1791 = vmatpush1.xpose.msra.mxu0 0.0
    %1792 = vmatprep.subr.mxu0 0.0
    %1793 = vmatpush1.xpose.msra.mxu0 0.0
    %1794 = vmatprep.subr.mxu0 0.0
    %1795 = vmatpush1.xpose.msra.mxu0 0.0
    %1796 = vmatprep.subr.mxu0 0.0
    %1797 = vmatpush1.xpose.msra.mxu0 0.0
    %1798 = vmatprep.subr.mxu0 0.0
    %1799 = vmatpush1.xpose.msra.mxu0 0.0
    %1800 = vmatprep.subr.mxu0 0.0
    %1801 = vmatpush1.xpose.msra.mxu0 0.0
    %1802 = vmatprep.subr.mxu0 0.0
    %1803 = vmatpush1.xpose.msra.mxu0 0.0
    %1804 = vmatprep.subr.mxu0 0.0
    %1805 = vmatpush1.xpose.msra.mxu0 0.0
    %1806 = vmatprep.subr.mxu0 0.0
    %1807 = vmatpush1.xpose.msra.mxu0 0.0
    %1808 = vmatprep.subr.mxu0 0.0
    %1809 = vmatpush1.xpose.msra.mxu0 0.0
    %1810 = vmatprep.subr.mxu0 0.0
    %1811 = vmatpush1.xpose.msra.mxu0 0.0
    %1812 = vmatprep.subr.mxu0 0.0
    %1813 = vmatpush1.xpose.msra.mxu0 0.0
    %1814 = vmatprep.subr.mxu0 0.0
    %1815 = vmatpush1.xpose.msra.mxu0 0.0
    %1816 = vmatprep.subr.mxu0 0.0
    %1817 = vmatpush1.xpose.msra.mxu0 0.0
    %1818 = vmatprep.subr.mxu0 0.0
    %1819 = vmatpush1.xpose.msra.mxu0 0.0
    %1820 = vmatprep.subr.mxu0 0.0
    %1821 = vmatpush1.xpose.msra.mxu0 0.0
    %1822 = vmatprep.subr.mxu0 0.0
    %1823 = vmatpush1.xpose.msra.mxu0 0.0
    %1824 = vmatprep.subr.mxu0 0.0
    %1825 = vmatpush1.xpose.msra.mxu0 0.0
    %1826 = vmatprep.subr.mxu0 0.0
    %1827 = vmatpush1.xpose.msra.mxu0 0.0
    %1828 = vmatprep.subr.mxu0 0.0
    %1829 = vmatpush1.xpose.msra.mxu0 0.0
    %1830 = vmatprep.subr.mxu0 0.0
    %1831 = vmatpush1.xpose.msra.mxu0 0.0
    %1832 = vmatprep.mubr.f32.mxu0 0.0
    %1833 = vmatmul.mubr.f32.gmra.mrb[0].mxu0 %v1760
    %v1834 = vpop.f32.mrb[0].mxu0
    %v1835 = vadd.f32 0.0, %v1834
    %v1836 = vpop.f32.mrb[0].mxu0
    %1837 = vmatprep.mubr.f32.mxu0 0.0
    %1838 = vmatmul.mubr.f32.gmra.mrb[0].mxu0 %v1762
    %v1839 = vpop.f32.mrb[0].mxu0
    %v1840 = vadd.f32 0.0, %v1839
    %v1841 = vpop.f32.mrb[0].mxu0
    %1842 = vdwg.mxu0
    %v1843 = vsel %vm590, %v1744, -inf
    %1844 = vmax.xlane.f32.xlu0 %v1843
    %v1845 = vpop.xlane.xlu0 %1844
    %v1846 = vsel %vm590, %v1749, -inf
    %1847 = vmax.xlane.f32.xlu0 %v1846
    %v1848 = vpop.xlane.xlu0 %1847
    %v1849 = vsel %vm590, %v1835, -inf
    %1850 = vmax.xlane.f32.xlu0 %v1849
    %v1851 = vpop.xlane.xlu0 %1850
    %v1852 = vsel %vm590, %v1840, -inf
    %1853 = vmax.xlane.f32.xlu0 %v1852
    %v1854 = vpop.xlane.xlu0 %1853
    %v1855 = vsub.f32 %v1744, %v1845
    %v1856 = vsub.f32 %v1749, %v1848
    %v1857 = vsub.f32 %v1835, %v1851
    %v1858 = vsub.f32 %v1840, %v1854
    %v1859 = vmul.f32 %v1855, 1.442695
    %v1860 = vpow.pop %v1859
    %v1861 = vmul.f32 %v1856, 1.442695
    %v1862 = vpow.pop %v1861
    %v1863 = vmul.f32 %v1857, 1.442695
    %v1864 = vpow.pop %v1863
    %v1865 = vmul.f32 %v1858, 1.442695
    %v1866 = vpow.pop %v1865
    %v1867 = vsel %vm590, %v1860, 0.0
    %1868 = vadd.xlane.f32.xlu0 %v1867
    %v1869 = vpop.xlane.xlu0 %1868
    %v1870 = vsel %vm590, %v1862, 0.0
    %1871 = vadd.xlane.f32.xlu0 %v1870
    %v1872 = vpop.xlane.xlu0 %1871
    %v1873 = vsel %vm590, %v1864, 0.0
    %1874 = vadd.xlane.f32.xlu0 %v1873
    %v1875 = vpop.xlane.xlu0 %1874
    %v1876 = vsel %vm590, %v1866, 0.0
    %1877 = vadd.xlane.f32.xlu0 %v1876
    %v1878 = vpop.xlane.xlu0 %1877
    %v1879 = vrcp.pop %v1869
    %v1880 = vrcp.pop %v1872
    %v1881 = vrcp.pop %v1875
    %v1882 = vrcp.pop %v1878
    %v1883 = vmul.f32 %v1860, %v1879
    %v1884 = vmul.f32 %v1862, %v1880
    %v1885 = vmul.f32 %v1864, %v1881
    %v1886 = vmul.f32 %v1866, %v1882
    %s1887 = scalar_lea.vmem [#allocation12], 48
    %1888 = vst.msk [vmem:[%s1887] sm:$0xff] %vm590, %v1883
    %1889 = vst.msk [vmem:[%s1887 + $0x8] sm:$0xff] %vm590, %v1884
    %1890 = vst.msk [vmem:[%s1887 + $0x40] sm:$0xff] %vm590, %v1885
    %1891 = vst.msk [vmem:[%s1887 + $0x48] sm:$0xff] %vm590, %v1886
    %1892 = vrot.lane.b32.xlu0 %v393, 104
    %v1893 = vpop.permute.xlu0 %1892
    %1894 = vrot.lane.b32.xlu0 %v398, 104
    %v1895 = vpop.permute.xlu0 %1894
    %v1899 = vsel %vm590, %v1883, 0
    %v1902 = vsel %vm590, %v1884, 0
    %1904 = vmatprep.subr.mxu0 0.0
    %1905 = vmatpush1.msra.mxu0 %v1893
    %1906 = vmatprep.subr.mxu0 0.0
    %1907 = vmatpush1.msra.mxu0 %v1895
    %1908 = vmatprep.subr.mxu0 0.0
    %1909 = vmatpush1.msra.mxu0 0.0
    %1910 = vmatprep.subr.mxu0 0.0
    %1911 = vmatpush1.msra.mxu0 0.0
    %1912 = vmatprep.subr.mxu0 0.0
    %1913 = vmatpush1.msra.mxu0 0.0
    %1914 = vmatprep.subr.mxu0 0.0
    %1915 = vmatpush1.msra.mxu0 0.0
    %1916 = vmatprep.subr.mxu0 0.0
    %1917 = vmatpush1.msra.mxu0 0.0
    %1918 = vmatprep.subr.mxu0 0.0
    %1919 = vmatpush1.msra.mxu0 0.0
    %1920 = vmatprep.subr.mxu0 0.0
    %1921 = vmatpush1.msra.mxu0 0.0
    %1922 = vmatprep.subr.mxu0 0.0
    %1923 = vmatpush1.msra.mxu0 0.0
    %1924 = vmatprep.subr.mxu0 0.0
    %1925 = vmatpush1.msra.mxu0 0.0
    %1926 = vmatprep.subr.mxu0 0.0
    %1927 = vmatpush1.msra.mxu0 0.0
    %1928 = vmatprep.subr.mxu0 0.0
    %1929 = vmatpush1.msra.mxu0 0.0
    %1930 = vmatprep.subr.mxu0 0.0
    %1931 = vmatpush1.msra.mxu0 0.0
    %1932 = vmatprep.subr.mxu0 0.0
    %1933 = vmatpush1.msra.mxu0 0.0
    %1934 = vmatprep.subr.mxu0 0.0
    %1935 = vmatpush1.msra.mxu0 0.0
    %1936 = vmatprep.subr.mxu0 0.0
    %1937 = vmatpush1.msra.mxu0 0.0
    %1938 = vmatprep.subr.mxu0 0.0
    %1939 = vmatpush1.msra.mxu0 0.0
    %1940 = vmatprep.subr.mxu0 0.0
    %1941 = vmatpush1.msra.mxu0 0.0
    %1942 = vmatprep.subr.mxu0 0.0
    %1943 = vmatpush1.msra.mxu0 0.0
    %1944 = vmatprep.subr.mxu0 0.0
    %1945 = vmatpush1.msra.mxu0 0.0
    %1946 = vmatprep.subr.mxu0 0.0
    %1947 = vmatpush1.msra.mxu0 0.0
    %1948 = vmatprep.subr.mxu0 0.0
    %1949 = vmatpush1.msra.mxu0 0.0
    %1950 = vmatprep.subr.mxu0 0.0
    %1951 = vmatpush1.msra.mxu0 0.0
    %1952 = vmatprep.subr.mxu0 0.0
    %1953 = vmatpush1.msra.mxu0 0.0
    %1954 = vmatprep.subr.mxu0 0.0
    %1955 = vmatpush1.msra.mxu0 0.0
    %1956 = vmatprep.subr.mxu0 0.0
    %1957 = vmatpush1.msra.mxu0 0.0
    %1958 = vmatprep.subr.mxu0 0.0
    %1959 = vmatpush1.msra.mxu0 0.0
    %1960 = vmatprep.subr.mxu0 0.0
    %1961 = vmatpush1.msra.mxu0 0.0
    %1962 = vmatprep.subr.mxu0 0.0
    %1963 = vmatpush1.msra.mxu0 0.0
    %1964 = vmatprep.subr.mxu0 0.0
    %1965 = vmatpush1.msra.mxu0 0.0
    %1966 = vmatprep.subr.mxu0 0.0
    %1967 = vmatpush1.msra.mxu0 0.0
    %1968 = vmatprep.mubr.f32.mxu0 0.0
    %1969 = vmatmul.mubr.f32.gmra.mrb[0].mxu0 %v1899
    %v1970 = vpop.f32.mrb[0].mxu0
    %v1971 = vadd.f32 0.0, %v1970
    %v1972 = vpop.f32.mrb[0].mxu0
    %1973 = vmatprep.mubr.f32.mxu0 0.0
    %1974 = vmatmul.mubr.f32.gmra.mrb[0].mxu0 %v1902
    %v1975 = vpop.f32.mrb[0].mxu0
    %v1976 = vadd.f32 0.0, %v1975
    %v1977 = vpop.f32.mrb[0].mxu0
    %1978 = vdwg.mxu0
    %1979 = vrot.lane.b32.xlu0 %v403, 104
    %v1980 = vpop.permute.xlu0 %1979
    %1981 = vrot.lane.b32.xlu0 %v408, 104
    %v1982 = vpop.permute.xlu0 %1981
    %v1986 = vsel %vm590, %v1885, 0
    %v1989 = vsel %vm590, %v1886, 0
    %1991 = vmatprep.subr.mxu0 0.0
    %1992 = vmatpush1.msra.mxu0 %v1980
    %1993 = vmatprep.subr.mxu0 0.0
    %1994 = vmatpush1.msra.mxu0 %v1982
    %1995 = vmatprep.subr.mxu0 0.0
    %1996 = vmatpush1.msra.mxu0 0.0
    %1997 = vmatprep.subr.mxu0 0.0
    %1998 = vmatpush1.msra.mxu0 0.0
    %1999 = vmatprep.subr.mxu0 0.0
    %2000 = vmatpush1.msra.mxu0 0.0
    %2001 = vmatprep.subr.mxu0 0.0
    %2002 = vmatpush1.msra.mxu0 0.0
    %2003 = vmatprep.subr.mxu0 0.0
    %2004 = vmatpush1.msra.mxu0 0.0
    %2005 = vmatprep.subr.mxu0 0.0
    %2006 = vmatpush1.msra.mxu0 0.0
    %2007 = vmatprep.subr.mxu0 0.0
    %2008 = vmatpush1.msra.mxu0 0.0
    %2009 = vmatprep.subr.mxu0 0.0
    %2010 = vmatpush1.msra.mxu0 0.0
    %2011 = vmatprep.subr.mxu0 0.0
    %2012 = vmatpush1.msra.mxu0 0.0
    %2013 = vmatprep.subr.mxu0 0.0
    %2014 = vmatpush1.msra.mxu0 0.0
    %2015 = vmatprep.subr.mxu0 0.0
    %2016 = vmatpush1.msra.mxu0 0.0
    %2017 = vmatprep.subr.mxu0 0.0
    %2018 = vmatpush1.msra.mxu0 0.0
    %2019 = vmatprep.subr.mxu0 0.0
    %2020 = vmatpush1.msra.mxu0 0.0
    %2021 = vmatprep.subr.mxu0 0.0
    %2022 = vmatpush1.msra.mxu0 0.0
    %2023 = vmatprep.subr.mxu0 0.0
    %2024 = vmatpush1.msra.mxu0 0.0
    %2025 = vmatprep.subr.mxu0 0.0
    %2026 = vmatpush1.msra.mxu0 0.0
    %2027 = vmatprep.subr.mxu0 0.0
    %2028 = vmatpush1.msra.mxu0 0.0
    %2029 = vmatprep.subr.mxu0 0.0
    %2030 = vmatpush1.msra.mxu0 0.0
    %2031 = vmatprep.subr.mxu0 0.0
    %2032 = vmatpush1.msra.mxu0 0.0
    %2033 = vmatprep.subr.mxu0 0.0
    %2034 = vmatpush1.msra.mxu0 0.0
    %2035 = vmatprep.subr.mxu0 0.0
    %2036 = vmatpush1.msra.mxu0 0.0
    %2037 = vmatprep.subr.mxu0 0.0
    %2038 = vmatpush1.msra.mxu0 0.0
    %2039 = vmatprep.subr.mxu0 0.0
    %2040 = vmatpush1.msra.mxu0 0.0
    %2041 = vmatprep.subr.mxu0 0.0
    %2042 = vmatpush1.msra.mxu0 0.0
    %2043 = vmatprep.subr.mxu0 0.0
    %2044 = vmatpush1.msra.mxu0 0.0
    %2045 = vmatprep.subr.mxu0 0.0
    %2046 = vmatpush1.msra.mxu0 0.0
    %2047 = vmatprep.subr.mxu0 0.0
    %2048 = vmatpush1.msra.mxu0 0.0
    %2049 = vmatprep.subr.mxu0 0.0
    %2050 = vmatpush1.msra.mxu0 0.0
    %2051 = vmatprep.subr.mxu0 0.0
    %2052 = vmatpush1.msra.mxu0 0.0
    %2053 = vmatprep.subr.mxu0 0.0
    %2054 = vmatpush1.msra.mxu0 0.0
    %2055 = vmatprep.mubr.f32.mxu0 0.0
    %2056 = vmatmul.mubr.f32.gmra.mrb[0].mxu0 %v1986
    %v2057 = vpop.f32.mrb[0].mxu0
    %v2058 = vadd.f32 0.0, %v2057
    %v2059 = vpop.f32.mrb[0].mxu0
    %2060 = vmatprep.mubr.f32.mxu0 0.0
    %2061 = vmatmul.mubr.f32.gmra.mrb[0].mxu0 %v1989
    %v2062 = vpop.f32.mrb[0].mxu0
    %v2063 = vadd.f32 0.0, %v2062
    %v2064 = vpop.f32.mrb[0].mxu0
    %2065 = vdwg.mxu0
    %2070 = vrot.lane.b32.xlu0 %v1971, 24
    %v2071 = vpop.permute.xlu0 %2070
    %2072 = vrot.lane.b32.xlu0 %v1976, 24
    %v2073 = vpop.permute.xlu0 %2072
    %2074 = vrot.lane.b32.xlu0 %v2058, 24
    %v2075 = vpop.permute.xlu0 %2074
    %2076 = vrot.lane.b32.xlu0 %v2063, 24
    %v2077 = vpop.permute.xlu0 %2076
    %vm2082 = vcmask 261312
    %2083 = vst.msk [vmem:[#allocation2] sm:$0xff] %vm2082, %v2071
    %2084 = vst.msk [vmem:[#allocation2 + $0x8] sm:$0xff] %vm2082, %v2073
    %2085 = vst.msk [vmem:[#allocation2 + $0x10] sm:$0xff] %vm2082, %v2075
    %2086 = vst.msk [vmem:[#allocation2 + $0x18] sm:$0xff] %vm2082, %v2077
    %v2087 = vld [vmem:[#allocation2] sm:$0xff]
    %v2088 = vld [vmem:[#allocation2 + $0x8] sm:$0xff]
    %v2089 = vld [vmem:[#allocation2 + $0x10] sm:$0xff]
    %v2090 = vld [vmem:[#allocation2 + $0x18] sm:$0xff]
    %v2091 = vld [vmem:[#allocation8] sm:$0xff]
    %v2092 = vld [vmem:[#allocation8 + $0x8] sm:$0xff]
    %v2093 = vld [vmem:[#allocation8 + $0x10] sm:$0xff]
    %v2094 = vld [vmem:[#allocation8 + $0x18] sm:$0xff]
    %v2095 = vld [vmem:[%s9] sm:$0x1]
    %v2097 = vlaneseq
    %v2098 = vshrl.u32 %v2097, 7
    %v2099 = vsub.s32 0, %v2098
    %v2100 = vrot.slane %v2095, %v2099
    %v2103 = vsel %vm121, %v2087, 0
    %v2106 = vsel %vm121, %v2088, 0
    %v2109 = vsel %vm121, %v2089, 0
    %v2112 = vsel %vm121, %v2090, 0
    %2114 = vmatprep.subr.mxu0 0.0
    %2115 = vmatpush1.msra.mxu0 %v2091
    %2116 = vmatprep.subr.mxu0 0.0
    %2117 = vmatpush1.msra.mxu0 %v2092
    %2118 = vmatprep.subr.mxu0 0.0
    %2119 = vmatpush1.msra.mxu0 %v2093
    %2120 = vmatprep.subr.mxu0 0.0
    %2121 = vmatpush1.msra.mxu0 %v2094
    %2122 = vmatprep.subr.mxu0 0.0
    %2123 = vmatpush1.msra.mxu0 0.0
    %2124 = vmatprep.subr.mxu0 0.0
    %2125 = vmatpush1.msra.mxu0 0.0
    %2126 = vmatprep.subr.mxu0 0.0
    %2127 = vmatpush1.msra.mxu0 0.0
    %2128 = vmatprep.subr.mxu0 0.0
    %2129 = vmatpush1.msra.mxu0 0.0
    %2130 = vmatprep.subr.mxu0 0.0
    %2131 = vmatpush1.msra.mxu0 0.0
    %2132 = vmatprep.subr.mxu0 0.0
    %2133 = vmatpush1.msra.mxu0 0.0
    %2134 = vmatprep.subr.mxu0 0.0
    %2135 = vmatpush1.msra.mxu0 0.0
    %2136 = vmatprep.subr.mxu0 0.0
    %2137 = vmatpush1.msra.mxu0 0.0
    %2138 = vmatprep.subr.mxu0 0.0
    %2139 = vmatpush1.msra.mxu0 0.0
    %2140 = vmatprep.subr.mxu0 0.0
    %2141 = vmatpush1.msra.mxu0 0.0
    %2142 = vmatprep.subr.mxu0 0.0
    %2143 = vmatpush1.msra.mxu0 0.0
    %2144 = vmatprep.subr.mxu0 0.0
    %2145 = vmatpush1.msra.mxu0 0.0
    %2146 = vmatprep.subr.mxu0 0.0
    %2147 = vmatpush1.msra.mxu0 0.0
    %2148 = vmatprep.subr.mxu0 0.0
    %2149 = vmatpush1.msra.mxu0 0.0
    %2150 = vmatprep.subr.mxu0 0.0
    %2151 = vmatpush1.msra.mxu0 0.0
    %2152 = vmatprep.subr.mxu0 0.0
    %2153 = vmatpush1.msra.mxu0 0.0
    %2154 = vmatprep.subr.mxu0 0.0
    %2155 = vmatpush1.msra.mxu0 0.0
    %2156 = vmatprep.subr.mxu0 0.0
    %2157 = vmatpush1.msra.mxu0 0.0
    %2158 = vmatprep.subr.mxu0 0.0
    %2159 = vmatpush1.msra.mxu0 0.0
    %2160 = vmatprep.subr.mxu0 0.0
    %2161 = vmatpush1.msra.mxu0 0.0
    %2162 = vmatprep.subr.mxu0 0.0
    %2163 = vmatpush1.msra.mxu0 0.0
    %2164 = vmatprep.subr.mxu0 0.0
    %2165 = vmatpush1.msra.mxu0 0.0
    %2166 = vmatprep.subr.mxu0 0.0
    %2167 = vmatpush1.msra.mxu0 0.0
    %2168 = vmatprep.subr.mxu0 0.0
    %2169 = vmatpush1.msra.mxu0 0.0
    %2170 = vmatprep.subr.mxu0 0.0
    %2171 = vmatpush1.msra.mxu0 0.0
    %2172 = vmatprep.subr.mxu0 0.0
    %2173 = vmatpush1.msra.mxu0 0.0
    %2174 = vmatprep.subr.mxu0 0.0
    %2175 = vmatpush1.msra.mxu0 0.0
    %2176 = vmatprep.subr.mxu0 0.0
    %2177 = vmatpush1.msra.mxu0 0.0
    %2178 = vmatprep.mubr.f32.mxu0 0.0
    %2179 = vmatmul.mubr.f32.gmra.mrb[0].mxu0 %v2103
    %v2180 = vpop.f32.mrb[0].mxu0
    %v2181 = vadd.f32 %v2100, %v2180
    %v2182 = vpop.f32.mrb[0].mxu0
    %2183 = vmatprep.mubr.f32.mxu0 0.0
    %2184 = vmatmul.mubr.f32.gmra.mrb[0].mxu0 %v2106
    %v2185 = vpop.f32.mrb[0].mxu0
    %v2186 = vadd.f32 %v2100, %v2185
    %v2187 = vpop.f32.mrb[0].mxu0
    %2188 = vmatprep.mubr.f32.mxu0 0.0
    %2189 = vmatmul.mubr.f32.gmra.mrb[0].mxu0 %v2109
    %v2190 = vpop.f32.mrb[0].mxu0
    %v2191 = vadd.f32 %v2100, %v2190
    %v2192 = vpop.f32.mrb[0].mxu0
    %2193 = vmatprep.mubr.f32.mxu0 0.0
    %2194 = vmatmul.mubr.f32.gmra.mrb[0].mxu0 %v2112
    %v2195 = vpop.f32.mrb[0].mxu0
    %v2196 = vadd.f32 %v2100, %v2195
    %v2197 = vpop.f32.mrb[0].mxu0
    %2198 = vdwg.mxu0
    %v2199 = vld [vmem:[#allocation3] sm:$0xff]
    %v2200 = vld [vmem:[#allocation3 + $0x8] sm:$0xff]
    %v2201 = vadd.f32 %v106, %v2181
    %v2202 = vadd.f32 %v107, %v2186
    %v2203 = vadd.f32 %v108, %v2191
    %v2204 = vadd.f32 %v109, %v2196
    %v2206 = vsel %vm590, %v2199, 0
    %v2209 = vsel %vm590, %v2200, 0
    %2211 = vmatprep.subr.mxu0 0.0
    %2212 = vmatpush1.msra.mxu0 %v2201
    %2213 = vmatprep.subr.mxu0 0.0
    %2214 = vmatpush1.msra.mxu0 %v2202
    %2215 = vmatprep.subr.mxu0 0.0
    %2216 = vmatpush1.msra.mxu0 0.0
    %2217 = vmatprep.subr.mxu0 0.0
    %2218 = vmatpush1.msra.mxu0 0.0
    %2219 = vmatprep.subr.mxu0 0.0
    %2220 = vmatpush1.msra.mxu0 0.0
    %2221 = vmatprep.subr.mxu0 0.0
    %2222 = vmatpush1.msra.mxu0 0.0
    %2223 = vmatprep.subr.mxu0 0.0
    %2224 = vmatpush1.msra.mxu0 0.0
    %2225 = vmatprep.subr.mxu0 0.0
    %2226 = vmatpush1.msra.mxu0 0.0
    %2227 = vmatprep.subr.mxu0 0.0
    %2228 = vmatpush1.msra.mxu0 0.0
    %2229 = vmatprep.subr.mxu0 0.0
    %2230 = vmatpush1.msra.mxu0 0.0
    %2231 = vmatprep.subr.mxu0 0.0
    %2232 = vmatpush1.msra.mxu0 0.0
    %2233 = vmatprep.subr.mxu0 0.0
    %2234 = vmatpush1.msra.mxu0 0.0
    %2235 = vmatprep.subr.mxu0 0.0
    %2236 = vmatpush1.msra.mxu0 0.0
    %2237 = vmatprep.subr.mxu0 0.0
    %2238 = vmatpush1.msra.mxu0 0.0
    %2239 = vmatprep.subr.mxu0 0.0
    %2240 = vmatpush1.msra.mxu0 0.0
    %2241 = vmatprep.subr.mxu0 0.0
    %2242 = vmatpush1.msra.mxu0 0.0
    %2243 = vmatprep.subr.mxu0 0.0
    %2244 = vmatpush1.msra.mxu0 0.0
    %2245 = vmatprep.subr.mxu0 0.0
    %2246 = vmatpush1.msra.mxu0 0.0
    %2247 = vmatprep.subr.mxu0 0.0
    %2248 = vmatpush1.msra.mxu0 0.0
    %2249 = vmatprep.subr.mxu0 0.0
    %2250 = vmatpush1.msra.mxu0 0.0
    %2251 = vmatprep.subr.mxu0 0.0
    %2252 = vmatpush1.msra.mxu0 0.0
    %2253 = vmatprep.subr.mxu0 0.0
    %2254 = vmatpush1.msra.mxu0 0.0
    %2255 = vmatprep.subr.mxu0 0.0
    %2256 = vmatpush1.msra.mxu0 0.0
    %2257 = vmatprep.subr.mxu0 0.0
    %2258 = vmatpush1.msra.mxu0 0.0
    %2259 = vmatprep.subr.mxu0 0.0
    %2260 = vmatpush1.msra.mxu0 0.0
    %2261 = vmatprep.subr.mxu0 0.0
    %2262 = vmatpush1.msra.mxu0 0.0
    %2263 = vmatprep.subr.mxu0 0.0
    %2264 = vmatpush1.msra.mxu0 0.0
    %2265 = vmatprep.subr.mxu0 0.0
    %2266 = vmatpush1.msra.mxu0 0.0
    %2267 = vmatprep.subr.mxu0 0.0
    %2268 = vmatpush1.msra.mxu0 0.0
    %2269 = vmatprep.subr.mxu0 0.0
    %2270 = vmatpush1.msra.mxu0 0.0
    %2271 = vmatprep.subr.mxu0 0.0
    %2272 = vmatpush1.msra.mxu0 0.0
    %2273 = vmatprep.subr.mxu0 0.0
    %2274 = vmatpush1.msra.mxu0 0.0
    %2275 = vmatprep.mubr.f32.mxu0 0.0
    %2276 = vmatmul.mubr.f32.gmra.mrb[0].mxu0 %v2206
    %v2277 = vpop.f32.mrb[0].mxu0
    %v2278 = vadd.f32 0.0, %v2277
    %v2279 = vpop.f32.mrb[0].mxu0
    %2280 = vmatprep.mubr.f32.mxu0 0.0
    %2281 = vmatmul.mubr.f32.gmra.mrb[0].mxu0 %v2209
    %v2282 = vpop.f32.mrb[0].mxu0
    %v2283 = vadd.f32 0.0, %v2282
    %v2284 = vpop.f32.mrb[0].mxu0
    %2285 = vdwg.mxu0
    %2286 = vmatprep.subr.mxu0 0.0
    %2287 = vmatpush1.msra.mxu0 %v2203
    %2288 = vmatprep.subr.mxu0 0.0
    %2289 = vmatpush1.msra.mxu0 %v2204
    %2290 = vmatprep.subr.mxu0 0.0
    %2291 = vmatpush1.msra.mxu0 0.0
    %2292 = vmatprep.subr.mxu0 0.0
    %2293 = vmatpush1.msra.mxu0 0.0
    %2294 = vmatprep.subr.mxu0 0.0
    %2295 = vmatpush1.msra.mxu0 0.0
    %2296 = vmatprep.subr.mxu0 0.0
    %2297 = vmatpush1.msra.mxu0 0.0
    %2298 = vmatprep.subr.mxu0 0.0
    %2299 = vmatpush1.msra.mxu0 0.0
    %2300 = vmatprep.subr.mxu0 0.0
    %2301 = vmatpush1.msra.mxu0 0.0
    %2302 = vmatprep.subr.mxu0 0.0
    %2303 = vmatpush1.msra.mxu0 0.0
    %2304 = vmatprep.subr.mxu0 0.0
    %2305 = vmatpush1.msra.mxu0 0.0
    %2306 = vmatprep.subr.mxu0 0.0
    %2307 = vmatpush1.msra.mxu0 0.0
    %2308 = vmatprep.subr.mxu0 0.0
    %2309 = vmatpush1.msra.mxu0 0.0
    %2310 = vmatprep.subr.mxu0 0.0
    %2311 = vmatpush1.msra.mxu0 0.0
    %2312 = vmatprep.subr.mxu0 0.0
    %2313 = vmatpush1.msra.mxu0 0.0
    %2314 = vmatprep.subr.mxu0 0.0
    %2315 = vmatpush1.msra.mxu0 0.0
    %2316 = vmatprep.subr.mxu0 0.0
    %2317 = vmatpush1.msra.mxu0 0.0
    %2318 = vmatprep.subr.mxu0 0.0
    %2319 = vmatpush1.msra.mxu0 0.0
    %2320 = vmatprep.subr.mxu0 0.0
    %2321 = vmatpush1.msra.mxu0 0.0
    %2322 = vmatprep.subr.mxu0 0.0
    %2323 = vmatpush1.msra.mxu0 0.0
    %2324 = vmatprep.subr.mxu0 0.0
    %2325 = vmatpush1.msra.mxu0 0.0
    %2326 = vmatprep.subr.mxu0 0.0
    %2327 = vmatpush1.msra.mxu0 0.0
    %2328 = vmatprep.subr.mxu0 0.0
    %2329 = vmatpush1.msra.mxu0 0.0
    %2330 = vmatprep.subr.mxu0 0.0
    %2331 = vmatpush1.msra.mxu0 0.0
    %2332 = vmatprep.subr.mxu0 0.0
    %2333 = vmatpush1.msra.mxu0 0.0
    %2334 = vmatprep.subr.mxu0 0.0
    %2335 = vmatpush1.msra.mxu0 0.0
    %2336 = vmatprep.subr.mxu0 0.0
    %2337 = vmatpush1.msra.mxu0 0.0
    %2338 = vmatprep.subr.mxu0 0.0
    %2339 = vmatpush1.msra.mxu0 0.0
    %2340 = vmatprep.subr.mxu0 0.0
    %2341 = vmatpush1.msra.mxu0 0.0
    %2342 = vmatprep.subr.mxu0 0.0
    %2343 = vmatpush1.msra.mxu0 0.0
    %2344 = vmatprep.subr.mxu0 0.0
    %2345 = vmatpush1.msra.mxu0 0.0
    %2346 = vmatprep.subr.mxu0 0.0
    %2347 = vmatpush1.msra.mxu0 0.0
    %2348 = vmatprep.subr.mxu0 0.0
    %2349 = vmatpush1.msra.mxu0 0.0
    %2350 = vmatprep.mubr.f32.mxu0 0.0
    %2351 = vmatmul.mubr.f32.gmra.mrb[0].mxu0 %v2206
    %v2352 = vpop.f32.mrb[0].mxu0
    %v2353 = vadd.f32 0.0, %v2352
    %v2354 = vpop.f32.mrb[0].mxu0
    %2355 = vmatprep.mubr.f32.mxu0 0.0
    %2356 = vmatmul.mubr.f32.gmra.mrb[0].mxu0 %v2209
    %v2357 = vpop.f32.mrb[0].mxu0
    %v2358 = vadd.f32 0.0, %v2357
    %v2359 = vpop.f32.mrb[0].mxu0
    %2360 = vdwg.mxu0
    %v2361 = vld [vmem:[#allocation9] sm:$0xff]
    %v2362 = vld [vmem:[#allocation9 + $0x8] sm:$0xff]
    %v2363 = vld [vmem:[#allocation9 + $0x10] sm:$0xff]
    %v2364 = vld [vmem:[#allocation9 + $0x18] sm:$0xff]
    %v2366 = vsel %vm121, %v2278, 0
    %v2369 = vsel %vm121, %v2283, 0
    %v2372 = vsel %vm121, %v2353, 0
    %v2375 = vsel %vm121, %v2358, 0
    %2377 = vmatprep.subr.mxu0 0.0
    %2378 = vmatpush1.msra.mxu0 %v2361
    %2379 = vmatprep.subr.mxu0 0.0
    %2380 = vmatpush1.msra.mxu0 %v2362
    %2381 = vmatprep.subr.mxu0 0.0
    %2382 = vmatpush1.msra.mxu0 %v2363
    %2383 = vmatprep.subr.mxu0 0.0
    %2384 = vmatpush1.msra.mxu0 %v2364
    %2385 = vmatprep.subr.mxu0 0.0
    %2386 = vmatpush1.msra.mxu0 0.0
    %2387 = vmatprep.subr.mxu0 0.0
    %2388 = vmatpush1.msra.mxu0 0.0
    %2389 = vmatprep.subr.mxu0 0.0
    %2390 = vmatpush1.msra.mxu0 0.0
    %2391 = vmatprep.subr.mxu0 0.0
    %2392 = vmatpush1.msra.mxu0 0.0
    %2393 = vmatprep.subr.mxu0 0.0
    %2394 = vmatpush1.msra.mxu0 0.0
    %2395 = vmatprep.subr.mxu0 0.0
    %2396 = vmatpush1.msra.mxu0 0.0
    %2397 = vmatprep.subr.mxu0 0.0
    %2398 = vmatpush1.msra.mxu0 0.0
    %2399 = vmatprep.subr.mxu0 0.0
    %2400 = vmatpush1.msra.mxu0 0.0
    %2401 = vmatprep.subr.mxu0 0.0
    %2402 = vmatpush1.msra.mxu0 0.0
    %2403 = vmatprep.subr.mxu0 0.0
    %2404 = vmatpush1.msra.mxu0 0.0
    %2405 = vmatprep.subr.mxu0 0.0
    %2406 = vmatpush1.msra.mxu0 0.0
    %2407 = vmatprep.subr.mxu0 0.0
    %2408 = vmatpush1.msra.mxu0 0.0
    %2409 = vmatprep.subr.mxu0 0.0
    %2410 = vmatpush1.msra.mxu0 0.0
    %2411 = vmatprep.subr.mxu0 0.0
    %2412 = vmatpush1.msra.mxu0 0.0
    %2413 = vmatprep.subr.mxu0 0.0
    %2414 = vmatpush1.msra.mxu0 0.0
    %2415 = vmatprep.subr.mxu0 0.0
    %2416 = vmatpush1.msra.mxu0 0.0
    %2417 = vmatprep.subr.mxu0 0.0
    %2418 = vmatpush1.msra.mxu0 0.0
    %2419 = vmatprep.subr.mxu0 0.0
    %2420 = vmatpush1.msra.mxu0 0.0
    %2421 = vmatprep.subr.mxu0 0.0
    %2422 = vmatpush1.msra.mxu0 0.0
    %2423 = vmatprep.subr.mxu0 0.0
    %2424 = vmatpush1.msra.mxu0 0.0
    %2425 = vmatprep.subr.mxu0 0.0
    %2426 = vmatpush1.msra.mxu0 0.0
    %2427 = vmatprep.subr.mxu0 0.0
    %2428 = vmatpush1.msra.mxu0 0.0
    %2429 = vmatprep.subr.mxu0 0.0
    %2430 = vmatpush1.msra.mxu0 0.0
    %2431 = vmatprep.subr.mxu0 0.0
    %2432 = vmatpush1.msra.mxu0 0.0
    %2433 = vmatprep.subr.mxu0 0.0
    %2434 = vmatpush1.msra.mxu0 0.0
    %2435 = vmatprep.subr.mxu0 0.0
    %2436 = vmatpush1.msra.mxu0 0.0
    %2437 = vmatprep.subr.mxu0 0.0
    %2438 = vmatpush1.msra.mxu0 0.0
    %2439 = vmatprep.subr.mxu0 0.0
    %2440 = vmatpush1.msra.mxu0 0.0
    %2441 = vmatprep.mubr.f32.mxu0 0.0
    %2442 = vmatmul.mubr.f32.gmra.mrb[0].mxu0 %v2366
    %v2443 = vpop.f32.mrb[0].mxu0
    %v2444 = vadd.f32 0.0, %v2443
    %v2445 = vpop.f32.mrb[0].mxu0
    %2446 = vmatprep.mubr.f32.mxu0 0.0
    %2447 = vmatmul.mubr.f32.gmra.mrb[0].mxu0 %v2369
    %v2448 = vpop.f32.mrb[0].mxu0
    %v2449 = vadd.f32 0.0, %v2448
    %v2450 = vpop.f32.mrb[0].mxu0
    %2451 = vmatprep.mubr.f32.mxu0 0.0
    %2452 = vmatmul.mubr.f32.gmra.mrb[0].mxu0 %v2372
    %v2453 = vpop.f32.mrb[0].mxu0
    %v2454 = vadd.f32 0.0, %v2453
    %v2455 = vpop.f32.mrb[0].mxu0
    %2456 = vmatprep.mubr.f32.mxu0 0.0
    %2457 = vmatmul.mubr.f32.gmra.mrb[0].mxu0 %v2375
    %v2458 = vpop.f32.mrb[0].mxu0
    %v2459 = vadd.f32 0.0, %v2458
    %v2460 = vpop.f32.mrb[0].mxu0
    %2461 = vdwg.mxu0
    %v2462 = vmax.f32 %v2444, 0.0
    %v2463 = vmax.f32 %v2449, 0.0
    %v2464 = vmax.f32 %v2454, 0.0
    %v2465 = vmax.f32 %v2459, 0.0
    %v2466 = vld [vmem:[%s11] sm:$0xff]
    %v2467 = vld [vmem:[%s11 + $0x8] sm:$0xff]
    %v2468 = vld [vmem:[%s11 + $0x10] sm:$0xff]
    %v2469 = vld [vmem:[%s11 + $0x18] sm:$0xff]
    %v2470 = vld [vmem:[%s11 + $0x20] sm:$0xff]
    %v2471 = vld [vmem:[%s11 + $0x28] sm:$0xff]
    %v2472 = vld [vmem:[%s11 + $0x30] sm:$0xff]
    %v2473 = vld [vmem:[%s11 + $0x38] sm:$0xff]
    %vm2474 = vcmask 523264
    %v2476 = vsel %vm2474, %v2462, 0
    %v2479 = vsel %vm2474, %v2463, 0
    %v2482 = vsel %vm2474, %v2464, 0
    %v2485 = vsel %vm2474, %v2465, 0
    %2487 = vmatprep.subr.mxu0 0.0
    %2488 = vmatpush1.msra.mxu0 %v2466
    %2489 = vmatprep.subr.mxu0 0.0
    %2490 = vmatpush1.msra.mxu0 %v2467
    %2491 = vmatprep.subr.mxu0 0.0
    %2492 = vmatpush1.msra.mxu0 %v2468
    %2493 = vmatprep.subr.mxu0 0.0
    %2494 = vmatpush1.msra.mxu0 %v2469
    %2495 = vmatprep.subr.mxu0 0.0
    %2496 = vmatpush1.msra.mxu0 %v2470
    %2497 = vmatprep.subr.mxu0 0.0
    %2498 = vmatpush1.msra.mxu0 %v2471
    %2499 = vmatprep.subr.mxu0 0.0
    %2500 = vmatpush1.msra.mxu0 %v2472
    %2501 = vmatprep.subr.mxu0 0.0
    %2502 = vmatpush1.msra.mxu0 %v2473
    %2503 = vmatprep.subr.mxu0 0.0
    %2504 = vmatpush1.msra.mxu0 0.0
    %2505 = vmatprep.subr.mxu0 0.0
    %2506 = vmatpush1.msra.mxu0 0.0
    %2507 = vmatprep.subr.mxu0 0.0
    %2508 = vmatpush1.msra.mxu0 0.0
    %2509 = vmatprep.subr.mxu0 0.0
    %2510 = vmatpush1.msra.mxu0 0.0
    %2511 = vmatprep.subr.mxu0 0.0
    %2512 = vmatpush1.msra.mxu0 0.0
    %2513 = vmatprep.subr.mxu0 0.0
    %2514 = vmatpush1.msra.mxu0 0.0
    %2515 = vmatprep.subr.mxu0 0.0
    %2516 = vmatpush1.msra.mxu0 0.0
    %2517 = vmatprep.subr.mxu0 0.0
    %2518 = vmatpush1.msra.mxu0 0.0
    %2519 = vmatprep.subr.mxu0 0.0
    %2520 = vmatpush1.msra.mxu0 0.0
    %2521 = vmatprep.subr.mxu0 0.0
    %2522 = vmatpush1.msra.mxu0 0.0
    %2523 = vmatprep.subr.mxu0 0.0
    %2524 = vmatpush1.msra.mxu0 0.0
    %2525 = vmatprep.subr.mxu0 0.0
    %2526 = vmatpush1.msra.mxu0 0.0
    %2527 = vmatprep.subr.mxu0 0.0
    %2528 = vmatpush1.msra.mxu0 0.0
    %2529 = vmatprep.subr.mxu0 0.0
    %2530 = vmatpush1.msra.mxu0 0.0
    %2531 = vmatprep.subr.mxu0 0.0
    %2532 = vmatpush1.msra.mxu0 0.0
    %2533 = vmatprep.subr.mxu0 0.0
    %2534 = vmatpush1.msra.mxu0 0.0
    %2535 = vmatprep.subr.mxu0 0.0
    %2536 = vmatpush1.msra.mxu0 0.0
    %2537 = vmatprep.subr.mxu0 0.0
    %2538 = vmatpush1.msra.mxu0 0.0
    %2539 = vmatprep.subr.mxu0 0.0
    %2540 = vmatpush1.msra.mxu0 0.0
    %2541 = vmatprep.subr.mxu0 0.0
    %2542 = vmatpush1.msra.mxu0 0.0
    %2543 = vmatprep.subr.mxu0 0.0
    %2544 = vmatpush1.msra.mxu0 0.0
    %2545 = vmatprep.subr.mxu0 0.0
    %2546 = vmatpush1.msra.mxu0 0.0
    %2547 = vmatprep.subr.mxu0 0.0
    %2548 = vmatpush1.msra.mxu0 0.0
    %2549 = vmatprep.subr.mxu0 0.0
    %2550 = vmatpush1.msra.mxu0 0.0
    %2551 = vmatprep.mubr.f32.mxu0 0.0
    %2552 = vmatmul.mubr.f32.gmra.mrb[0].mxu0 %v2476
    %v2553 = vpop.f32.mrb[0].mxu0
    %v2554 = vadd.f32 0.0, %v2553
    %v2555 = vpop.f32.mrb[0].mxu0
    %2556 = vmatprep.mubr.f32.mxu0 0.0
    %2557 = vmatmul.mubr.f32.gmra.mrb[0].mxu0 %v2479
    %v2558 = vpop.f32.mrb[0].mxu0
    %v2559 = vadd.f32 0.0, %v2558
    %v2560 = vpop.f32.mrb[0].mxu0
    %2561 = vmatprep.mubr.f32.mxu0 0.0
    %2562 = vmatmul.mubr.f32.gmra.mrb[0].mxu0 %v2482
    %v2563 = vpop.f32.mrb[0].mxu0
    %v2564 = vadd.f32 0.0, %v2563
    %v2565 = vpop.f32.mrb[0].mxu0
    %2566 = vmatprep.mubr.f32.mxu0 0.0
    %2567 = vmatmul.mubr.f32.gmra.mrb[0].mxu0 %v2485
    %v2568 = vpop.f32.mrb[0].mxu0
    %v2569 = vadd.f32 0.0, %v2568
    %v2570 = vpop.f32.mrb[0].mxu0
    %2571 = vdwg.mxu0
    %v2572 = vadd.f32 %v2278, %v2554
    %v2573 = vadd.f32 %v2283, %v2559
    %v2574 = vadd.f32 %v2353, %v2564
    %v2575 = vadd.f32 %v2358, %v2569
    %2576 = vmatprep.subr.mxu0 0.0
    %2577 = vmatpush1.msra.mxu0 %v2572
    %2578 = vmatprep.subr.mxu0 0.0
    %2579 = vmatpush1.msra.mxu0 %v2573
    %2580 = vmatprep.subr.mxu0 0.0
    %2581 = vmatpush1.msra.mxu0 0.0
    %2582 = vmatprep.subr.mxu0 0.0
    %2583 = vmatpush1.msra.mxu0 0.0
    %2584 = vmatprep.subr.mxu0 0.0
    %2585 = vmatpush1.msra.mxu0 0.0
    %2586 = vmatprep.subr.mxu0 0.0
    %2587 = vmatpush1.msra.mxu0 0.0
    %2588 = vmatprep.subr.mxu0 0.0
    %2589 = vmatpush1.msra.mxu0 0.0
    %2590 = vmatprep.subr.mxu0 0.0
    %2591 = vmatpush1.msra.mxu0 0.0
    %2592 = vmatprep.subr.mxu0 0.0
    %2593 = vmatpush1.msra.mxu0 0.0
    %2594 = vmatprep.subr.mxu0 0.0
    %2595 = vmatpush1.msra.mxu0 0.0
    %2596 = vmatprep.subr.mxu0 0.0
    %2597 = vmatpush1.msra.mxu0 0.0
    %2598 = vmatprep.subr.mxu0 0.0
    %2599 = vmatpush1.msra.mxu0 0.0
    %2600 = vmatprep.subr.mxu0 0.0
    %2601 = vmatpush1.msra.mxu0 0.0
    %2602 = vmatprep.subr.mxu0 0.0
    %2603 = vmatpush1.msra.mxu0 0.0
    %2604 = vmatprep.subr.mxu0 0.0
    %2605 = vmatpush1.msra.mxu0 0.0
    %2606 = vmatprep.subr.mxu0 0.0
    %2607 = vmatpush1.msra.mxu0 0.0
    %2608 = vmatprep.subr.mxu0 0.0
    %2609 = vmatpush1.msra.mxu0 0.0
    %2610 = vmatprep.subr.mxu0 0.0
    %2611 = vmatpush1.msra.mxu0 0.0
    %2612 = vmatprep.subr.mxu0 0.0
    %2613 = vmatpush1.msra.mxu0 0.0
    %2614 = vmatprep.subr.mxu0 0.0
    %2615 = vmatpush1.msra.mxu0 0.0
    %2616 = vmatprep.subr.mxu0 0.0
    %2617 = vmatpush1.msra.mxu0 0.0
    %2618 = vmatprep.subr.mxu0 0.0
    %2619 = vmatpush1.msra.mxu0 0.0
    %2620 = vmatprep.subr.mxu0 0.0
    %2621 = vmatpush1.msra.mxu0 0.0
    %2622 = vmatprep.subr.mxu0 0.0
    %2623 = vmatpush1.msra.mxu0 0.0
    %2624 = vmatprep.subr.mxu0 0.0
    %2625 = vmatpush1.msra.mxu0 0.0
    %2626 = vmatprep.subr.mxu0 0.0
    %2627 = vmatpush1.msra.mxu0 0.0
    %2628 = vmatprep.subr.mxu0 0.0
    %2629 = vmatpush1.msra.mxu0 0.0
    %2630 = vmatprep.subr.mxu0 0.0
    %2631 = vmatpush1.msra.mxu0 0.0
    %2632 = vmatprep.subr.mxu0 0.0
    %2633 = vmatpush1.msra.mxu0 0.0
    %2634 = vmatprep.subr.mxu0 0.0
    %2635 = vmatpush1.msra.mxu0 0.0
    %2636 = vmatprep.subr.mxu0 0.0
    %2637 = vmatpush1.msra.mxu0 0.0
    %2638 = vmatprep.subr.mxu0 0.0
    %2639 = vmatpush1.msra.mxu0 0.0
    %2640 = vmatprep.mubr.f32.mxu0 0.0
    %2641 = vmatmul.mubr.f32.gmra.mrb[0].mxu0 %v2206
    %v2642 = vpop.f32.mrb[0].mxu0
    %v2643 = vadd.f32 0.0, %v2642
    %v2644 = vpop.f32.mrb[0].mxu0
    %2645 = vmatprep.mubr.f32.mxu0 0.0
    %2646 = vmatmul.mubr.f32.gmra.mrb[0].mxu0 %v2209
    %v2647 = vpop.f32.mrb[0].mxu0
    %v2648 = vadd.f32 0.0, %v2647
    %v2649 = vpop.f32.mrb[0].mxu0
    %2650 = vdwg.mxu0
    %2651 = vmatprep.subr.mxu0 0.0
    %2652 = vmatpush1.msra.mxu0 %v2574
    %2653 = vmatprep.subr.mxu0 0.0
    %2654 = vmatpush1.msra.mxu0 %v2575
    %2655 = vmatprep.subr.mxu0 0.0
    %2656 = vmatpush1.msra.mxu0 0.0
    %2657 = vmatprep.subr.mxu0 0.0
    %2658 = vmatpush1.msra.mxu0 0.0
    %2659 = vmatprep.subr.mxu0 0.0
    %2660 = vmatpush1.msra.mxu0 0.0
    %2661 = vmatprep.subr.mxu0 0.0
    %2662 = vmatpush1.msra.mxu0 0.0
    %2663 = vmatprep.subr.mxu0 0.0
    %2664 = vmatpush1.msra.mxu0 0.0
    %2665 = vmatprep.subr.mxu0 0.0
    %2666 = vmatpush1.msra.mxu0 0.0
    %2667 = vmatprep.subr.mxu0 0.0
    %2668 = vmatpush1.msra.mxu0 0.0
    %2669 = vmatprep.subr.mxu0 0.0
    %2670 = vmatpush1.msra.mxu0 0.0
    %2671 = vmatprep.subr.mxu0 0.0
    %2672 = vmatpush1.msra.mxu0 0.0
    %2673 = vmatprep.subr.mxu0 0.0
    %2674 = vmatpush1.msra.mxu0 0.0
    %2675 = vmatprep.subr.mxu0 0.0
    %2676 = vmatpush1.msra.mxu0 0.0
    %2677 = vmatprep.subr.mxu0 0.0
    %2678 = vmatpush1.msra.mxu0 0.0
    %2679 = vmatprep.subr.mxu0 0.0
    %2680 = vmatpush1.msra.mxu0 0.0
    %2681 = vmatprep.subr.mxu0 0.0
    %2682 = vmatpush1.msra.mxu0 0.0
    %2683 = vmatprep.subr.mxu0 0.0
    %2684 = vmatpush1.msra.mxu0 0.0
    %2685 = vmatprep.subr.mxu0 0.0
    %2686 = vmatpush1.msra.mxu0 0.0
    %2687 = vmatprep.subr.mxu0 0.0
    %2688 = vmatpush1.msra.mxu0 0.0
    %2689 = vmatprep.subr.mxu0 0.0
    %2690 = vmatpush1.msra.mxu0 0.0
    %2691 = vmatprep.subr.mxu0 0.0
    %2692 = vmatpush1.msra.mxu0 0.0
    %2693 = vmatprep.subr.mxu0 0.0
    %2694 = vmatpush1.msra.mxu0 0.0
    %2695 = vmatprep.subr.mxu0 0.0
    %2696 = vmatpush1.msra.mxu0 0.0
    %2697 = vmatprep.subr.mxu0 0.0
    %2698 = vmatpush1.msra.mxu0 0.0
    %2699 = vmatprep.subr.mxu0 0.0
    %2700 = vmatpush1.msra.mxu0 0.0
    %2701 = vmatprep.subr.mxu0 0.0
    %2702 = vmatpush1.msra.mxu0 0.0
    %2703 = vmatprep.subr.mxu0 0.0
    %2704 = vmatpush1.msra.mxu0 0.0
    %2705 = vmatprep.subr.mxu0 0.0
    %2706 = vmatpush1.msra.mxu0 0.0
    %2707 = vmatprep.subr.mxu0 0.0
    %2708 = vmatpush1.msra.mxu0 0.0
    %2709 = vmatprep.subr.mxu0 0.0
    %2710 = vmatpush1.msra.mxu0 0.0
    %2711 = vmatprep.subr.mxu0 0.0
    %2712 = vmatpush1.msra.mxu0 0.0
    %2713 = vmatprep.subr.mxu0 0.0
    %2714 = vmatpush1.msra.mxu0 0.0
    %2715 = vmatprep.mubr.f32.mxu0 0.0
    %2716 = vmatmul.mubr.f32.gmra.mrb[0].mxu0 %v2206
    %v2717 = vpop.f32.mrb[0].mxu0
    %v2718 = vadd.f32 0.0, %v2717
    %v2719 = vpop.f32.mrb[0].mxu0
    %2720 = vmatprep.mubr.f32.mxu0 0.0
    %2721 = vmatmul.mubr.f32.gmra.mrb[0].mxu0 %v2209
    %v2722 = vpop.f32.mrb[0].mxu0
    %v2723 = vadd.f32 0.0, %v2722
    %v2724 = vpop.f32.mrb[0].mxu0
    %2725 = vdwg.mxu0
    %2726 = vst.msk [vmem:[#allocation11] sm:$0xff] %vm121, %v2643
    %2727 = vst.msk [vmem:[#allocation11 + $0x8] sm:$0xff] %vm121, %v2648
    %2728 = vst.msk [vmem:[#allocation11 + $0x10] sm:$0xff] %vm121, %v2718
    %2729 = vst.msk [vmem:[#allocation11 + $0x18] sm:$0xff] %vm121, %v2723
    // Predicated region
    $region74: #{tpu_custom_call.1} parent=1 // pred_check
      _
    $region75: #{tpu_custom_call.1} parent=1 // pred_check_branch
      %2731 = sbr.rel (0) target = $region77
    $region76: #{tpu_custom_call.1} parent=1 // pred_region
      %s2733 = ssub.s32 512, 512
      %2734 = vsyncadd [#allocation5], %s2733
      %s2735 = sshll.u32 [#allocation11], 4
      %s2736 = int_to_ptr.vmem [resolvable:$true] %s2735
      %2741 = dma.vmem_to_hbm [thread:$0]  %s2736, 512, %s14, [#allocation5], 128, 128, 8
    $region77: #{tpu_custom_call.1} parent=1 // pred_fallthru
      _
    // Predicated region
    $region78: #{tpu_custom_call.1} parent=1 // pred_check
      _
    $region79: #{tpu_custom_call.1} parent=1 // pred_check_branch
      %2743 = sbr.rel (0) target = $region81
    $region80: #{tpu_custom_call.1} parent=1 // pred_region
      %s2745 = ssub.s32 2048, 2048
      %2746 = vsyncadd [#allocation13], %s2745
      %s2747 = sshll.u32 [#allocation12], 4
      %s2748 = int_to_ptr.vmem [resolvable:$true] %s2747
      %2753 = dma.vmem_to_hbm [thread:$0]  %s2748, 2048, %s15, [#allocation13], 128, 128, 8
    $region81: #{tpu_custom_call.1} parent=1 // pred_fallthru
      _
    // Predicated region
    $region82: #{tpu_custom_call.1} parent=1 // pred_check
      _
    $region83: #{tpu_custom_call.1} parent=1 // pred_check_branch
      %2755 = sbr.rel (0) target = $region85
    $region84: #{tpu_custom_call.1} parent=1 // pred_region
      %2756 = dma.done [#allocation5], 512
    $region85: #{tpu_custom_call.1} parent=1 // pred_fallthru
      _
    // Predicated region
    $region86: #{tpu_custom_call.1} parent=1 // pred_check
      _
    $region87: #{tpu_custom_call.1} parent=1 // pred_check_branch
      %2758 = sbr.rel (0) target = $region89
    $region88: #{tpu_custom_call.1} parent=1 // pred_region
      %2759 = dma.done [#allocation13], 2048
    $region89: #{tpu_custom_call.1} parent=1 // pred_fallthru
      _
    %2760 = vsyncpa [#allocation4], 1
    %2761 = vsyncpa [#allocation7], 1
    %2762 = vsyncpa [#allocation10], 1
    %2763 = vsyncpa [#allocation5], 1
    %2764 = vsyncpa [#allocation13], 1

</llo_original>
